<compile_context>
chip_gen: v5e
topology: v5e:2x2
jax: 0.10.0
libtpu: 0.0.40
codegen_flags: <defaults>
</compile_context>

<pallas_src>
import jax
import jax.numpy as jnp
from jax import lax
from jax.experimental import pallas as pl
from jax.experimental.pallas import tpu as pltpu

HIDDEN = 32       # hidden_size (module uses 64; small shape per instructions)
N_CHARS = 128     # input_size (vocab)
N_LABELS = 4      # output_size
N_LAYERS = 2      # kernel hard-codes 2 bidirectional layers (N_LAYER = 2)

GATE = 128        # lane-aligned gate block: [fwd H | bwd H | zero pad]
SW = 128          # combined state width: [h_fwd H | h_bwd H | bias lane | pad]


# ----------------------------------------------------------------------------
# Pallas kernel
# ----------------------------------------------------------------------------
def rnn_classifier_kernel(
    z0_ref,                 # (T*B, 2H)  layer-0 combined input [emb(t) | emb(T-1-t)]
    mask_ref,               # (T*B, SW)  f32 0/1 per-step combined fwd/bwd update mask
    wih0_ref, bih0_ref,     # (2H, 3G), (1, 3G)
    whh0_ref,               # (SW, 3G)   block-diag fwd/bwd hh weight, hh biases in row 2H
    wih1_ref, bih1_ref,     # (4H, 3G), (1, 3G)
    whh1_ref,               # (SW, 3G)
    fcw_ref, fcb_ref,       # (2H, O), (1, O)
    fc_out_ref, hid_ref,    # outputs: (B, O), (B, 2H)
    gi_ref,                 # VMEM scratch (T*B, 3G): batched input projections
):
    TB, SW_ = mask_ref.shape
    B = fc_out_ref.shape[0]
    T = TB // B
    H = hid_ref.shape[1] // 2
    G3 = whh0_ref.shape[1]
    G = G3 // 3

    # Length masks: built once in the wrapper, hoisted here before the loops
    # (review: no per-step compare+broadcast on the recurrence).
    masks = [mask_ref[t * B:(t + 1) * B, :] > 0.0 for t in range(T)]

    # Combined state: lanes [0,H) fwd hidden, [H,2H) bwd hidden, lane 2H is a
    # constant-1 bias lane (hh biases live in row 2H of whh_comb), rest pad=0.
    # Mask is 0 on lanes >= 2H, so bias lane / pad stay at their init values.
    lane = lax.broadcasted_iota(jnp.int32, (B, SW_), 1)
    h_init = jnp.where(lane == 2 * H, 1.0, 0.0).astype(jnp.float32)

    def run_layer(whh_ref, collect):
        """Fused fwd+bwd recurrence: one block-diag hh matmul per step.
        Step i: fwd processes time i, bwd processes time T-1-i."""
        h = h_init
        outs = []
        for i in range(T):
            gi = gi_ref[i * B:(i + 1) * B, :]                        # (B, 3G)
            gh = jnp.dot(h, whh_ref[...],
                         preferred_element_type=jnp.float32)         # (B, 3G)
            rz = jax.nn.sigmoid(gi[:, :2 * G] + gh[:, :2 * G])       # (B, 2G)
            r, z = rz[:, :G], rz[:, G:]
            n = jnp.tanh(gi[:, 2 * G:] + r * gh[:, 2 * G:])          # b_hn inside r*(..)
            h_new = (1.0 - z) * n + z * h
            h = jnp.where(masks[i], h_new, h)
            if collect:
                outs.append(h)
        return h, outs

    # ---------------- Layer 0 ----------------
    # Batched input projection for ALL steps / dirs / gates -> VMEM scratch.
    gi_ref[...] = (jnp.dot(z0_ref[...], wih0_ref[...],
                           preferred_element_type=jnp.float32) + bih0_ref[...])
    _, outs0 = run_layer(whh0_ref, collect=True)

    # Layer-1 combined per-step input, built once from register-resident
    # layer-0 outputs: row-block t = [f(t), b(T-1-t), f(T-1-t), b(t)].
    z1 = jnp.concatenate(
        [jnp.concatenate([outs0[t][:, :2 * H], outs0[T - 1 - t][:, :2 * H]],
                         axis=1) for t in range(T)], axis=0)          # (T*B, 4H)

    # ---------------- Layer 1 ----------------
    gi_ref[...] = (jnp.dot(z1, wih1_ref[...],
                           preferred_element_type=jnp.float32) + bih1_ref[...])
    h1, _ = run_layer(whh1_ref, collect=False)

    # hidden_cat = torch.cat([hidden[-1], hidden[-2]], dim=1) = [bwd_l1, fwd_l1]
    hidden_cat = jnp.concatenate([h1[:, H:2 * H], h1[:, :H]], axis=1)  # (B, 2H)
    hid_ref[...] = hidden_cat
    fc_out_ref[...] = (jnp.dot(hidden_cat, fcw_ref[...],
                               preferred_element_type=jnp.float32) + fcb_ref[...])


# ----------------------------------------------------------------------------
# Parameters (PyTorch-style per-gate layout [r, z, n]; fused in the wrapper)
# ----------------------------------------------------------------------------
def init_params(key, hidden=HIDDEN, n_chars=N_CHARS, out=N_LABELS):
    keys = iter(jax.random.split(key, 32))
    k = 1.0 / (hidden ** 0.5)

    def u(shape):
        return jax.random.uniform(next(keys), shape, jnp.float32, -k, k)

    p = {"embedding": jax.random.normal(next(keys), (n_chars, hidden), jnp.float32)}
    # (layer, direction) -> input width: layer0 sees H, layer1 sees 2H (bidir)
    for name, in_dim in (("l0f", hidden), ("l0b", hidden),
                         ("l1f", 2 * hidden), ("l1b", 2 * hidden)):
        p[f"w_ih_{name}"] = u((3, in_dim, hidden))   # gate order [r, z, n]
        p[f"w_hh_{name}"] = u((3, hidden, hidden))
        p[f"b_ih_{name}"] = u((3, 1, hidden))
        p[f"b_hh_{name}"] = u((3, 1, hidden))
    p["fc_w"] = u((2 * hidden, out))
    p["fc_b"] = u((1, out))
    return p


# ----------------------------------------------------------------------------
# Wrapper-side weight layout plumbing (free, done in XLA)
# ----------------------------------------------------------------------------
def _build_whh(w_f, w_b, b_f, b_b, H, G):
    """Block-diag combined hh weight (SW, 3G): rows [0,H) fwd state, [H,2H) bwd
    state, row 2H carries the hh biases (consumed via the constant-1 lane)."""
    W = jnp.zeros((SW, 3 * G), jnp.float32)
    for g in range(3):
        W = W.at[0:H, g * G:g * G + H].set(w_f[g])
        W = W.at[H:2 * H, g * G + H:g * G + 2 * H].set(w_b[g])
        W = W.at[2 * H, g * G:g * G + H].set(b_f[g][0])
        W = W.at[2 * H, g * G + H:g * G + 2 * H].set(b_b[g][0])
    return W


def _build_wih0(w_f, w_b, b_f, b_b, H, G):
    """Layer-0 combined ih weight: input rows [emb(t) | emb(T-1-t)]."""
    W = jnp.zeros((2 * H, 3 * G), jnp.float32)
    bias = jnp.zeros((1, 3 * G), jnp.float32)
    for g in range(3):
        W = W.at[0:H, g * G:g * G + H].set(w_f[g])
        W = W.at[H:2 * H, g * G + H:g * G + 2 * H].set(w_b[g])
        bias = bias.at[0, g * G:g * G + H].set(b_f[g][0])
        bias = bias.at[0, g * G + H:g * G + 2 * H].set(b_b[g][0])
    return W, bias


def _build_wih1(w_f, w_b, b_f, b_b, H, G):
    """Layer-1 combined ih weight for z1 rows [f(t), b(T-1-t), f(T-1-t), b(t)]."""
    W = jnp.zeros((4 * H, 3 * G), jnp.float32)
    bias = jnp.zeros((1, 3 * G), jnp.float32)
    for g in range(3):
        W = W.at[0:H, g * G:g * G + H].set(w_f[g][0:H])                    # f(t)     -> fwd
        W = W.at[3 * H:4 * H, g * G:g * G + H].set(w_f[g][H:2 * H])        # b(t)     -> fwd
        W = W.at[2 * H:3 * H, g * G + H:g * G + 2 * H].set(w_b[g][0:H])    # f(T-1-t) -> bwd
        W = W.at[H:2 * H, g * G + H:g * G + 2 * H].set(w_b[g][H:2 * H])    # b(T-1-t) -> bwd
        bias = bias.at[0, g * G:g * G + H].set(b_f[g][0])
        bias = bias.at[0, g * G + H:g * G + 2 * H].set(b_b[g][0])
    return W, bias


# ----------------------------------------------------------------------------
# Wrapper
# ----------------------------------------------------------------------------
@jax.jit
def rnn_classifier_forward(tokens, seq_lengths, params):
    """tokens: (B, T) int32 zero-padded, lengths sorted descending.
    Returns (fc_output (B, O), hidden_cat (B, 2H)) like RNNClassifier.forward."""
    # glue: input.t() + embedding gather stays in plain JAX
    # TODO(synk): nn.Embedding gather has no clean in-kernel equivalent at this
    # size; kept as jnp.take in the wrapper.
    emb = jnp.take(params["embedding"], tokens.T, axis=0)          # (T, B, H)
    T, B, H = emb.shape
    G = GATE
    O = params["fc_b"].shape[-1]

    # Layer-0 combined per-step input: [emb(t) | emb(T-1-t)].
    z0 = jnp.concatenate([emb, emb[::-1]], axis=-1).reshape(T * B, 2 * H)

    # Per-step combined update mask (float 0/1):
    #   lanes [0,H): fwd active (t < len); [H,2H): bwd active (T-1-t < len); rest 0.
    lens3 = seq_lengths.astype(jnp.int32)[None, :, None]           # (1, B, 1)
    t_idx = jnp.arange(T)[:, None, None]                           # (T, 1, 1)
    lane = jnp.arange(SW)[None, None, :]                           # (1, 1, SW)
    mask = jnp.where(lane < H, t_idx < lens3,
                     jnp.where(lane < 2 * H, (T - 1 - t_idx) < lens3, False))
    mask_slab = mask.astype(jnp.float32).reshape(T * B, SW)

    wih0, bih0 = _build_wih0(params["w_ih_l0f"], params["w_ih_l0b"],
                             params["b_ih_l0f"], params["b_ih_l0b"], H, G)
    whh0 = _build_whh(params["w_hh_l0f"], params["w_hh_l0b"],
                      params["b_hh_l0f"], params["b_hh_l0b"], H, G)
    wih1, bih1 = _build_wih1(params["w_ih_l1f"], params["w_ih_l1b"],
                             params["b_ih_l1f"], params["b_ih_l1b"], H, G)
    whh1 = _build_whh(params["w_hh_l1f"], params["w_hh_l1b"],
                      params["b_hh_l1f"], params["b_hh_l1b"], H, G)

    args = [z0, mask_slab, wih0, bih0, whh0, wih1, bih1, whh1,
            params["fc_w"], params["fc_b"]]

    # Advisory cost estimate (keeps grid=() — no tiling of the serial chain).
    flops = (2 * T * B * 2 * H * 3 * G            # layer-0 batched input proj
             + 2 * T * B * 4 * H * 3 * G          # layer-1 batched input proj
             + 2 * 2 * T * B * SW * 3 * G         # per-step hh matmuls (2 layers)
             + 2 * B * 2 * H * O)                 # fc
    transcendentals = 2 * 2 * T * B * 3 * G
    bytes_accessed = 4 * (sum(int(a.size) for a in args) + B * O + B * 2 * H)

    vmem = pl.BlockSpec(memory_space=pltpu.MemorySpace.VMEM)
    fc_out, hidden_cat = pl.pallas_call(
        rnn_classifier_kernel,
        out_shape=(jax.ShapeDtypeStruct((B, O), jnp.float32),
                   jax.ShapeDtypeStruct((B, 2 * H), jnp.float32)),
        in_specs=[vmem] * len(args),
        out_specs=(vmem, vmem),
        scratch_shapes=[pltpu.VMEM((T * B, 3 * G), jnp.float32)],
        cost_estimate=pl.CostEstimate(flops=flops,
                                      transcendentals=transcendentals,
                                      bytes_accessed=bytes_accessed),
    )(*args)
    return fc_out, hidden_cat


# ----------------------------------------------------------------------------
# Pure-JAX reference (identical packed-sequence-as-masking semantics)
# ----------------------------------------------------------------------------
def _gru_cell_ref(x, h, w_ih, w_hh, b_ih, b_hh):
    hp = jax.lax.Precision.HIGHEST
    gi = [jnp.dot(x, w_ih[g], precision=hp) + b_ih[g] for g in range(3)]
    gh = [jnp.dot(h, w_hh[g], precision=hp) + b_hh[g] for g in range(3)]
    r = jax.nn.sigmoid(gi[0] + gh[0])
    z = jax.nn.sigmoid(gi[1] + gh[1])
    n = jnp.tanh(gi[2] + r * gh[2])
    return (1.0 - z) * n + z * h


def rnn_classifier_reference(tokens, seq_lengths, params):
    emb = jnp.take(params["embedding"], tokens.T, axis=0)
    T, B, H = emb.shape
    lens = seq_lengths.reshape(B, 1).astype(jnp.int32)

    def run_dir(xs, name, reverse):
        w_ih, w_hh = params[f"w_ih_{name}"], params[f"w_hh_{name}"]
        b_ih, b_hh = params[f"b_ih_{name}"], params[f"b_hh_{name}"]

        def step(h, tx):
            t, x_t = tx
            h_new = _gru_cell_ref(x_t, h, w_ih, w_hh, b_ih, b_hh)
            h = jnp.where(lens > t, h_new, h)
            return h, h

        h_last, outs = lax.scan(step, jnp.zeros((B, H), jnp.float32),
                                (jnp.arange(T), xs), reverse=reverse)
        return h_last, outs

    _, of = run_dir(emb, "l0f", False)
    _, ob = run_dir(emb, "l0b", True)
    x1 = jnp.concatenate([of, ob], axis=-1)
    h1f, _ = run_dir(x1, "l1f", False)
    h1b, _ = run_dir(x1, "l1b", True)
    hidden_cat = jnp.concatenate([h1b, h1f], axis=1)
    fc_out = jnp.dot(hidden_cat, params["fc_w"],
                     precision=jax.lax.Precision.HIGHEST) + params["fc_b"]
    return fc_out, hidden_cat


# ----------------------------------------------------------------------------
if __name__ == "__main__":
    key = jax.random.PRNGKey(0)
    pkey, tkey, lkey = jax.random.split(key, 3)
    params = init_params(pkey)

    B, T = 8, 8
    # lengths sorted descending (pack_padded_sequence contract in make_tensors)
    lengths = jax.random.randint(lkey, (B,), 1, T + 1)
    lengths = jnp.sort(lengths)[::-1].astype(jnp.int32)
    tokens = jax.random.randint(tkey, (B, T), 1, N_CHARS).astype(jnp.int32)
    tokens = jnp.where(jnp.arange(T)[None, :] < lengths[:, None], tokens, 0)

    fc_out, hidden_cat = jax.block_until_ready(
        rnn_classifier_forward(tokens, lengths, params))
    ref_fc, ref_hid = rnn_classifier_reference(tokens, lengths, params)

    assert fc_out.shape == (B, N_LABELS)
    assert hidden_cat.shape == (B, 2 * HIDDEN)
    assert bool(jnp.all(jnp.isfinite(fc_out)))
    assert bool(jnp.all(jnp.isfinite(hidden_cat)))
    assert float(jnp.max(jnp.abs(fc_out - ref_fc))) < 1e-3
    assert float(jnp.max(jnp.abs(hidden_cat - ref_hid))) < 1e-3
    print("KERNEL_OK")
</pallas_src>

<mosaic_0001>
module attributes {stable_mosaic.version = 11 : i64} {
  func.func @rnn_classifier_kernel(%arg0: memref<64x64xf32, #tpu.memory_space<vmem>>, %arg1: memref<64x128xf32, #tpu.memory_space<vmem>>, %arg2: memref<64x384xf32, #tpu.memory_space<vmem>>, %arg3: memref<1x384xf32, #tpu.memory_space<vmem>>, %arg4: memref<128x384xf32, #tpu.memory_space<vmem>>, %arg5: memref<128x384xf32, #tpu.memory_space<vmem>>, %arg6: memref<1x384xf32, #tpu.memory_space<vmem>>, %arg7: memref<128x384xf32, #tpu.memory_space<vmem>>, %arg8: memref<64x4xf32, #tpu.memory_space<vmem>>, %arg9: memref<1x4xf32, #tpu.memory_space<vmem>>, %arg10: memref<8x4xf32, #tpu.memory_space<vmem>>, %arg11: memref<8x64xf32, #tpu.memory_space<vmem>>, %arg12: memref<64x384xf32, #tpu.memory_space<vmem>>) attributes {dimension_semantics = [], scalar_prefetch = 0 : i64, scratch_operands = 1 : i64, tpu.core_type = #tpu.core_type<tc>} {
    %c0 = arith.constant 0 : index
    %c0_0 = arith.constant 0 : index
    %0 = vector.load %arg1[%c0, %c0_0] : memref<64x128xf32, #tpu.memory_space<vmem>>, vector<8x128xf32>
    %cst = arith.constant 0.000000e+00 : f32
    %1 = vector.broadcast %cst : f32 to vector<8x128xf32>
    %2 = arith.cmpf ogt, %0, %1 : vector<8x128xf32>
    %c8 = arith.constant 8 : index
    %c0_1 = arith.constant 0 : index
    %3 = vector.load %arg1[%c8, %c0_1] : memref<64x128xf32, #tpu.memory_space<vmem>>, vector<8x128xf32>
    %cst_2 = arith.constant 0.000000e+00 : f32
    %4 = vector.broadcast %cst_2 : f32 to vector<8x128xf32>
    %5 = arith.cmpf ogt, %3, %4 : vector<8x128xf32>
    %c16 = arith.constant 16 : index
    %c0_3 = arith.constant 0 : index
    %6 = vector.load %arg1[%c16, %c0_3] : memref<64x128xf32, #tpu.memory_space<vmem>>, vector<8x128xf32>
    %cst_4 = arith.constant 0.000000e+00 : f32
    %7 = vector.broadcast %cst_4 : f32 to vector<8x128xf32>
    %8 = arith.cmpf ogt, %6, %7 : vector<8x128xf32>
    %c24 = arith.constant 24 : index
    %c0_5 = arith.constant 0 : index
    %9 = vector.load %arg1[%c24, %c0_5] : memref<64x128xf32, #tpu.memory_space<vmem>>, vector<8x128xf32>
    %cst_6 = arith.constant 0.000000e+00 : f32
    %10 = vector.broadcast %cst_6 : f32 to vector<8x128xf32>
    %11 = arith.cmpf ogt, %9, %10 : vector<8x128xf32>
    %c32 = arith.constant 32 : index
    %c0_7 = arith.constant 0 : index
    %12 = vector.load %arg1[%c32, %c0_7] : memref<64x128xf32, #tpu.memory_space<vmem>>, vector<8x128xf32>
    %cst_8 = arith.constant 0.000000e+00 : f32
    %13 = vector.broadcast %cst_8 : f32 to vector<8x128xf32>
    %14 = arith.cmpf ogt, %12, %13 : vector<8x128xf32>
    %c40 = arith.constant 40 : index
    %c0_9 = arith.constant 0 : index
    %15 = vector.load %arg1[%c40, %c0_9] : memref<64x128xf32, #tpu.memory_space<vmem>>, vector<8x128xf32>
    %cst_10 = arith.constant 0.000000e+00 : f32
    %16 = vector.broadcast %cst_10 : f32 to vector<8x128xf32>
    %17 = arith.cmpf ogt, %15, %16 : vector<8x128xf32>
    %c48 = arith.constant 48 : index
    %c0_11 = arith.constant 0 : index
    %18 = vector.load %arg1[%c48, %c0_11] : memref<64x128xf32, #tpu.memory_space<vmem>>, vector<8x128xf32>
    %cst_12 = arith.constant 0.000000e+00 : f32
    %19 = vector.broadcast %cst_12 : f32 to vector<8x128xf32>
    %20 = arith.cmpf ogt, %18, %19 : vector<8x128xf32>
    %c56 = arith.constant 56 : index
    %c0_13 = arith.constant 0 : index
    %21 = vector.load %arg1[%c56, %c0_13] : memref<64x128xf32, #tpu.memory_space<vmem>>, vector<8x128xf32>
    %cst_14 = arith.constant 0.000000e+00 : f32
    %22 = vector.broadcast %cst_14 : f32 to vector<8x128xf32>
    %23 = arith.cmpf ogt, %21, %22 : vector<8x128xf32>
    %24 = tpu.iota {dimensions = array<i32: 1>} : vector<8x128xi32>
    %c64_i32 = arith.constant 64 : i32
    %25 = vector.broadcast %c64_i32 : i32 to vector<8x128xi32>
    %26 = arith.cmpi eq, %24, %25 : vector<8x128xi32>
    %cst_15 = arith.constant 1.000000e+00 : f32
    %cst_16 = arith.constant 0.000000e+00 : f32
    %27 = vector.broadcast %cst_15 : f32 to vector<8x128xf32>
    %28 = vector.broadcast %cst_16 : f32 to vector<8x128xf32>
    %29 = arith.select %26, %27, %28 : vector<8x128xi1>, vector<8x128xf32>
    %c0_17 = arith.constant 0 : index
    %c0_18 = arith.constant 0 : index
    %30 = vector.load %arg0[%c0_17, %c0_18] : memref<64x64xf32, #tpu.memory_space<vmem>>, vector<64x64xf32>
    %c0_19 = arith.constant 0 : index
    %c0_20 = arith.constant 0 : index
    %31 = vector.load %arg2[%c0_19, %c0_20] : memref<64x384xf32, #tpu.memory_space<vmem>>, vector<64x384xf32>
    %cst_21 = arith.constant dense<0.000000e+00> : vector<64x384xf32>
    %32 = tpu.matmul %30, %31, %cst_21 {dimension_numbers = #tpu.dot_dimension_numbers<[1], [0], [0], [1], [0, 0, 1, 1], [], []>} : vector<64x64xf32>, vector<64x384xf32>, vector<64x384xf32> -> vector<64x384xf32>
    %c0_22 = arith.constant 0 : index
    %c0_23 = arith.constant 0 : index
    %33 = vector.load %arg3[%c0_22, %c0_23] : memref<1x384xf32, #tpu.memory_space<vmem>>, vector<1x384xf32>
    %34 = vector.broadcast %33 : vector<1x384xf32> to vector<64x384xf32>
    %35 = arith.addf %32, %34 : vector<64x384xf32>
    %c0_24 = arith.constant 0 : index
    %c0_25 = arith.constant 0 : index
    %36 = vector.load %arg12[%c0_24, %c0_25] : memref<64x384xf32, #tpu.memory_space<vmem>>, vector<64x384xf32>
    tpu.vector_store %arg12[%c0_24, %c0_25], %35 {strides = array<i32>} : memref<64x384xf32, #tpu.memory_space<vmem>>, vector<64x384xf32>,
    %c0_26 = arith.constant 0 : index
    %c0_27 = arith.constant 0 : index
    %37 = vector.load %arg12[%c0_26, %c0_27] : memref<64x384xf32, #tpu.memory_space<vmem>>, vector<8x384xf32>
    %c0_28 = arith.constant 0 : index
    %c0_29 = arith.constant 0 : index
    %38 = vector.load %arg4[%c0_28, %c0_29] : memref<128x384xf32, #tpu.memory_space<vmem>>, vector<128x384xf32>
    %cst_30 = arith.constant dense<0.000000e+00> : vector<8x384xf32>
    %39 = tpu.matmul %29, %38, %cst_30 {dimension_numbers = #tpu.dot_dimension_numbers<[1], [0], [0], [1], [0, 0, 1, 1], [], []>} : vector<8x128xf32>, vector<128x384xf32>, vector<8x384xf32> -> vector<8x384xf32>
    %40 = vector.extract_strided_slice %37 {offsets = [0, 0], sizes = [8, 256], strides = [1, 1]} : vector<8x384xf32> to vector<8x256xf32>
    %41 = vector.extract_strided_slice %39 {offsets = [0, 0], sizes = [8, 256], strides = [1, 1]} : vector<8x384xf32> to vector<8x256xf32>
    %42 = arith.addf %40, %41 : vector<8x256xf32>
    %43 = arith.negf %42 : vector<8x256xf32>
    %44 = math.exp %43 : vector<8x256xf32>
    %cst_31 = arith.constant 1.000000e+00 : f32
    %45 = vector.broadcast %cst_31 : f32 to vector<8x256xf32>
    %46 = arith.addf %45, %44 : vector<8x256xf32>
    %47 = arith.divf %45, %46 : vector<8x256xf32>
    %48 = vector.extract_strided_slice %47 {offsets = [0, 0], sizes = [8, 128], strides = [1, 1]} : vector<8x256xf32> to vector<8x128xf32>
    %49 = vector.extract_strided_slice %47 {offsets = [0, 128], sizes = [8, 128], strides = [1, 1]} : vector<8x256xf32> to vector<8x128xf32>
    %50 = vector.extract_strided_slice %37 {offsets = [0, 256], sizes = [8, 128], strides = [1, 1]} : vector<8x384xf32> to vector<8x128xf32>
    %51 = vector.extract_strided_slice %39 {offsets = [0, 256], sizes = [8, 128], strides = [1, 1]} : vector<8x384xf32> to vector<8x128xf32>
    %52 = arith.mulf %48, %51 : vector<8x128xf32>
    %53 = arith.addf %50, %52 : vector<8x128xf32>
    %54 = math.tanh %53 : vector<8x128xf32>
    %cst_32 = arith.constant 1.000000e+00 : f32
    %55 = vector.broadcast %cst_32 : f32 to vector<8x128xf32>
    %56 = arith.subf %55, %49 : vector<8x128xf32>
    %57 = arith.mulf %56, %54 : vector<8x128xf32>
    %58 = arith.mulf %49, %29 : vector<8x128xf32>
    %59 = arith.addf %57, %58 : vector<8x128xf32>
    %60 = arith.select %2, %59, %29 : vector<8x128xi1>, vector<8x128xf32>
    %c8_33 = arith.constant 8 : index
    %c0_34 = arith.constant 0 : index
    %61 = vector.load %arg12[%c8_33, %c0_34] : memref<64x384xf32, #tpu.memory_space<vmem>>, vector<8x384xf32>
    %c0_35 = arith.constant 0 : index
    %c0_36 = arith.constant 0 : index
    %62 = vector.load %arg4[%c0_35, %c0_36] : memref<128x384xf32, #tpu.memory_space<vmem>>, vector<128x384xf32>
    %cst_37 = arith.constant dense<0.000000e+00> : vector<8x384xf32>
    %63 = tpu.matmul %60, %62, %cst_37 {dimension_numbers = #tpu.dot_dimension_numbers<[1], [0], [0], [1], [0, 0, 1, 1], [], []>} : vector<8x128xf32>, vector<128x384xf32>, vector<8x384xf32> -> vector<8x384xf32>
    %64 = vector.extract_strided_slice %61 {offsets = [0, 0], sizes = [8, 256], strides = [1, 1]} : vector<8x384xf32> to vector<8x256xf32>
    %65 = vector.extract_strided_slice %63 {offsets = [0, 0], sizes = [8, 256], strides = [1, 1]} : vector<8x384xf32> to vector<8x256xf32>
    %66 = arith.addf %64, %65 : vector<8x256xf32>
    %67 = arith.negf %66 : vector<8x256xf32>
    %68 = math.exp %67 : vector<8x256xf32>
    %cst_38 = arith.constant 1.000000e+00 : f32
    %69 = vector.broadcast %cst_38 : f32 to vector<8x256xf32>
    %70 = arith.addf %69, %68 : vector<8x256xf32>
    %71 = arith.divf %69, %70 : vector<8x256xf32>
    %72 = vector.extract_strided_slice %71 {offsets = [0, 0], sizes = [8, 128], strides = [1, 1]} : vector<8x256xf32> to vector<8x128xf32>
    %73 = vector.extract_strided_slice %71 {offsets = [0, 128], sizes = [8, 128], strides = [1, 1]} : vector<8x256xf32> to vector<8x128xf32>
    %74 = vector.extract_strided_slice %61 {offsets = [0, 256], sizes = [8, 128], strides = [1, 1]} : vector<8x384xf32> to vector<8x128xf32>
    %75 = vector.extract_strided_slice %63 {offsets = [0, 256], sizes = [8, 128], strides = [1, 1]} : vector<8x384xf32> to vector<8x128xf32>
    %76 = arith.mulf %72, %75 : vector<8x128xf32>
    %77 = arith.addf %74, %76 : vector<8x128xf32>
    %78 = math.tanh %77 : vector<8x128xf32>
    %cst_39 = arith.constant 1.000000e+00 : f32
    %79 = vector.broadcast %cst_39 : f32 to vector<8x128xf32>
    %80 = arith.subf %79, %73 : vector<8x128xf32>
    %81 = arith.mulf %80, %78 : vector<8x128xf32>
    %82 = arith.mulf %73, %60 : vector<8x128xf32>
    %83 = arith.addf %81, %82 : vector<8x128xf32>
    %84 = arith.select %5, %83, %60 : vector<8x128xi1>, vector<8x128xf32>
    %c16_40 = arith.constant 16 : index
    %c0_41 = arith.constant 0 : index
    %85 = vector.load %arg12[%c16_40, %c0_41] : memref<64x384xf32, #tpu.memory_space<vmem>>, vector<8x384xf32>
    %c0_42 = arith.constant 0 : index
    %c0_43 = arith.constant 0 : index
    %86 = vector.load %arg4[%c0_42, %c0_43] : memref<128x384xf32, #tpu.memory_space<vmem>>, vector<128x384xf32>
    %cst_44 = arith.constant dense<0.000000e+00> : vector<8x384xf32>
    %87 = tpu.matmul %84, %86, %cst_44 {dimension_numbers = #tpu.dot_dimension_numbers<[1], [0], [0], [1], [0, 0, 1, 1], [], []>} : vector<8x128xf32>, vector<128x384xf32>, vector<8x384xf32> -> vector<8x384xf32>
    %88 = vector.extract_strided_slice %85 {offsets = [0, 0], sizes = [8, 256], strides = [1, 1]} : vector<8x384xf32> to vector<8x256xf32>
    %89 = vector.extract_strided_slice %87 {offsets = [0, 0], sizes = [8, 256], strides = [1, 1]} : vector<8x384xf32> to vector<8x256xf32>
    %90 = arith.addf %88, %89 : vector<8x256xf32>
    %91 = arith.negf %90 : vector<8x256xf32>
    %92 = math.exp %91 : vector<8x256xf32>
    %cst_45 = arith.constant 1.000000e+00 : f32
    %93 = vector.broadcast %cst_45 : f32 to vector<8x256xf32>
    %94 = arith.addf %93, %92 : vector<8x256xf32>
    %95 = arith.divf %93, %94 : vector<8x256xf32>
    %96 = vector.extract_strided_slice %95 {offsets = [0, 0], sizes = [8, 128], strides = [1, 1]} : vector<8x256xf32> to vector<8x128xf32>
    %97 = vector.extract_strided_slice %95 {offsets = [0, 128], sizes = [8, 128], strides = [1, 1]} : vector<8x256xf32> to vector<8x128xf32>
    %98 = vector.extract_strided_slice %85 {offsets = [0, 256], sizes = [8, 128], strides = [1, 1]} : vector<8x384xf32> to vector<8x128xf32>
    %99 = vector.extract_strided_slice %87 {offsets = [0, 256], sizes = [8, 128], strides = [1, 1]} : vector<8x384xf32> to vector<8x128xf32>
    %100 = arith.mulf %96, %99 : vector<8x128xf32>
    %101 = arith.addf %98, %100 : vector<8x128xf32>
    %102 = math.tanh %101 : vector<8x128xf32>
    %cst_46 = arith.constant 1.000000e+00 : f32
    %103 = vector.broadcast %cst_46 : f32 to vector<8x128xf32>
    %104 = arith.subf %103, %97 : vector<8x128xf32>
    %105 = arith.mulf %104, %102 : vector<8x128xf32>
    %106 = arith.mulf %97, %84 : vector<8x128xf32>
    %107 = arith.addf %105, %106 : vector<8x128xf32>
    %108 = arith.select %8, %107, %84 : vector<8x128xi1>, vector<8x128xf32>
    %c24_47 = arith.constant 24 : index
    %c0_48 = arith.constant 0 : index
    %109 = vector.load %arg12[%c24_47, %c0_48] : memref<64x384xf32, #tpu.memory_space<vmem>>, vector<8x384xf32>
    %c0_49 = arith.constant 0 : index
    %c0_50 = arith.constant 0 : index
    %110 = vector.load %arg4[%c0_49, %c0_50] : memref<128x384xf32, #tpu.memory_space<vmem>>, vector<128x384xf32>
    %cst_51 = arith.constant dense<0.000000e+00> : vector<8x384xf32>
    %111 = tpu.matmul %108, %110, %cst_51 {dimension_numbers = #tpu.dot_dimension_numbers<[1], [0], [0], [1], [0, 0, 1, 1], [], []>} : vector<8x128xf32>, vector<128x384xf32>, vector<8x384xf32> -> vector<8x384xf32>
    %112 = vector.extract_strided_slice %109 {offsets = [0, 0], sizes = [8, 256], strides = [1, 1]} : vector<8x384xf32> to vector<8x256xf32>
    %113 = vector.extract_strided_slice %111 {offsets = [0, 0], sizes = [8, 256], strides = [1, 1]} : vector<8x384xf32> to vector<8x256xf32>
    %114 = arith.addf %112, %113 : vector<8x256xf32>
    %115 = arith.negf %114 : vector<8x256xf32>
    %116 = math.exp %115 : vector<8x256xf32>
    %cst_52 = arith.constant 1.000000e+00 : f32
    %117 = vector.broadcast %cst_52 : f32 to vector<8x256xf32>
    %118 = arith.addf %117, %116 : vector<8x256xf32>
    %119 = arith.divf %117, %118 : vector<8x256xf32>
    %120 = vector.extract_strided_slice %119 {offsets = [0, 0], sizes = [8, 128], strides = [1, 1]} : vector<8x256xf32> to vector<8x128xf32>
    %121 = vector.extract_strided_slice %119 {offsets = [0, 128], sizes = [8, 128], strides = [1, 1]} : vector<8x256xf32> to vector<8x128xf32>
    %122 = vector.extract_strided_slice %109 {offsets = [0, 256], sizes = [8, 128], strides = [1, 1]} : vector<8x384xf32> to vector<8x128xf32>
    %123 = vector.extract_strided_slice %111 {offsets = [0, 256], sizes = [8, 128], strides = [1, 1]} : vector<8x384xf32> to vector<8x128xf32>
    %124 = arith.mulf %120, %123 : vector<8x128xf32>
    %125 = arith.addf %122, %124 : vector<8x128xf32>
    %126 = math.tanh %125 : vector<8x128xf32>
    %cst_53 = arith.constant 1.000000e+00 : f32
    %127 = vector.broadcast %cst_53 : f32 to vector<8x128xf32>
    %128 = arith.subf %127, %121 : vector<8x128xf32>
    %129 = arith.mulf %128, %126 : vector<8x128xf32>
    %130 = arith.mulf %121, %108 : vector<8x128xf32>
    %131 = arith.addf %129, %130 : vector<8x128xf32>
    %132 = arith.select %11, %131, %108 : vector<8x128xi1>, vector<8x128xf32>
    %c32_54 = arith.constant 32 : index
    %c0_55 = arith.constant 0 : index
    %133 = vector.load %arg12[%c32_54, %c0_55] : memref<64x384xf32, #tpu.memory_space<vmem>>, vector<8x384xf32>
    %c0_56 = arith.constant 0 : index
    %c0_57 = arith.constant 0 : index
    %134 = vector.load %arg4[%c0_56, %c0_57] : memref<128x384xf32, #tpu.memory_space<vmem>>, vector<128x384xf32>
    %cst_58 = arith.constant dense<0.000000e+00> : vector<8x384xf32>
    %135 = tpu.matmul %132, %134, %cst_58 {dimension_numbers = #tpu.dot_dimension_numbers<[1], [0], [0], [1], [0, 0, 1, 1], [], []>} : vector<8x128xf32>, vector<128x384xf32>, vector<8x384xf32> -> vector<8x384xf32>
    %136 = vector.extract_strided_slice %133 {offsets = [0, 0], sizes = [8, 256], strides = [1, 1]} : vector<8x384xf32> to vector<8x256xf32>
    %137 = vector.extract_strided_slice %135 {offsets = [0, 0], sizes = [8, 256], strides = [1, 1]} : vector<8x384xf32> to vector<8x256xf32>
    %138 = arith.addf %136, %137 : vector<8x256xf32>
    %139 = arith.negf %138 : vector<8x256xf32>
    %140 = math.exp %139 : vector<8x256xf32>
    %cst_59 = arith.constant 1.000000e+00 : f32
    %141 = vector.broadcast %cst_59 : f32 to vector<8x256xf32>
    %142 = arith.addf %141, %140 : vector<8x256xf32>
    %143 = arith.divf %141, %142 : vector<8x256xf32>
    %144 = vector.extract_strided_slice %143 {offsets = [0, 0], sizes = [8, 128], strides = [1, 1]} : vector<8x256xf32> to vector<8x128xf32>
    %145 = vector.extract_strided_slice %143 {offsets = [0, 128], sizes = [8, 128], strides = [1, 1]} : vector<8x256xf32> to vector<8x128xf32>
    %146 = vector.extract_strided_slice %133 {offsets = [0, 256], sizes = [8, 128], strides = [1, 1]} : vector<8x384xf32> to vector<8x128xf32>
    %147 = vector.extract_strided_slice %135 {offsets = [0, 256], sizes = [8, 128], strides = [1, 1]} : vector<8x384xf32> to vector<8x128xf32>
    %148 = arith.mulf %144, %147 : vector<8x128xf32>
    %149 = arith.addf %146, %148 : vector<8x128xf32>
    %150 = math.tanh %149 : vector<8x128xf32>
    %cst_60 = arith.constant 1.000000e+00 : f32
    %151 = vector.broadcast %cst_60 : f32 to vector<8x128xf32>
    %152 = arith.subf %151, %145 : vector<8x128xf32>
    %153 = arith.mulf %152, %150 : vector<8x128xf32>
    %154 = arith.mulf %145, %132 : vector<8x128xf32>
    %155 = arith.addf %153, %154 : vector<8x128xf32>
    %156 = arith.select %14, %155, %132 : vector<8x128xi1>, vector<8x128xf32>
    %c40_61 = arith.constant 40 : index
    %c0_62 = arith.constant 0 : index
    %157 = vector.load %arg12[%c40_61, %c0_62] : memref<64x384xf32, #tpu.memory_space<vmem>>, vector<8x384xf32>
    %c0_63 = arith.constant 0 : index
    %c0_64 = arith.constant 0 : index
    %158 = vector.load %arg4[%c0_63, %c0_64] : memref<128x384xf32, #tpu.memory_space<vmem>>, vector<128x384xf32>
    %cst_65 = arith.constant dense<0.000000e+00> : vector<8x384xf32>
    %159 = tpu.matmul %156, %158, %cst_65 {dimension_numbers = #tpu.dot_dimension_numbers<[1], [0], [0], [1], [0, 0, 1, 1], [], []>} : vector<8x128xf32>, vector<128x384xf32>, vector<8x384xf32> -> vector<8x384xf32>
    %160 = vector.extract_strided_slice %157 {offsets = [0, 0], sizes = [8, 256], strides = [1, 1]} : vector<8x384xf32> to vector<8x256xf32>
    %161 = vector.extract_strided_slice %159 {offsets = [0, 0], sizes = [8, 256], strides = [1, 1]} : vector<8x384xf32> to vector<8x256xf32>
    %162 = arith.addf %160, %161 : vector<8x256xf32>
    %163 = arith.negf %162 : vector<8x256xf32>
    %164 = math.exp %163 : vector<8x256xf32>
    %cst_66 = arith.constant 1.000000e+00 : f32
    %165 = vector.broadcast %cst_66 : f32 to vector<8x256xf32>
    %166 = arith.addf %165, %164 : vector<8x256xf32>
    %167 = arith.divf %165, %166 : vector<8x256xf32>
    %168 = vector.extract_strided_slice %167 {offsets = [0, 0], sizes = [8, 128], strides = [1, 1]} : vector<8x256xf32> to vector<8x128xf32>
    %169 = vector.extract_strided_slice %167 {offsets = [0, 128], sizes = [8, 128], strides = [1, 1]} : vector<8x256xf32> to vector<8x128xf32>
    %170 = vector.extract_strided_slice %157 {offsets = [0, 256], sizes = [8, 128], strides = [1, 1]} : vector<8x384xf32> to vector<8x128xf32>
    %171 = vector.extract_strided_slice %159 {offsets = [0, 256], sizes = [8, 128], strides = [1, 1]} : vector<8x384xf32> to vector<8x128xf32>
    %172 = arith.mulf %168, %171 : vector<8x128xf32>
    %173 = arith.addf %170, %172 : vector<8x128xf32>
    %174 = math.tanh %173 : vector<8x128xf32>
    %cst_67 = arith.constant 1.000000e+00 : f32
    %175 = vector.broadcast %cst_67 : f32 to vector<8x128xf32>
    %176 = arith.subf %175, %169 : vector<8x128xf32>
    %177 = arith.mulf %176, %174 : vector<8x128xf32>
    %178 = arith.mulf %169, %156 : vector<8x128xf32>
    %179 = arith.addf %177, %178 : vector<8x128xf32>
    %180 = arith.select %17, %179, %156 : vector<8x128xi1>, vector<8x128xf32>
    %c48_68 = arith.constant 48 : index
    %c0_69 = arith.constant 0 : index
    %181 = vector.load %arg12[%c48_68, %c0_69] : memref<64x384xf32, #tpu.memory_space<vmem>>, vector<8x384xf32>
    %c0_70 = arith.constant 0 : index
    %c0_71 = arith.constant 0 : index
    %182 = vector.load %arg4[%c0_70, %c0_71] : memref<128x384xf32, #tpu.memory_space<vmem>>, vector<128x384xf32>
    %cst_72 = arith.constant dense<0.000000e+00> : vector<8x384xf32>
    %183 = tpu.matmul %180, %182, %cst_72 {dimension_numbers = #tpu.dot_dimension_numbers<[1], [0], [0], [1], [0, 0, 1, 1], [], []>} : vector<8x128xf32>, vector<128x384xf32>, vector<8x384xf32> -> vector<8x384xf32>
    %184 = vector.extract_strided_slice %181 {offsets = [0, 0], sizes = [8, 256], strides = [1, 1]} : vector<8x384xf32> to vector<8x256xf32>
    %185 = vector.extract_strided_slice %183 {offsets = [0, 0], sizes = [8, 256], strides = [1, 1]} : vector<8x384xf32> to vector<8x256xf32>
    %186 = arith.addf %184, %185 : vector<8x256xf32>
    %187 = arith.negf %186 : vector<8x256xf32>
    %188 = math.exp %187 : vector<8x256xf32>
    %cst_73 = arith.constant 1.000000e+00 : f32
    %189 = vector.broadcast %cst_73 : f32 to vector<8x256xf32>
    %190 = arith.addf %189, %188 : vector<8x256xf32>
    %191 = arith.divf %189, %190 : vector<8x256xf32>
    %192 = vector.extract_strided_slice %191 {offsets = [0, 0], sizes = [8, 128], strides = [1, 1]} : vector<8x256xf32> to vector<8x128xf32>
    %193 = vector.extract_strided_slice %191 {offsets = [0, 128], sizes = [8, 128], strides = [1, 1]} : vector<8x256xf32> to vector<8x128xf32>
    %194 = vector.extract_strided_slice %181 {offsets = [0, 256], sizes = [8, 128], strides = [1, 1]} : vector<8x384xf32> to vector<8x128xf32>
    %195 = vector.extract_strided_slice %183 {offsets = [0, 256], sizes = [8, 128], strides = [1, 1]} : vector<8x384xf32> to vector<8x128xf32>
    %196 = arith.mulf %192, %195 : vector<8x128xf32>
    %197 = arith.addf %194, %196 : vector<8x128xf32>
    %198 = math.tanh %197 : vector<8x128xf32>
    %cst_74 = arith.constant 1.000000e+00 : f32
    %199 = vector.broadcast %cst_74 : f32 to vector<8x128xf32>
    %200 = arith.subf %199, %193 : vector<8x128xf32>
    %201 = arith.mulf %200, %198 : vector<8x128xf32>
    %202 = arith.mulf %193, %180 : vector<8x128xf32>
    %203 = arith.addf %201, %202 : vector<8x128xf32>
    %204 = arith.select %20, %203, %180 : vector<8x128xi1>, vector<8x128xf32>
    %c56_75 = arith.constant 56 : index
    %c0_76 = arith.constant 0 : index
    %205 = vector.load %arg12[%c56_75, %c0_76] : memref<64x384xf32, #tpu.memory_space<vmem>>, vector<8x384xf32>
    %c0_77 = arith.constant 0 : index
    %c0_78 = arith.constant 0 : index
    %206 = vector.load %arg4[%c0_77, %c0_78] : memref<128x384xf32, #tpu.memory_space<vmem>>, vector<128x384xf32>
    %cst_79 = arith.constant dense<0.000000e+00> : vector<8x384xf32>
    %207 = tpu.matmul %204, %206, %cst_79 {dimension_numbers = #tpu.dot_dimension_numbers<[1], [0], [0], [1], [0, 0, 1, 1], [], []>} : vector<8x128xf32>, vector<128x384xf32>, vector<8x384xf32> -> vector<8x384xf32>
    %208 = vector.extract_strided_slice %205 {offsets = [0, 0], sizes = [8, 256], strides = [1, 1]} : vector<8x384xf32> to vector<8x256xf32>
    %209 = vector.extract_strided_slice %207 {offsets = [0, 0], sizes = [8, 256], strides = [1, 1]} : vector<8x384xf32> to vector<8x256xf32>
    %210 = arith.addf %208, %209 : vector<8x256xf32>
    %211 = arith.negf %210 : vector<8x256xf32>
    %212 = math.exp %211 : vector<8x256xf32>
    %cst_80 = arith.constant 1.000000e+00 : f32
    %213 = vector.broadcast %cst_80 : f32 to vector<8x256xf32>
    %214 = arith.addf %213, %212 : vector<8x256xf32>
    %215 = arith.divf %213, %214 : vector<8x256xf32>
    %216 = vector.extract_strided_slice %215 {offsets = [0, 0], sizes = [8, 128], strides = [1, 1]} : vector<8x256xf32> to vector<8x128xf32>
    %217 = vector.extract_strided_slice %215 {offsets = [0, 128], sizes = [8, 128], strides = [1, 1]} : vector<8x256xf32> to vector<8x128xf32>
    %218 = vector.extract_strided_slice %205 {offsets = [0, 256], sizes = [8, 128], strides = [1, 1]} : vector<8x384xf32> to vector<8x128xf32>
    %219 = vector.extract_strided_slice %207 {offsets = [0, 256], sizes = [8, 128], strides = [1, 1]} : vector<8x384xf32> to vector<8x128xf32>
    %220 = arith.mulf %216, %219 : vector<8x128xf32>
    %221 = arith.addf %218, %220 : vector<8x128xf32>
    %222 = math.tanh %221 : vector<8x128xf32>
    %cst_81 = arith.constant 1.000000e+00 : f32
    %223 = vector.broadcast %cst_81 : f32 to vector<8x128xf32>
    %224 = arith.subf %223, %217 : vector<8x128xf32>
    %225 = arith.mulf %224, %222 : vector<8x128xf32>
    %226 = arith.mulf %217, %204 : vector<8x128xf32>
    %227 = arith.addf %225, %226 : vector<8x128xf32>
    %228 = arith.select %23, %227, %204 : vector<8x128xi1>, vector<8x128xf32>
    %229 = vector.extract_strided_slice %60 {offsets = [0, 0], sizes = [8, 64], strides = [1, 1]} : vector<8x128xf32> to vector<8x64xf32>
    %230 = vector.extract_strided_slice %228 {offsets = [0, 0], sizes = [8, 64], strides = [1, 1]} : vector<8x128xf32> to vector<8x64xf32>
    %231 = tpu.concatenate %229, %230 in 1 : vector<8x64xf32>, vector<8x64xf32> -> vector<8x128xf32>
    %232 = vector.extract_strided_slice %84 {offsets = [0, 0], sizes = [8, 64], strides = [1, 1]} : vector<8x128xf32> to vector<8x64xf32>
    %233 = vector.extract_strided_slice %204 {offsets = [0, 0], sizes = [8, 64], strides = [1, 1]} : vector<8x128xf32> to vector<8x64xf32>
    %234 = tpu.concatenate %232, %233 in 1 : vector<8x64xf32>, vector<8x64xf32> -> vector<8x128xf32>
    %235 = vector.extract_strided_slice %108 {offsets = [0, 0], sizes = [8, 64], strides = [1, 1]} : vector<8x128xf32> to vector<8x64xf32>
    %236 = vector.extract_strided_slice %180 {offsets = [0, 0], sizes = [8, 64], strides = [1, 1]} : vector<8x128xf32> to vector<8x64xf32>
    %237 = tpu.concatenate %235, %236 in 1 : vector<8x64xf32>, vector<8x64xf32> -> vector<8x128xf32>
    %238 = vector.extract_strided_slice %132 {offsets = [0, 0], sizes = [8, 64], strides = [1, 1]} : vector<8x128xf32> to vector<8x64xf32>
    %239 = vector.extract_strided_slice %156 {offsets = [0, 0], sizes = [8, 64], strides = [1, 1]} : vector<8x128xf32> to vector<8x64xf32>
    %240 = tpu.concatenate %238, %239 in 1 : vector<8x64xf32>, vector<8x64xf32> -> vector<8x128xf32>
    %241 = vector.extract_strided_slice %156 {offsets = [0, 0], sizes = [8, 64], strides = [1, 1]} : vector<8x128xf32> to vector<8x64xf32>
    %242 = vector.extract_strided_slice %132 {offsets = [0, 0], sizes = [8, 64], strides = [1, 1]} : vector<8x128xf32> to vector<8x64xf32>
    %243 = tpu.concatenate %241, %242 in 1 : vector<8x64xf32>, vector<8x64xf32> -> vector<8x128xf32>
    %244 = vector.extract_strided_slice %180 {offsets = [0, 0], sizes = [8, 64], strides = [1, 1]} : vector<8x128xf32> to vector<8x64xf32>
    %245 = vector.extract_strided_slice %108 {offsets = [0, 0], sizes = [8, 64], strides = [1, 1]} : vector<8x128xf32> to vector<8x64xf32>
    %246 = tpu.concatenate %244, %245 in 1 : vector<8x64xf32>, vector<8x64xf32> -> vector<8x128xf32>
    %247 = vector.extract_strided_slice %204 {offsets = [0, 0], sizes = [8, 64], strides = [1, 1]} : vector<8x128xf32> to vector<8x64xf32>
    %248 = vector.extract_strided_slice %84 {offsets = [0, 0], sizes = [8, 64], strides = [1, 1]} : vector<8x128xf32> to vector<8x64xf32>
    %249 = tpu.concatenate %247, %248 in 1 : vector<8x64xf32>, vector<8x64xf32> -> vector<8x128xf32>
    %250 = vector.extract_strided_slice %228 {offsets = [0, 0], sizes = [8, 64], strides = [1, 1]} : vector<8x128xf32> to vector<8x64xf32>
    %251 = vector.extract_strided_slice %60 {offsets = [0, 0], sizes = [8, 64], strides = [1, 1]} : vector<8x128xf32> to vector<8x64xf32>
    %252 = tpu.concatenate %250, %251 in 1 : vector<8x64xf32>, vector<8x64xf32> -> vector<8x128xf32>
    %253 = tpu.concatenate %231, %234, %237, %240, %243, %246, %249, %252 in 0 : vector<8x128xf32>, vector<8x128xf32>, vector<8x128xf32>, vector<8x128xf32>, vector<8x128xf32>, vector<8x128xf32>, vector<8x128xf32>, vector<8x128xf32> -> vector<64x128xf32>
    %c0_82 = arith.constant 0 : index
    %c0_83 = arith.constant 0 : index
    %254 = vector.load %arg5[%c0_82, %c0_83] : memref<128x384xf32, #tpu.memory_space<vmem>>, vector<128x384xf32>
    %cst_84 = arith.constant dense<0.000000e+00> : vector<64x384xf32>
    %255 = tpu.matmul %253, %254, %cst_84 {dimension_numbers = #tpu.dot_dimension_numbers<[1], [0], [0], [1], [0, 0, 1, 1], [], []>} : vector<64x128xf32>, vector<128x384xf32>, vector<64x384xf32> -> vector<64x384xf32>
    %c0_85 = arith.constant 0 : index
    %c0_86 = arith.constant 0 : index
    %256 = vector.load %arg6[%c0_85, %c0_86] : memref<1x384xf32, #tpu.memory_space<vmem>>, vector<1x384xf32>
    %257 = vector.broadcast %256 : vector<1x384xf32> to vector<64x384xf32>
    %258 = arith.addf %255, %257 : vector<64x384xf32>
    %c0_87 = arith.constant 0 : index
    %c0_88 = arith.constant 0 : index
    %259 = vector.load %arg12[%c0_87, %c0_88] : memref<64x384xf32, #tpu.memory_space<vmem>>, vector<64x384xf32>
    tpu.vector_store %arg12[%c0_87, %c0_88], %258 {strides = array<i32>} : memref<64x384xf32, #tpu.memory_space<vmem>>, vector<64x384xf32>,
    %c0_89 = arith.constant 0 : index
    %c0_90 = arith.constant 0 : index
    %260 = vector.load %arg12[%c0_89, %c0_90] : memref<64x384xf32, #tpu.memory_space<vmem>>, vector<8x384xf32>
    %c0_91 = arith.constant 0 : index
    %c0_92 = arith.constant 0 : index
    %261 = vector.load %arg7[%c0_91, %c0_92] : memref<128x384xf32, #tpu.memory_space<vmem>>, vector<128x384xf32>
    %cst_93 = arith.constant dense<0.000000e+00> : vector<8x384xf32>
    %262 = tpu.matmul %29, %261, %cst_93 {dimension_numbers = #tpu.dot_dimension_numbers<[1], [0], [0], [1], [0, 0, 1, 1], [], []>} : vector<8x128xf32>, vector<128x384xf32>, vector<8x384xf32> -> vector<8x384xf32>
    %263 = vector.extract_strided_slice %260 {offsets = [0, 0], sizes = [8, 256], strides = [1, 1]} : vector<8x384xf32> to vector<8x256xf32>
    %264 = vector.extract_strided_slice %262 {offsets = [0, 0], sizes = [8, 256], strides = [1, 1]} : vector<8x384xf32> to vector<8x256xf32>
    %265 = arith.addf %263, %264 : vector<8x256xf32>
    %266 = arith.negf %265 : vector<8x256xf32>
    %267 = math.exp %266 : vector<8x256xf32>
    %cst_94 = arith.constant 1.000000e+00 : f32
    %268 = vector.broadcast %cst_94 : f32 to vector<8x256xf32>
    %269 = arith.addf %268, %267 : vector<8x256xf32>
    %270 = arith.divf %268, %269 : vector<8x256xf32>
    %271 = vector.extract_strided_slice %270 {offsets = [0, 0], sizes = [8, 128], strides = [1, 1]} : vector<8x256xf32> to vector<8x128xf32>
    %272 = vector.extract_strided_slice %270 {offsets = [0, 128], sizes = [8, 128], strides = [1, 1]} : vector<8x256xf32> to vector<8x128xf32>
    %273 = vector.extract_strided_slice %260 {offsets = [0, 256], sizes = [8, 128], strides = [1, 1]} : vector<8x384xf32> to vector<8x128xf32>
    %274 = vector.extract_strided_slice %262 {offsets = [0, 256], sizes = [8, 128], strides = [1, 1]} : vector<8x384xf32> to vector<8x128xf32>
    %275 = arith.mulf %271, %274 : vector<8x128xf32>
    %276 = arith.addf %273, %275 : vector<8x128xf32>
    %277 = math.tanh %276 : vector<8x128xf32>
    %cst_95 = arith.constant 1.000000e+00 : f32
    %278 = vector.broadcast %cst_95 : f32 to vector<8x128xf32>
    %279 = arith.subf %278, %272 : vector<8x128xf32>
    %280 = arith.mulf %279, %277 : vector<8x128xf32>
    %281 = arith.mulf %272, %29 : vector<8x128xf32>
    %282 = arith.addf %280, %281 : vector<8x128xf32>
    %283 = arith.select %2, %282, %29 : vector<8x128xi1>, vector<8x128xf32>
    %c8_96 = arith.constant 8 : index
    %c0_97 = arith.constant 0 : index
    %284 = vector.load %arg12[%c8_96, %c0_97] : memref<64x384xf32, #tpu.memory_space<vmem>>, vector<8x384xf32>
    %c0_98 = arith.constant 0 : index
    %c0_99 = arith.constant 0 : index
    %285 = vector.load %arg7[%c0_98, %c0_99] : memref<128x384xf32, #tpu.memory_space<vmem>>, vector<128x384xf32>
    %cst_100 = arith.constant dense<0.000000e+00> : vector<8x384xf32>
    %286 = tpu.matmul %283, %285, %cst_100 {dimension_numbers = #tpu.dot_dimension_numbers<[1], [0], [0], [1], [0, 0, 1, 1], [], []>} : vector<8x128xf32>, vector<128x384xf32>, vector<8x384xf32> -> vector<8x384xf32>
    %287 = vector.extract_strided_slice %284 {offsets = [0, 0], sizes = [8, 256], strides = [1, 1]} : vector<8x384xf32> to vector<8x256xf32>
    %288 = vector.extract_strided_slice %286 {offsets = [0, 0], sizes = [8, 256], strides = [1, 1]} : vector<8x384xf32> to vector<8x256xf32>
    %289 = arith.addf %287, %288 : vector<8x256xf32>
    %290 = arith.negf %289 : vector<8x256xf32>
    %291 = math.exp %290 : vector<8x256xf32>
    %cst_101 = arith.constant 1.000000e+00 : f32
    %292 = vector.broadcast %cst_101 : f32 to vector<8x256xf32>
    %293 = arith.addf %292, %291 : vector<8x256xf32>
    %294 = arith.divf %292, %293 : vector<8x256xf32>
    %295 = vector.extract_strided_slice %294 {offsets = [0, 0], sizes = [8, 128], strides = [1, 1]} : vector<8x256xf32> to vector<8x128xf32>
    %296 = vector.extract_strided_slice %294 {offsets = [0, 128], sizes = [8, 128], strides = [1, 1]} : vector<8x256xf32> to vector<8x128xf32>
    %297 = vector.extract_strided_slice %284 {offsets = [0, 256], sizes = [8, 128], strides = [1, 1]} : vector<8x384xf32> to vector<8x128xf32>
    %298 = vector.extract_strided_slice %286 {offsets = [0, 256], sizes = [8, 128], strides = [1, 1]} : vector<8x384xf32> to vector<8x128xf32>
    %299 = arith.mulf %295, %298 : vector<8x128xf32>
    %300 = arith.addf %297, %299 : vector<8x128xf32>
    %301 = math.tanh %300 : vector<8x128xf32>
    %cst_102 = arith.constant 1.000000e+00 : f32
    %302 = vector.broadcast %cst_102 : f32 to vector<8x128xf32>
    %303 = arith.subf %302, %296 : vector<8x128xf32>
    %304 = arith.mulf %303, %301 : vector<8x128xf32>
    %305 = arith.mulf %296, %283 : vector<8x128xf32>
    %306 = arith.addf %304, %305 : vector<8x128xf32>
    %307 = arith.select %5, %306, %283 : vector<8x128xi1>, vector<8x128xf32>
    %c16_103 = arith.constant 16 : index
    %c0_104 = arith.constant 0 : index
    %308 = vector.load %arg12[%c16_103, %c0_104] : memref<64x384xf32, #tpu.memory_space<vmem>>, vector<8x384xf32>
    %c0_105 = arith.constant 0 : index
    %c0_106 = arith.constant 0 : index
    %309 = vector.load %arg7[%c0_105, %c0_106] : memref<128x384xf32, #tpu.memory_space<vmem>>, vector<128x384xf32>
    %cst_107 = arith.constant dense<0.000000e+00> : vector<8x384xf32>
    %310 = tpu.matmul %307, %309, %cst_107 {dimension_numbers = #tpu.dot_dimension_numbers<[1], [0], [0], [1], [0, 0, 1, 1], [], []>} : vector<8x128xf32>, vector<128x384xf32>, vector<8x384xf32> -> vector<8x384xf32>
    %311 = vector.extract_strided_slice %308 {offsets = [0, 0], sizes = [8, 256], strides = [1, 1]} : vector<8x384xf32> to vector<8x256xf32>
    %312 = vector.extract_strided_slice %310 {offsets = [0, 0], sizes = [8, 256], strides = [1, 1]} : vector<8x384xf32> to vector<8x256xf32>
    %313 = arith.addf %311, %312 : vector<8x256xf32>
    %314 = arith.negf %313 : vector<8x256xf32>
    %315 = math.exp %314 : vector<8x256xf32>
    %cst_108 = arith.constant 1.000000e+00 : f32
    %316 = vector.broadcast %cst_108 : f32 to vector<8x256xf32>
    %317 = arith.addf %316, %315 : vector<8x256xf32>
    %318 = arith.divf %316, %317 : vector<8x256xf32>
    %319 = vector.extract_strided_slice %318 {offsets = [0, 0], sizes = [8, 128], strides = [1, 1]} : vector<8x256xf32> to vector<8x128xf32>
    %320 = vector.extract_strided_slice %318 {offsets = [0, 128], sizes = [8, 128], strides = [1, 1]} : vector<8x256xf32> to vector<8x128xf32>
    %321 = vector.extract_strided_slice %308 {offsets = [0, 256], sizes = [8, 128], strides = [1, 1]} : vector<8x384xf32> to vector<8x128xf32>
    %322 = vector.extract_strided_slice %310 {offsets = [0, 256], sizes = [8, 128], strides = [1, 1]} : vector<8x384xf32> to vector<8x128xf32>
    %323 = arith.mulf %319, %322 : vector<8x128xf32>
    %324 = arith.addf %321, %323 : vector<8x128xf32>
    %325 = math.tanh %324 : vector<8x128xf32>
    %cst_109 = arith.constant 1.000000e+00 : f32
    %326 = vector.broadcast %cst_109 : f32 to vector<8x128xf32>
    %327 = arith.subf %326, %320 : vector<8x128xf32>
    %328 = arith.mulf %327, %325 : vector<8x128xf32>
    %329 = arith.mulf %320, %307 : vector<8x128xf32>
    %330 = arith.addf %328, %329 : vector<8x128xf32>
    %331 = arith.select %8, %330, %307 : vector<8x128xi1>, vector<8x128xf32>
    %c24_110 = arith.constant 24 : index
    %c0_111 = arith.constant 0 : index
    %332 = vector.load %arg12[%c24_110, %c0_111] : memref<64x384xf32, #tpu.memory_space<vmem>>, vector<8x384xf32>
    %c0_112 = arith.constant 0 : index
    %c0_113 = arith.constant 0 : index
    %333 = vector.load %arg7[%c0_112, %c0_113] : memref<128x384xf32, #tpu.memory_space<vmem>>, vector<128x384xf32>
    %cst_114 = arith.constant dense<0.000000e+00> : vector<8x384xf32>
    %334 = tpu.matmul %331, %333, %cst_114 {dimension_numbers = #tpu.dot_dimension_numbers<[1], [0], [0], [1], [0, 0, 1, 1], [], []>} : vector<8x128xf32>, vector<128x384xf32>, vector<8x384xf32> -> vector<8x384xf32>
    %335 = vector.extract_strided_slice %332 {offsets = [0, 0], sizes = [8, 256], strides = [1, 1]} : vector<8x384xf32> to vector<8x256xf32>
    %336 = vector.extract_strided_slice %334 {offsets = [0, 0], sizes = [8, 256], strides = [1, 1]} : vector<8x384xf32> to vector<8x256xf32>
    %337 = arith.addf %335, %336 : vector<8x256xf32>
    %338 = arith.negf %337 : vector<8x256xf32>
    %339 = math.exp %338 : vector<8x256xf32>
    %cst_115 = arith.constant 1.000000e+00 : f32
    %340 = vector.broadcast %cst_115 : f32 to vector<8x256xf32>
    %341 = arith.addf %340, %339 : vector<8x256xf32>
    %342 = arith.divf %340, %341 : vector<8x256xf32>
    %343 = vector.extract_strided_slice %342 {offsets = [0, 0], sizes = [8, 128], strides = [1, 1]} : vector<8x256xf32> to vector<8x128xf32>
    %344 = vector.extract_strided_slice %342 {offsets = [0, 128], sizes = [8, 128], strides = [1, 1]} : vector<8x256xf32> to vector<8x128xf32>
    %345 = vector.extract_strided_slice %332 {offsets = [0, 256], sizes = [8, 128], strides = [1, 1]} : vector<8x384xf32> to vector<8x128xf32>
    %346 = vector.extract_strided_slice %334 {offsets = [0, 256], sizes = [8, 128], strides = [1, 1]} : vector<8x384xf32> to vector<8x128xf32>
    %347 = arith.mulf %343, %346 : vector<8x128xf32>
    %348 = arith.addf %345, %347 : vector<8x128xf32>
    %349 = math.tanh %348 : vector<8x128xf32>
    %cst_116 = arith.constant 1.000000e+00 : f32
    %350 = vector.broadcast %cst_116 : f32 to vector<8x128xf32>
    %351 = arith.subf %350, %344 : vector<8x128xf32>
    %352 = arith.mulf %351, %349 : vector<8x128xf32>
    %353 = arith.mulf %344, %331 : vector<8x128xf32>
    %354 = arith.addf %352, %353 : vector<8x128xf32>
    %355 = arith.select %11, %354, %331 : vector<8x128xi1>, vector<8x128xf32>
    %c32_117 = arith.constant 32 : index
    %c0_118 = arith.constant 0 : index
    %356 = vector.load %arg12[%c32_117, %c0_118] : memref<64x384xf32, #tpu.memory_space<vmem>>, vector<8x384xf32>
    %c0_119 = arith.constant 0 : index
    %c0_120 = arith.constant 0 : index
    %357 = vector.load %arg7[%c0_119, %c0_120] : memref<128x384xf32, #tpu.memory_space<vmem>>, vector<128x384xf32>
    %cst_121 = arith.constant dense<0.000000e+00> : vector<8x384xf32>
    %358 = tpu.matmul %355, %357, %cst_121 {dimension_numbers = #tpu.dot_dimension_numbers<[1], [0], [0], [1], [0, 0, 1, 1], [], []>} : vector<8x128xf32>, vector<128x384xf32>, vector<8x384xf32> -> vector<8x384xf32>
    %359 = vector.extract_strided_slice %356 {offsets = [0, 0], sizes = [8, 256], strides = [1, 1]} : vector<8x384xf32> to vector<8x256xf32>
    %360 = vector.extract_strided_slice %358 {offsets = [0, 0], sizes = [8, 256], strides = [1, 1]} : vector<8x384xf32> to vector<8x256xf32>
    %361 = arith.addf %359, %360 : vector<8x256xf32>
    %362 = arith.negf %361 : vector<8x256xf32>
    %363 = math.exp %362 : vector<8x256xf32>
    %cst_122 = arith.constant 1.000000e+00 : f32
    %364 = vector.broadcast %cst_122 : f32 to vector<8x256xf32>
    %365 = arith.addf %364, %363 : vector<8x256xf32>
    %366 = arith.divf %364, %365 : vector<8x256xf32>
    %367 = vector.extract_strided_slice %366 {offsets = [0, 0], sizes = [8, 128], strides = [1, 1]} : vector<8x256xf32> to vector<8x128xf32>
    %368 = vector.extract_strided_slice %366 {offsets = [0, 128], sizes = [8, 128], strides = [1, 1]} : vector<8x256xf32> to vector<8x128xf32>
    %369 = vector.extract_strided_slice %356 {offsets = [0, 256], sizes = [8, 128], strides = [1, 1]} : vector<8x384xf32> to vector<8x128xf32>
    %370 = vector.extract_strided_slice %358 {offsets = [0, 256], sizes = [8, 128], strides = [1, 1]} : vector<8x384xf32> to vector<8x128xf32>
    %371 = arith.mulf %367, %370 : vector<8x128xf32>
    %372 = arith.addf %369, %371 : vector<8x128xf32>
    %373 = math.tanh %372 : vector<8x128xf32>
    %cst_123 = arith.constant 1.000000e+00 : f32
    %374 = vector.broadcast %cst_123 : f32 to vector<8x128xf32>
    %375 = arith.subf %374, %368 : vector<8x128xf32>
    %376 = arith.mulf %375, %373 : vector<8x128xf32>
    %377 = arith.mulf %368, %355 : vector<8x128xf32>
    %378 = arith.addf %376, %377 : vector<8x128xf32>
    %379 = arith.select %14, %378, %355 : vector<8x128xi1>, vector<8x128xf32>
    %c40_124 = arith.constant 40 : index
    %c0_125 = arith.constant 0 : index
    %380 = vector.load %arg12[%c40_124, %c0_125] : memref<64x384xf32, #tpu.memory_space<vmem>>, vector<8x384xf32>
    %c0_126 = arith.constant 0 : index
    %c0_127 = arith.constant 0 : index
    %381 = vector.load %arg7[%c0_126, %c0_127] : memref<128x384xf32, #tpu.memory_space<vmem>>, vector<128x384xf32>
    %cst_128 = arith.constant dense<0.000000e+00> : vector<8x384xf32>
    %382 = tpu.matmul %379, %381, %cst_128 {dimension_numbers = #tpu.dot_dimension_numbers<[1], [0], [0], [1], [0, 0, 1, 1], [], []>} : vector<8x128xf32>, vector<128x384xf32>, vector<8x384xf32> -> vector<8x384xf32>
    %383 = vector.extract_strided_slice %380 {offsets = [0, 0], sizes = [8, 256], strides = [1, 1]} : vector<8x384xf32> to vector<8x256xf32>
    %384 = vector.extract_strided_slice %382 {offsets = [0, 0], sizes = [8, 256], strides = [1, 1]} : vector<8x384xf32> to vector<8x256xf32>
    %385 = arith.addf %383, %384 : vector<8x256xf32>
    %386 = arith.negf %385 : vector<8x256xf32>
    %387 = math.exp %386 : vector<8x256xf32>
    %cst_129 = arith.constant 1.000000e+00 : f32
    %388 = vector.broadcast %cst_129 : f32 to vector<8x256xf32>
    %389 = arith.addf %388, %387 : vector<8x256xf32>
    %390 = arith.divf %388, %389 : vector<8x256xf32>
    %391 = vector.extract_strided_slice %390 {offsets = [0, 0], sizes = [8, 128], strides = [1, 1]} : vector<8x256xf32> to vector<8x128xf32>
    %392 = vector.extract_strided_slice %390 {offsets = [0, 128], sizes = [8, 128], strides = [1, 1]} : vector<8x256xf32> to vector<8x128xf32>
    %393 = vector.extract_strided_slice %380 {offsets = [0, 256], sizes = [8, 128], strides = [1, 1]} : vector<8x384xf32> to vector<8x128xf32>
    %394 = vector.extract_strided_slice %382 {offsets = [0, 256], sizes = [8, 128], strides = [1, 1]} : vector<8x384xf32> to vector<8x128xf32>
    %395 = arith.mulf %391, %394 : vector<8x128xf32>
    %396 = arith.addf %393, %395 : vector<8x128xf32>
    %397 = math.tanh %396 : vector<8x128xf32>
    %cst_130 = arith.constant 1.000000e+00 : f32
    %398 = vector.broadcast %cst_130 : f32 to vector<8x128xf32>
    %399 = arith.subf %398, %392 : vector<8x128xf32>
    %400 = arith.mulf %399, %397 : vector<8x128xf32>
    %401 = arith.mulf %392, %379 : vector<8x128xf32>
    %402 = arith.addf %400, %401 : vector<8x128xf32>
    %403 = arith.select %17, %402, %379 : vector<8x128xi1>, vector<8x128xf32>
    %c48_131 = arith.constant 48 : index
    %c0_132 = arith.constant 0 : index
    %404 = vector.load %arg12[%c48_131, %c0_132] : memref<64x384xf32, #tpu.memory_space<vmem>>, vector<8x384xf32>
    %c0_133 = arith.constant 0 : index
    %c0_134 = arith.constant 0 : index
    %405 = vector.load %arg7[%c0_133, %c0_134] : memref<128x384xf32, #tpu.memory_space<vmem>>, vector<128x384xf32>
    %cst_135 = arith.constant dense<0.000000e+00> : vector<8x384xf32>
    %406 = tpu.matmul %403, %405, %cst_135 {dimension_numbers = #tpu.dot_dimension_numbers<[1], [0], [0], [1], [0, 0, 1, 1], [], []>} : vector<8x128xf32>, vector<128x384xf32>, vector<8x384xf32> -> vector<8x384xf32>
    %407 = vector.extract_strided_slice %404 {offsets = [0, 0], sizes = [8, 256], strides = [1, 1]} : vector<8x384xf32> to vector<8x256xf32>
    %408 = vector.extract_strided_slice %406 {offsets = [0, 0], sizes = [8, 256], strides = [1, 1]} : vector<8x384xf32> to vector<8x256xf32>
    %409 = arith.addf %407, %408 : vector<8x256xf32>
    %410 = arith.negf %409 : vector<8x256xf32>
    %411 = math.exp %410 : vector<8x256xf32>
    %cst_136 = arith.constant 1.000000e+00 : f32
    %412 = vector.broadcast %cst_136 : f32 to vector<8x256xf32>
    %413 = arith.addf %412, %411 : vector<8x256xf32>
    %414 = arith.divf %412, %413 : vector<8x256xf32>
    %415 = vector.extract_strided_slice %414 {offsets = [0, 0], sizes = [8, 128], strides = [1, 1]} : vector<8x256xf32> to vector<8x128xf32>
    %416 = vector.extract_strided_slice %414 {offsets = [0, 128], sizes = [8, 128], strides = [1, 1]} : vector<8x256xf32> to vector<8x128xf32>
    %417 = vector.extract_strided_slice %404 {offsets = [0, 256], sizes = [8, 128], strides = [1, 1]} : vector<8x384xf32> to vector<8x128xf32>
    %418 = vector.extract_strided_slice %406 {offsets = [0, 256], sizes = [8, 128], strides = [1, 1]} : vector<8x384xf32> to vector<8x128xf32>
    %419 = arith.mulf %415, %418 : vector<8x128xf32>
    %420 = arith.addf %417, %419 : vector<8x128xf32>
    %421 = math.tanh %420 : vector<8x128xf32>
    %cst_137 = arith.constant 1.000000e+00 : f32
    %422 = vector.broadcast %cst_137 : f32 to vector<8x128xf32>
    %423 = arith.subf %422, %416 : vector<8x128xf32>
    %424 = arith.mulf %423, %421 : vector<8x128xf32>
    %425 = arith.mulf %416, %403 : vector<8x128xf32>
    %426 = arith.addf %424, %425 : vector<8x128xf32>
    %427 = arith.select %20, %426, %403 : vector<8x128xi1>, vector<8x128xf32>
    %c56_138 = arith.constant 56 : index
    %c0_139 = arith.constant 0 : index
    %428 = vector.load %arg12[%c56_138, %c0_139] : memref<64x384xf32, #tpu.memory_space<vmem>>, vector<8x384xf32>
    %c0_140 = arith.constant 0 : index
    %c0_141 = arith.constant 0 : index
    %429 = vector.load %arg7[%c0_140, %c0_141] : memref<128x384xf32, #tpu.memory_space<vmem>>, vector<128x384xf32>
    %cst_142 = arith.constant dense<0.000000e+00> : vector<8x384xf32>
    %430 = tpu.matmul %427, %429, %cst_142 {dimension_numbers = #tpu.dot_dimension_numbers<[1], [0], [0], [1], [0, 0, 1, 1], [], []>} : vector<8x128xf32>, vector<128x384xf32>, vector<8x384xf32> -> vector<8x384xf32>
    %431 = vector.extract_strided_slice %428 {offsets = [0, 0], sizes = [8, 256], strides = [1, 1]} : vector<8x384xf32> to vector<8x256xf32>
    %432 = vector.extract_strided_slice %430 {offsets = [0, 0], sizes = [8, 256], strides = [1, 1]} : vector<8x384xf32> to vector<8x256xf32>
    %433 = arith.addf %431, %432 : vector<8x256xf32>
    %434 = arith.negf %433 : vector<8x256xf32>
    %435 = math.exp %434 : vector<8x256xf32>
    %cst_143 = arith.constant 1.000000e+00 : f32
    %436 = vector.broadcast %cst_143 : f32 to vector<8x256xf32>
    %437 = arith.addf %436, %435 : vector<8x256xf32>
    %438 = arith.divf %436, %437 : vector<8x256xf32>
    %439 = vector.extract_strided_slice %438 {offsets = [0, 0], sizes = [8, 128], strides = [1, 1]} : vector<8x256xf32> to vector<8x128xf32>
    %440 = vector.extract_strided_slice %438 {offsets = [0, 128], sizes = [8, 128], strides = [1, 1]} : vector<8x256xf32> to vector<8x128xf32>
    %441 = vector.extract_strided_slice %428 {offsets = [0, 256], sizes = [8, 128], strides = [1, 1]} : vector<8x384xf32> to vector<8x128xf32>
    %442 = vector.extract_strided_slice %430 {offsets = [0, 256], sizes = [8, 128], strides = [1, 1]} : vector<8x384xf32> to vector<8x128xf32>
    %443 = arith.mulf %439, %442 : vector<8x128xf32>
    %444 = arith.addf %441, %443 : vector<8x128xf32>
    %445 = math.tanh %444 : vector<8x128xf32>
    %cst_144 = arith.constant 1.000000e+00 : f32
    %446 = vector.broadcast %cst_144 : f32 to vector<8x128xf32>
    %447 = arith.subf %446, %440 : vector<8x128xf32>
    %448 = arith.mulf %447, %445 : vector<8x128xf32>
    %449 = arith.mulf %440, %427 : vector<8x128xf32>
    %450 = arith.addf %448, %449 : vector<8x128xf32>
    %451 = arith.select %23, %450, %427 : vector<8x128xi1>, vector<8x128xf32>
    %452 = vector.extract_strided_slice %451 {offsets = [0, 32], sizes = [8, 32], strides = [1, 1]} : vector<8x128xf32> to vector<8x32xf32>
    %453 = vector.extract_strided_slice %451 {offsets = [0, 0], sizes = [8, 32], strides = [1, 1]} : vector<8x128xf32> to vector<8x32xf32>
    %454 = tpu.concatenate %452, %453 in 1 : vector<8x32xf32>, vector<8x32xf32> -> vector<8x64xf32>
    %c0_145 = arith.constant 0 : index
    %c0_146 = arith.constant 0 : index
    %455 = vector.load %arg11[%c0_145, %c0_146] : memref<8x64xf32, #tpu.memory_space<vmem>>, vector<8x64xf32>
    tpu.vector_store %arg11[%c0_145, %c0_146], %454 {strides = array<i32>} : memref<8x64xf32, #tpu.memory_space<vmem>>, vector<8x64xf32>,
    %c0_147 = arith.constant 0 : index
    %c0_148 = arith.constant 0 : index
    %456 = vector.load %arg8[%c0_147, %c0_148] : memref<64x4xf32, #tpu.memory_space<vmem>>, vector<64x4xf32>
    %cst_149 = arith.constant dense<0.000000e+00> : vector<8x4xf32>
    %457 = tpu.matmul %454, %456, %cst_149 {dimension_numbers = #tpu.dot_dimension_numbers<[1], [0], [0], [1], [0, 0, 1, 1], [], []>} : vector<8x64xf32>, vector<64x4xf32>, vector<8x4xf32> -> vector<8x4xf32>
    %c0_150 = arith.constant 0 : index
    %c0_151 = arith.constant 0 : index
    %458 = vector.load %arg9[%c0_150, %c0_151] : memref<1x4xf32, #tpu.memory_space<vmem>>, vector<1x4xf32>
    %459 = vector.broadcast %458 : vector<1x4xf32> to vector<8x4xf32>
    %460 = arith.addf %457, %459 : vector<8x4xf32>
    %c0_152 = arith.constant 0 : index
    %c0_153 = arith.constant 0 : index
    %461 = vector.load %arg10[%c0_152, %c0_153] : memref<8x4xf32, #tpu.memory_space<vmem>>, vector<8x4xf32>
    tpu.vector_store %arg10[%c0_152, %c0_153], %460 {strides = array<i32>} : memref<8x4xf32, #tpu.memory_space<vmem>>, vector<8x4xf32>,
    return
  }
}

</mosaic_0001>

<llo_original>
// kernel: rnn_classifier_forward.1
$region0: #{rnn_classifier_forward.1}
  #allocation0 [shape = 'u32[]', space=smem, size = 0x4, offset = 0x4, fixed_abs, tag = 'smem constant byte address 0x4 - core index']
  #allocation1 [shape = 'u32[72,128]{1,0:T(1,128)}', space=vmem, size = 0x9000, scoped, tag = 'internal scratch']
  #allocation2 [shape = 'f32[64,384]{1,0:T(8,128)}', space=vmem, size = 0x18000, scoped, tag = 'scratch operand']
  %s0 = inlined_call_operand.vmem [shape: f32[64,64], index: 0, kind: input, shape index: {}]
  %s1 = inlined_call_operand.vmem [shape: f32[64,128], index: 1, kind: input, shape index: {}]
  %s2 = inlined_call_operand.vmem [shape: f32[64,384], index: 2, kind: input, shape index: {}]
  %s3 = inlined_call_operand.vmem [shape: f32[1,384], index: 3, kind: input, shape index: {}]
  %s4 = inlined_call_operand.vmem [shape: f32[128,384], index: 4, kind: input, shape index: {}]
  %s5 = inlined_call_operand.vmem [shape: f32[128,384], index: 5, kind: input, shape index: {}]
  %s6 = inlined_call_operand.vmem [shape: f32[1,384], index: 6, kind: input, shape index: {}]
  %s7 = inlined_call_operand.vmem [shape: f32[128,384], index: 7, kind: input, shape index: {}]
  %s8 = inlined_call_operand.vmem [shape: f32[64,4], index: 8, kind: input, shape index: {}]
  %s9 = inlined_call_operand.vmem [shape: f32[1,4], index: 9, kind: input, shape index: {}]
  %s10 = inlined_call_operand.vmem [shape: f32[8,4], index: 10, kind: output, shape index: {0}]
  %s11 = inlined_call_operand.hbm [shape: f32[8,64], index: 11, kind: output, shape index: {1}]
  %12 = xla_tuple %s10, %s11
  %s13 = sld [smem:[#allocation0]]
  $region58: #{rnn_classifier_forward.1} parent=0
    _
  %s15 = ssub.s32 1, %s13
  %s16 = scalar_select 0, %s15, %s13
  $region1: #{rnn_classifier_forward.1} parent=0
    #allocation3 [shape = 'u8[4096]{0}', space=vmem, size = 0x1000, scoped, tag = 'output window, operand 1, single buffered']
    #allocation4 [shape = 's32[1]{0}', space=sflag, size = 0x4, scoped, tag = 'scoped memory for rnn_classifier_forward.1']
    %17 = vsyncpa [#allocation4], 0
    // Predicated region
    $region2: #{rnn_classifier_forward.1} parent=1 // pred_check
      _
    $region3: #{rnn_classifier_forward.1} parent=1 // pred_check_branch
      %19 = sbr.rel (0) target = $region5
    $region4: #{rnn_classifier_forward.1} parent=1 // pred_region
      _
    $region5: #{rnn_classifier_forward.1} parent=1 // pred_fallthru
      _
    // Predicated region
    $region6: #{rnn_classifier_forward.1} parent=1 // pred_check
      _
    $region7: #{rnn_classifier_forward.1} parent=1 // pred_check_branch
      %21 = sbr.rel (0) target = $region9
    $region8: #{rnn_classifier_forward.1} parent=1 // pred_region
      _
    $region9: #{rnn_classifier_forward.1} parent=1 // pred_fallthru
      _
    // Predicated region
    $region10: #{rnn_classifier_forward.1} parent=1 // pred_check
      _
    $region11: #{rnn_classifier_forward.1} parent=1 // pred_check_branch
      %23 = sbr.rel (0) target = $region13
    $region12: #{rnn_classifier_forward.1} parent=1 // pred_region
      _
    $region13: #{rnn_classifier_forward.1} parent=1 // pred_fallthru
      _
    // Predicated region
    $region14: #{rnn_classifier_forward.1} parent=1 // pred_check
      _
    $region15: #{rnn_classifier_forward.1} parent=1 // pred_check_branch
      %25 = sbr.rel (0) target = $region17
    $region16: #{rnn_classifier_forward.1} parent=1 // pred_region
      _
    $region17: #{rnn_classifier_forward.1} parent=1 // pred_fallthru
      _
    // Predicated region
    $region18: #{rnn_classifier_forward.1} parent=1 // pred_check
      _
    $region19: #{rnn_classifier_forward.1} parent=1 // pred_check_branch
      %27 = sbr.rel (0) target = $region21
    $region20: #{rnn_classifier_forward.1} parent=1 // pred_region
      _
    $region21: #{rnn_classifier_forward.1} parent=1 // pred_fallthru
      _
    // Predicated region
    $region22: #{rnn_classifier_forward.1} parent=1 // pred_check
      _
    $region23: #{rnn_classifier_forward.1} parent=1 // pred_check_branch
      %29 = sbr.rel (0) target = $region25
    $region24: #{rnn_classifier_forward.1} parent=1 // pred_region
      _
    $region25: #{rnn_classifier_forward.1} parent=1 // pred_fallthru
      _
    // Predicated region
    $region26: #{rnn_classifier_forward.1} parent=1 // pred_check
      _
    $region27: #{rnn_classifier_forward.1} parent=1 // pred_check_branch
      %31 = sbr.rel (0) target = $region29
    $region28: #{rnn_classifier_forward.1} parent=1 // pred_region
      _
    $region29: #{rnn_classifier_forward.1} parent=1 // pred_fallthru
      _
    // Predicated region
    $region30: #{rnn_classifier_forward.1} parent=1 // pred_check
      _
    $region31: #{rnn_classifier_forward.1} parent=1 // pred_check_branch
      %33 = sbr.rel (0) target = $region33
    $region32: #{rnn_classifier_forward.1} parent=1 // pred_region
      _
    $region33: #{rnn_classifier_forward.1} parent=1 // pred_fallthru
      _
    // Predicated region
    $region34: #{rnn_classifier_forward.1} parent=1 // pred_check
      _
    $region35: #{rnn_classifier_forward.1} parent=1 // pred_check_branch
      %35 = sbr.rel (0) target = $region37
    $region36: #{rnn_classifier_forward.1} parent=1 // pred_region
      _
    $region37: #{rnn_classifier_forward.1} parent=1 // pred_fallthru
      _
    // Predicated region
    $region38: #{rnn_classifier_forward.1} parent=1 // pred_check
      _
    $region39: #{rnn_classifier_forward.1} parent=1 // pred_check_branch
      %37 = sbr.rel (0) target = $region41
    $region40: #{rnn_classifier_forward.1} parent=1 // pred_region
      _
    $region41: #{rnn_classifier_forward.1} parent=1 // pred_fallthru
      _
    %v38 = vld [vmem:[%s1] sm:$0xff]
    %vm39 = vcmp.gt.f32.partialorder %v38, 0.0
    %v40 = vld [vmem:[%s1 + $0x8] sm:$0xff]
    %vm41 = vcmp.gt.f32.partialorder %v40, 0.0
    %v42 = vld [vmem:[%s1 + $0x10] sm:$0xff]
    %vm43 = vcmp.gt.f32.partialorder %v42, 0.0
    %v44 = vld [vmem:[%s1 + $0x18] sm:$0xff]
    %vm45 = vcmp.gt.f32.partialorder %v44, 0.0
    %v46 = vld [vmem:[%s1 + $0x20] sm:$0xff]
    %vm47 = vcmp.gt.f32.partialorder %v46, 0.0
    %v48 = vld [vmem:[%s1 + $0x28] sm:$0xff]
    %vm49 = vcmp.gt.f32.partialorder %v48, 0.0
    %v50 = vld [vmem:[%s1 + $0x30] sm:$0xff]
    %vm51 = vcmp.gt.f32.partialorder %v50, 0.0
    %v52 = vld [vmem:[%s1 + $0x38] sm:$0xff]
    %vm53 = vcmp.gt.f32.partialorder %v52, 0.0
    %v54 = vlaneseq
    %v55 = vand.u32 %v54, 127
    %vm56 = vcmp.eq.s32.totalorder %v55, 64
    %v57 = vsel %vm56, 1.0, 0.0
    %v58 = vld [vmem:[%s0] sm:$0xff]
    %v59 = vld [vmem:[%s0 + $0x8] sm:$0xff]
    %v60 = vld [vmem:[%s0 + $0x10] sm:$0xff]
    %v61 = vld [vmem:[%s0 + $0x18] sm:$0xff]
    %v62 = vld [vmem:[%s0 + $0x20] sm:$0xff]
    %v63 = vld [vmem:[%s0 + $0x28] sm:$0xff]
    %v64 = vld [vmem:[%s0 + $0x30] sm:$0xff]
    %v65 = vld [vmem:[%s0 + $0x38] sm:$0xff]
    %v66 = vld [vmem:[%s2] sm:$0xff]
    %v67 = vld [vmem:[%s2 + $0x8] sm:$0xff]
    %v68 = vld [vmem:[%s2 + $0x10] sm:$0xff]
    %v69 = vld [vmem:[%s2 + $0x18] sm:$0xff]
    %v70 = vld [vmem:[%s2 + $0x20] sm:$0xff]
    %v71 = vld [vmem:[%s2 + $0x28] sm:$0xff]
    %v72 = vld [vmem:[%s2 + $0x30] sm:$0xff]
    %v73 = vld [vmem:[%s2 + $0x38] sm:$0xff]
    %v74 = vld [vmem:[%s2 + $0x40] sm:$0xff]
    %v75 = vld [vmem:[%s2 + $0x48] sm:$0xff]
    %v76 = vld [vmem:[%s2 + $0x50] sm:$0xff]
    %v77 = vld [vmem:[%s2 + $0x58] sm:$0xff]
    %v78 = vld [vmem:[%s2 + $0x60] sm:$0xff]
    %v79 = vld [vmem:[%s2 + $0x68] sm:$0xff]
    %v80 = vld [vmem:[%s2 + $0x70] sm:$0xff]
    %v81 = vld [vmem:[%s2 + $0x78] sm:$0xff]
    %v82 = vld [vmem:[%s2 + $0x80] sm:$0xff]
    %v83 = vld [vmem:[%s2 + $0x88] sm:$0xff]
    %v84 = vld [vmem:[%s2 + $0x90] sm:$0xff]
    %v85 = vld [vmem:[%s2 + $0x98] sm:$0xff]
    %v86 = vld [vmem:[%s2 + $0xa0] sm:$0xff]
    %v87 = vld [vmem:[%s2 + $0xa8] sm:$0xff]
    %v88 = vld [vmem:[%s2 + $0xb0] sm:$0xff]
    %v89 = vld [vmem:[%s2 + $0xb8] sm:$0xff]
    %v90 = vld [vmem:[%s3] sm:$0x7]
    %v92 = vperm.slane %v90, 0
    %v93 = vperm.slane %v90, 1
    %v94 = vperm.slane %v90, 2
    %vm98 = vcmask 523264
    %v100 = vsel %vm98, %v58, 0
    %v103 = vsel %vm98, %v59, 0
    %v106 = vsel %vm98, %v60, 0
    %v109 = vsel %vm98, %v61, 0
    %v112 = vsel %vm98, %v62, 0
    %v115 = vsel %vm98, %v63, 0
    %v118 = vsel %vm98, %v64, 0
    %v121 = vsel %vm98, %v65, 0
    %123 = vmatpush.msra.mxu0 0.0
    %124 = vmatpush.msra.mxu0 0.0
    %125 = vmatpush.msra.mxu0 0.0
    %126 = vmatpush.msra.mxu0 0.0
    %127 = vmatpush.msra.mxu0 0.0
    %128 = vmatpush.msra.mxu0 0.0
    %129 = vmatpush.msra.mxu0 0.0
    %130 = vmatpush.msra.mxu0 0.0
    %131 = vmatpush.msra.mxu0 %v87
    %132 = vmatpush.msra.mxu0 %v84
    %133 = vmatpush.msra.mxu0 %v81
    %134 = vmatpush.msra.mxu0 %v78
    %135 = vmatpush.msra.mxu0 %v75
    %136 = vmatpush.msra.mxu0 %v72
    %137 = vmatpush.msra.mxu0 %v69
    %138 = vmatpush.msra.mxu0 %v66
    %139 = vmatmul.f32.gmra.mxu0 %v100
    %v140 = vpop.f32.mrf.mxu0
    %v141 = vadd.f32 %v92, %v140
    %142 = vmatmul.f32.gmra.mxu0 %v103
    %v143 = vpop.f32.mrf.mxu0
    %v144 = vadd.f32 %v92, %v143
    %145 = vmatmul.f32.gmra.mxu0 %v106
    %v146 = vpop.f32.mrf.mxu0
    %v147 = vadd.f32 %v92, %v146
    %148 = vmatmul.f32.gmra.mxu0 %v109
    %v149 = vpop.f32.mrf.mxu0
    %v150 = vadd.f32 %v92, %v149
    %151 = vmatmul.f32.gmra.mxu0 %v112
    %v152 = vpop.f32.mrf.mxu0
    %v153 = vadd.f32 %v92, %v152
    %154 = vmatmul.f32.gmra.mxu0 %v115
    %v155 = vpop.f32.mrf.mxu0
    %v156 = vadd.f32 %v92, %v155
    %157 = vmatmul.f32.gmra.mxu0 %v118
    %v158 = vpop.f32.mrf.mxu0
    %v159 = vadd.f32 %v92, %v158
    %160 = vmatmul.f32.gmra.mxu0 %v121
    %v161 = vpop.f32.mrf.mxu0
    %v162 = vadd.f32 %v92, %v161
    %163 = vdwg.mxu0
    %164 = vmatpush.msra.mxu0 0.0
    %165 = vmatpush.msra.mxu0 0.0
    %166 = vmatpush.msra.mxu0 0.0
    %167 = vmatpush.msra.mxu0 0.0
    %168 = vmatpush.msra.mxu0 0.0
    %169 = vmatpush.msra.mxu0 0.0
    %170 = vmatpush.msra.mxu0 0.0
    %171 = vmatpush.msra.mxu0 0.0
    %172 = vmatpush.msra.mxu0 %v88
    %173 = vmatpush.msra.mxu0 %v85
    %174 = vmatpush.msra.mxu0 %v82
    %175 = vmatpush.msra.mxu0 %v79
    %176 = vmatpush.msra.mxu0 %v76
    %177 = vmatpush.msra.mxu0 %v73
    %178 = vmatpush.msra.mxu0 %v70
    %179 = vmatpush.msra.mxu0 %v67
    %180 = vmatmul.f32.gmra.mxu0 %v100
    %v181 = vpop.f32.mrf.mxu0
    %v182 = vadd.f32 %v93, %v181
    %183 = vmatmul.f32.gmra.mxu0 %v103
    %v184 = vpop.f32.mrf.mxu0
    %v185 = vadd.f32 %v93, %v184
    %186 = vmatmul.f32.gmra.mxu0 %v106
    %v187 = vpop.f32.mrf.mxu0
    %v188 = vadd.f32 %v93, %v187
    %189 = vmatmul.f32.gmra.mxu0 %v109
    %v190 = vpop.f32.mrf.mxu0
    %v191 = vadd.f32 %v93, %v190
    %192 = vmatmul.f32.gmra.mxu0 %v112
    %v193 = vpop.f32.mrf.mxu0
    %v194 = vadd.f32 %v93, %v193
    %195 = vmatmul.f32.gmra.mxu0 %v115
    %v196 = vpop.f32.mrf.mxu0
    %v197 = vadd.f32 %v93, %v196
    %198 = vmatmul.f32.gmra.mxu0 %v118
    %v199 = vpop.f32.mrf.mxu0
    %v200 = vadd.f32 %v93, %v199
    %201 = vmatmul.f32.gmra.mxu0 %v121
    %v202 = vpop.f32.mrf.mxu0
    %v203 = vadd.f32 %v93, %v202
    %204 = vdwg.mxu0
    %205 = vmatpush.msra.mxu0 0.0
    %206 = vmatpush.msra.mxu0 0.0
    %207 = vmatpush.msra.mxu0 0.0
    %208 = vmatpush.msra.mxu0 0.0
    %209 = vmatpush.msra.mxu0 0.0
    %210 = vmatpush.msra.mxu0 0.0
    %211 = vmatpush.msra.mxu0 0.0
    %212 = vmatpush.msra.mxu0 0.0
    %213 = vmatpush.msra.mxu0 %v89
    %214 = vmatpush.msra.mxu0 %v86
    %215 = vmatpush.msra.mxu0 %v83
    %216 = vmatpush.msra.mxu0 %v80
    %217 = vmatpush.msra.mxu0 %v77
    %218 = vmatpush.msra.mxu0 %v74
    %219 = vmatpush.msra.mxu0 %v71
    %220 = vmatpush.msra.mxu0 %v68
    %221 = vmatmul.f32.gmra.mxu0 %v100
    %v222 = vpop.f32.mrf.mxu0
    %v223 = vadd.f32 %v94, %v222
    %224 = vmatmul.f32.gmra.mxu0 %v103
    %v225 = vpop.f32.mrf.mxu0
    %v226 = vadd.f32 %v94, %v225
    %227 = vmatmul.f32.gmra.mxu0 %v106
    %v228 = vpop.f32.mrf.mxu0
    %v229 = vadd.f32 %v94, %v228
    %230 = vmatmul.f32.gmra.mxu0 %v109
    %v231 = vpop.f32.mrf.mxu0
    %v232 = vadd.f32 %v94, %v231
    %233 = vmatmul.f32.gmra.mxu0 %v112
    %v234 = vpop.f32.mrf.mxu0
    %v235 = vadd.f32 %v94, %v234
    %236 = vmatmul.f32.gmra.mxu0 %v115
    %v237 = vpop.f32.mrf.mxu0
    %v238 = vadd.f32 %v94, %v237
    %239 = vmatmul.f32.gmra.mxu0 %v118
    %v240 = vpop.f32.mrf.mxu0
    %v241 = vadd.f32 %v94, %v240
    %242 = vmatmul.f32.gmra.mxu0 %v121
    %v243 = vpop.f32.mrf.mxu0
    %v244 = vadd.f32 %v94, %v243
    %245 = vdwg.mxu0
    %246 = vst [vmem:[#allocation2] sm:$0xff] %v141
    %247 = vst [vmem:[#allocation2 + $0x8] sm:$0xff] %v182
    %248 = vst [vmem:[#allocation2 + $0x10] sm:$0xff] %v223
    %249 = vst [vmem:[#allocation2 + $0x18] sm:$0xff] %v144
    %250 = vst [vmem:[#allocation2 + $0x20] sm:$0xff] %v185
    %251 = vst [vmem:[#allocation2 + $0x28] sm:$0xff] %v226
    %252 = vst [vmem:[#allocation2 + $0x30] sm:$0xff] %v147
    %253 = vst [vmem:[#allocation2 + $0x38] sm:$0xff] %v188
    %254 = vst [vmem:[#allocation2 + $0x40] sm:$0xff] %v229
    %255 = vst [vmem:[#allocation2 + $0x48] sm:$0xff] %v150
    %256 = vst [vmem:[#allocation2 + $0x50] sm:$0xff] %v191
    %257 = vst [vmem:[#allocation2 + $0x58] sm:$0xff] %v232
    %258 = vst [vmem:[#allocation2 + $0x60] sm:$0xff] %v153
    %259 = vst [vmem:[#allocation2 + $0x68] sm:$0xff] %v194
    %260 = vst [vmem:[#allocation2 + $0x70] sm:$0xff] %v235
    %261 = vst [vmem:[#allocation2 + $0x78] sm:$0xff] %v156
    %262 = vst [vmem:[#allocation2 + $0x80] sm:$0xff] %v197
    %263 = vst [vmem:[#allocation2 + $0x88] sm:$0xff] %v238
    %264 = vst [vmem:[#allocation2 + $0x90] sm:$0xff] %v159
    %265 = vst [vmem:[#allocation2 + $0x98] sm:$0xff] %v200
    %266 = vst [vmem:[#allocation2 + $0xa0] sm:$0xff] %v241
    %267 = vst [vmem:[#allocation2 + $0xa8] sm:$0xff] %v162
    %268 = vst [vmem:[#allocation2 + $0xb0] sm:$0xff] %v203
    %269 = vst [vmem:[#allocation2 + $0xb8] sm:$0xff] %v244
    %v270 = vld [vmem:[#allocation2] sm:$0xff]
    %v271 = vld [vmem:[#allocation2 + $0x8] sm:$0xff]
    %v272 = vld [vmem:[#allocation2 + $0x10] sm:$0xff]
    %v273 = vld [vmem:[%s4] sm:$0xff]
    %v274 = vld [vmem:[%s4 + $0x8] sm:$0xff]
    %v275 = vld [vmem:[%s4 + $0x10] sm:$0xff]
    %v276 = vld [vmem:[%s4 + $0x18] sm:$0xff]
    %v277 = vld [vmem:[%s4 + $0x20] sm:$0xff]
    %v278 = vld [vmem:[%s4 + $0x28] sm:$0xff]
    %v279 = vld [vmem:[%s4 + $0x30] sm:$0xff]
    %v280 = vld [vmem:[%s4 + $0x38] sm:$0xff]
    %v281 = vld [vmem:[%s4 + $0x40] sm:$0xff]
    %v282 = vld [vmem:[%s4 + $0x48] sm:$0xff]
    %v283 = vld [vmem:[%s4 + $0x50] sm:$0xff]
    %v284 = vld [vmem:[%s4 + $0x58] sm:$0xff]
    %v285 = vld [vmem:[%s4 + $0x60] sm:$0xff]
    %v286 = vld [vmem:[%s4 + $0x68] sm:$0xff]
    %v287 = vld [vmem:[%s4 + $0x70] sm:$0xff]
    %v288 = vld [vmem:[%s4 + $0x78] sm:$0xff]
    %v289 = vld [vmem:[%s4 + $0x80] sm:$0xff]
    %v290 = vld [vmem:[%s4 + $0x88] sm:$0xff]
    %v291 = vld [vmem:[%s4 + $0x90] sm:$0xff]
    %v292 = vld [vmem:[%s4 + $0x98] sm:$0xff]
    %v293 = vld [vmem:[%s4 + $0xa0] sm:$0xff]
    %v294 = vld [vmem:[%s4 + $0xa8] sm:$0xff]
    %v295 = vld [vmem:[%s4 + $0xb0] sm:$0xff]
    %v296 = vld [vmem:[%s4 + $0xb8] sm:$0xff]
    %v297 = vld [vmem:[%s4 + $0xc0] sm:$0xff]
    %v298 = vld [vmem:[%s4 + $0xc8] sm:$0xff]
    %v299 = vld [vmem:[%s4 + $0xd0] sm:$0xff]
    %v300 = vld [vmem:[%s4 + $0xd8] sm:$0xff]
    %v301 = vld [vmem:[%s4 + $0xe0] sm:$0xff]
    %v302 = vld [vmem:[%s4 + $0xe8] sm:$0xff]
    %v303 = vld [vmem:[%s4 + $0xf0] sm:$0xff]
    %v304 = vld [vmem:[%s4 + $0xf8] sm:$0xff]
    %v305 = vld [vmem:[%s4 + $0x100] sm:$0xff]
    %v306 = vld [vmem:[%s4 + $0x108] sm:$0xff]
    %v307 = vld [vmem:[%s4 + $0x110] sm:$0xff]
    %v308 = vld [vmem:[%s4 + $0x118] sm:$0xff]
    %v309 = vld [vmem:[%s4 + $0x120] sm:$0xff]
    %v310 = vld [vmem:[%s4 + $0x128] sm:$0xff]
    %v311 = vld [vmem:[%s4 + $0x130] sm:$0xff]
    %v312 = vld [vmem:[%s4 + $0x138] sm:$0xff]
    %v313 = vld [vmem:[%s4 + $0x140] sm:$0xff]
    %v314 = vld [vmem:[%s4 + $0x148] sm:$0xff]
    %v315 = vld [vmem:[%s4 + $0x150] sm:$0xff]
    %v316 = vld [vmem:[%s4 + $0x158] sm:$0xff]
    %v317 = vld [vmem:[%s4 + $0x160] sm:$0xff]
    %v318 = vld [vmem:[%s4 + $0x168] sm:$0xff]
    %v319 = vld [vmem:[%s4 + $0x170] sm:$0xff]
    %v320 = vld [vmem:[%s4 + $0x178] sm:$0xff]
    %321 = vmatpush.msra.mxu0 %v318
    %322 = vmatpush.msra.mxu0 %v315
    %323 = vmatpush.msra.mxu0 %v312
    %324 = vmatpush.msra.mxu0 %v309
    %325 = vmatpush.msra.mxu0 %v306
    %326 = vmatpush.msra.mxu0 %v303
    %327 = vmatpush.msra.mxu0 %v300
    %328 = vmatpush.msra.mxu0 %v297
    %329 = vmatpush.msra.mxu0 %v294
    %330 = vmatpush.msra.mxu0 %v291
    %331 = vmatpush.msra.mxu0 %v288
    %332 = vmatpush.msra.mxu0 %v285
    %333 = vmatpush.msra.mxu0 %v282
    %334 = vmatpush.msra.mxu0 %v279
    %335 = vmatpush.msra.mxu0 %v276
    %336 = vmatpush.msra.mxu0 %v273
    %337 = vmatmul.f32.gmra.mxu0 %v57
    %v338 = vpop.f32.mrf.mxu0
    %v339 = vadd.f32 0.0, %v338
    %340 = vdwg.mxu0
    %341 = vmatpush.msra.mxu0 %v319
    %342 = vmatpush.msra.mxu0 %v316
    %343 = vmatpush.msra.mxu0 %v313
    %344 = vmatpush.msra.mxu0 %v310
    %345 = vmatpush.msra.mxu0 %v307
    %346 = vmatpush.msra.mxu0 %v304
    %347 = vmatpush.msra.mxu0 %v301
    %348 = vmatpush.msra.mxu0 %v298
    %349 = vmatpush.msra.mxu0 %v295
    %350 = vmatpush.msra.mxu0 %v292
    %351 = vmatpush.msra.mxu0 %v289
    %352 = vmatpush.msra.mxu0 %v286
    %353 = vmatpush.msra.mxu0 %v283
    %354 = vmatpush.msra.mxu0 %v280
    %355 = vmatpush.msra.mxu0 %v277
    %356 = vmatpush.msra.mxu0 %v274
    %357 = vmatmul.f32.gmra.mxu0 %v57
    %v358 = vpop.f32.mrf.mxu0
    %v359 = vadd.f32 0.0, %v358
    %360 = vdwg.mxu0
    %361 = vmatpush.msra.mxu0 %v320
    %362 = vmatpush.msra.mxu0 %v317
    %363 = vmatpush.msra.mxu0 %v314
    %364 = vmatpush.msra.mxu0 %v311
    %365 = vmatpush.msra.mxu0 %v308
    %366 = vmatpush.msra.mxu0 %v305
    %367 = vmatpush.msra.mxu0 %v302
    %368 = vmatpush.msra.mxu0 %v299
    %369 = vmatpush.msra.mxu0 %v296
    %370 = vmatpush.msra.mxu0 %v293
    %371 = vmatpush.msra.mxu0 %v290
    %372 = vmatpush.msra.mxu0 %v287
    %373 = vmatpush.msra.mxu0 %v284
    %374 = vmatpush.msra.mxu0 %v281
    %375 = vmatpush.msra.mxu0 %v278
    %376 = vmatpush.msra.mxu0 %v275
    %377 = vmatmul.f32.gmra.mxu0 %v57
    %v378 = vpop.f32.mrf.mxu0
    %v379 = vadd.f32 0.0, %v378
    %380 = vdwg.mxu0
    %v381 = vadd.f32 %v270, %v339
    %v382 = vadd.f32 %v271, %v359
    %v383 = vxor.u32 %v381, 2147483648
    %v384 = vxor.u32 %v382, 2147483648
    %v385 = vmul.f32 %v383, 1.442695
    %v386 = vpow.pop %v385
    %v387 = vmul.f32 %v384, 1.442695
    %v388 = vpow.pop %v387
    %v389 = vadd.f32 %v386, 1.0
    %v390 = vadd.f32 %v388, 1.0
    %v391 = vrcp.pop %v389
    %v392 = vmul.f32 %v389, %v391
    %v393 = vsub.f32 1.0, %v392
    %v394 = vmul.f32 %v391, %v393
    %v395 = vadd.f32 %v391, %v394
    %vm396 = vweird.f32 %v389
    %vm397 = vweird.f32 %v391
    %vm398 = vmor %vm396, %vm397
    %v399 = vsel %vm398, %v391, %v395
    %v400 = vand.u32 2147483647, %v389
    %vm401 = vcmp.eq.f32.partialorder %v400, 8.507059e+37
    %v402 = vand.u32 %v389, 2147483648
    %v403 = vor.u32 1.1754944e-38, %v402
    %v404 = vsel %vm401, %v403, %v399
    %v405 = vmul.f32 1.0, %v404
    %v406 = vrcp.pop %v390
    %v407 = vmul.f32 %v390, %v406
    %v408 = vsub.f32 1.0, %v407
    %v409 = vmul.f32 %v406, %v408
    %v410 = vadd.f32 %v406, %v409
    %vm411 = vweird.f32 %v390
    %vm412 = vweird.f32 %v406
    %vm413 = vmor %vm411, %vm412
    %v414 = vsel %vm413, %v406, %v410
    %v415 = vand.u32 2147483647, %v390
    %vm416 = vcmp.eq.f32.partialorder %v415, 8.507059e+37
    %v417 = vand.u32 %v390, 2147483648
    %v418 = vor.u32 1.1754944e-38, %v417
    %v419 = vsel %vm416, %v418, %v414
    %v420 = vmul.f32 1.0, %v419
    %v421 = vmul.f32 %v405, %v379
    %v422 = vadd.f32 %v272, %v421
    %v423 = vtanh.pop %v422
    %v424 = vsub.f32 1.0, %v420
    %v425 = vmul.f32 %v424, %v423
    %v426 = vmul.f32 %v420, %v57
    %v427 = vadd.f32 %v425, %v426
    %v428 = vsel %vm39, %v427, %v57
    %v429 = vld [vmem:[#allocation2 + $0x18] sm:$0xff]
    %v430 = vld [vmem:[#allocation2 + $0x20] sm:$0xff]
    %v431 = vld [vmem:[#allocation2 + $0x28] sm:$0xff]
    %432 = vmatpush.msra.mxu0 %v318
    %433 = vmatpush.msra.mxu0 %v315
    %434 = vmatpush.msra.mxu0 %v312
    %435 = vmatpush.msra.mxu0 %v309
    %436 = vmatpush.msra.mxu0 %v306
    %437 = vmatpush.msra.mxu0 %v303
    %438 = vmatpush.msra.mxu0 %v300
    %439 = vmatpush.msra.mxu0 %v297
    %440 = vmatpush.msra.mxu0 %v294
    %441 = vmatpush.msra.mxu0 %v291
    %442 = vmatpush.msra.mxu0 %v288
    %443 = vmatpush.msra.mxu0 %v285
    %444 = vmatpush.msra.mxu0 %v282
    %445 = vmatpush.msra.mxu0 %v279
    %446 = vmatpush.msra.mxu0 %v276
    %447 = vmatpush.msra.mxu0 %v273
    %448 = vmatmul.f32.gmra.mxu0 %v428
    %v449 = vpop.f32.mrf.mxu0
    %v450 = vadd.f32 0.0, %v449
    %451 = vdwg.mxu0
    %452 = vmatpush.msra.mxu0 %v319
    %453 = vmatpush.msra.mxu0 %v316
    %454 = vmatpush.msra.mxu0 %v313
    %455 = vmatpush.msra.mxu0 %v310
    %456 = vmatpush.msra.mxu0 %v307
    %457 = vmatpush.msra.mxu0 %v304
    %458 = vmatpush.msra.mxu0 %v301
    %459 = vmatpush.msra.mxu0 %v298
    %460 = vmatpush.msra.mxu0 %v295
    %461 = vmatpush.msra.mxu0 %v292
    %462 = vmatpush.msra.mxu0 %v289
    %463 = vmatpush.msra.mxu0 %v286
    %464 = vmatpush.msra.mxu0 %v283
    %465 = vmatpush.msra.mxu0 %v280
    %466 = vmatpush.msra.mxu0 %v277
    %467 = vmatpush.msra.mxu0 %v274
    %468 = vmatmul.f32.gmra.mxu0 %v428
    %v469 = vpop.f32.mrf.mxu0
    %v470 = vadd.f32 0.0, %v469
    %471 = vdwg.mxu0
    %472 = vmatpush.msra.mxu0 %v320
    %473 = vmatpush.msra.mxu0 %v317
    %474 = vmatpush.msra.mxu0 %v314
    %475 = vmatpush.msra.mxu0 %v311
    %476 = vmatpush.msra.mxu0 %v308
    %477 = vmatpush.msra.mxu0 %v305
    %478 = vmatpush.msra.mxu0 %v302
    %479 = vmatpush.msra.mxu0 %v299
    %480 = vmatpush.msra.mxu0 %v296
    %481 = vmatpush.msra.mxu0 %v293
    %482 = vmatpush.msra.mxu0 %v290
    %483 = vmatpush.msra.mxu0 %v287
    %484 = vmatpush.msra.mxu0 %v284
    %485 = vmatpush.msra.mxu0 %v281
    %486 = vmatpush.msra.mxu0 %v278
    %487 = vmatpush.msra.mxu0 %v275
    %488 = vmatmul.f32.gmra.mxu0 %v428
    %v489 = vpop.f32.mrf.mxu0
    %v490 = vadd.f32 0.0, %v489
    %491 = vdwg.mxu0
    %v492 = vadd.f32 %v429, %v450
    %v493 = vadd.f32 %v430, %v470
    %v494 = vxor.u32 %v492, 2147483648
    %v495 = vxor.u32 %v493, 2147483648
    %v496 = vmul.f32 %v494, 1.442695
    %v497 = vpow.pop %v496
    %v498 = vmul.f32 %v495, 1.442695
    %v499 = vpow.pop %v498
    %v500 = vadd.f32 %v497, 1.0
    %v501 = vadd.f32 %v499, 1.0
    %v502 = vrcp.pop %v500
    %v503 = vmul.f32 %v500, %v502
    %v504 = vsub.f32 1.0, %v503
    %v505 = vmul.f32 %v502, %v504
    %v506 = vadd.f32 %v502, %v505
    %vm507 = vweird.f32 %v500
    %vm508 = vweird.f32 %v502
    %vm509 = vmor %vm507, %vm508
    %v510 = vsel %vm509, %v502, %v506
    %v511 = vand.u32 2147483647, %v500
    %vm512 = vcmp.eq.f32.partialorder %v511, 8.507059e+37
    %v513 = vand.u32 %v500, 2147483648
    %v514 = vor.u32 1.1754944e-38, %v513
    %v515 = vsel %vm512, %v514, %v510
    %v516 = vmul.f32 1.0, %v515
    %v517 = vrcp.pop %v501
    %v518 = vmul.f32 %v501, %v517
    %v519 = vsub.f32 1.0, %v518
    %v520 = vmul.f32 %v517, %v519
    %v521 = vadd.f32 %v517, %v520
    %vm522 = vweird.f32 %v501
    %vm523 = vweird.f32 %v517
    %vm524 = vmor %vm522, %vm523
    %v525 = vsel %vm524, %v517, %v521
    %v526 = vand.u32 2147483647, %v501
    %vm527 = vcmp.eq.f32.partialorder %v526, 8.507059e+37
    %v528 = vand.u32 %v501, 2147483648
    %v529 = vor.u32 1.1754944e-38, %v528
    %v530 = vsel %vm527, %v529, %v525
    %v531 = vmul.f32 1.0, %v530
    %v532 = vmul.f32 %v516, %v490
    %v533 = vadd.f32 %v431, %v532
    %v534 = vtanh.pop %v533
    %v535 = vsub.f32 1.0, %v531
    %v536 = vmul.f32 %v535, %v534
    %v537 = vmul.f32 %v531, %v428
    %v538 = vadd.f32 %v536, %v537
    %v539 = vsel %vm41, %v538, %v428
    %v540 = vld [vmem:[#allocation2 + $0x30] sm:$0xff]
    %v541 = vld [vmem:[#allocation2 + $0x38] sm:$0xff]
    %v542 = vld [vmem:[#allocation2 + $0x40] sm:$0xff]
    %543 = vmatpush.msra.mxu0 %v318
    %544 = vmatpush.msra.mxu0 %v315
    %545 = vmatpush.msra.mxu0 %v312
    %546 = vmatpush.msra.mxu0 %v309
    %547 = vmatpush.msra.mxu0 %v306
    %548 = vmatpush.msra.mxu0 %v303
    %549 = vmatpush.msra.mxu0 %v300
    %550 = vmatpush.msra.mxu0 %v297
    %551 = vmatpush.msra.mxu0 %v294
    %552 = vmatpush.msra.mxu0 %v291
    %553 = vmatpush.msra.mxu0 %v288
    %554 = vmatpush.msra.mxu0 %v285
    %555 = vmatpush.msra.mxu0 %v282
    %556 = vmatpush.msra.mxu0 %v279
    %557 = vmatpush.msra.mxu0 %v276
    %558 = vmatpush.msra.mxu0 %v273
    %559 = vmatmul.f32.gmra.mxu0 %v539
    %v560 = vpop.f32.mrf.mxu0
    %v561 = vadd.f32 0.0, %v560
    %562 = vdwg.mxu0
    %563 = vmatpush.msra.mxu0 %v319
    %564 = vmatpush.msra.mxu0 %v316
    %565 = vmatpush.msra.mxu0 %v313
    %566 = vmatpush.msra.mxu0 %v310
    %567 = vmatpush.msra.mxu0 %v307
    %568 = vmatpush.msra.mxu0 %v304
    %569 = vmatpush.msra.mxu0 %v301
    %570 = vmatpush.msra.mxu0 %v298
    %571 = vmatpush.msra.mxu0 %v295
    %572 = vmatpush.msra.mxu0 %v292
    %573 = vmatpush.msra.mxu0 %v289
    %574 = vmatpush.msra.mxu0 %v286
    %575 = vmatpush.msra.mxu0 %v283
    %576 = vmatpush.msra.mxu0 %v280
    %577 = vmatpush.msra.mxu0 %v277
    %578 = vmatpush.msra.mxu0 %v274
    %579 = vmatmul.f32.gmra.mxu0 %v539
    %v580 = vpop.f32.mrf.mxu0
    %v581 = vadd.f32 0.0, %v580
    %582 = vdwg.mxu0
    %583 = vmatpush.msra.mxu0 %v320
    %584 = vmatpush.msra.mxu0 %v317
    %585 = vmatpush.msra.mxu0 %v314
    %586 = vmatpush.msra.mxu0 %v311
    %587 = vmatpush.msra.mxu0 %v308
    %588 = vmatpush.msra.mxu0 %v305
    %589 = vmatpush.msra.mxu0 %v302
    %590 = vmatpush.msra.mxu0 %v299
    %591 = vmatpush.msra.mxu0 %v296
    %592 = vmatpush.msra.mxu0 %v293
    %593 = vmatpush.msra.mxu0 %v290
    %594 = vmatpush.msra.mxu0 %v287
    %595 = vmatpush.msra.mxu0 %v284
    %596 = vmatpush.msra.mxu0 %v281
    %597 = vmatpush.msra.mxu0 %v278
    %598 = vmatpush.msra.mxu0 %v275
    %599 = vmatmul.f32.gmra.mxu0 %v539
    %v600 = vpop.f32.mrf.mxu0
    %v601 = vadd.f32 0.0, %v600
    %602 = vdwg.mxu0
    %v603 = vadd.f32 %v540, %v561
    %v604 = vadd.f32 %v541, %v581
    %v605 = vxor.u32 %v603, 2147483648
    %v606 = vxor.u32 %v604, 2147483648
    %v607 = vmul.f32 %v605, 1.442695
    %v608 = vpow.pop %v607
    %v609 = vmul.f32 %v606, 1.442695
    %v610 = vpow.pop %v609
    %v611 = vadd.f32 %v608, 1.0
    %v612 = vadd.f32 %v610, 1.0
    %v613 = vrcp.pop %v611
    %v614 = vmul.f32 %v611, %v613
    %v615 = vsub.f32 1.0, %v614
    %v616 = vmul.f32 %v613, %v615
    %v617 = vadd.f32 %v613, %v616
    %vm618 = vweird.f32 %v611
    %vm619 = vweird.f32 %v613
    %vm620 = vmor %vm618, %vm619
    %v621 = vsel %vm620, %v613, %v617
    %v622 = vand.u32 2147483647, %v611
    %vm623 = vcmp.eq.f32.partialorder %v622, 8.507059e+37
    %v624 = vand.u32 %v611, 2147483648
    %v625 = vor.u32 1.1754944e-38, %v624
    %v626 = vsel %vm623, %v625, %v621
    %v627 = vmul.f32 1.0, %v626
    %v628 = vrcp.pop %v612
    %v629 = vmul.f32 %v612, %v628
    %v630 = vsub.f32 1.0, %v629
    %v631 = vmul.f32 %v628, %v630
    %v632 = vadd.f32 %v628, %v631
    %vm633 = vweird.f32 %v612
    %vm634 = vweird.f32 %v628
    %vm635 = vmor %vm633, %vm634
    %v636 = vsel %vm635, %v628, %v632
    %v637 = vand.u32 2147483647, %v612
    %vm638 = vcmp.eq.f32.partialorder %v637, 8.507059e+37
    %v639 = vand.u32 %v612, 2147483648
    %v640 = vor.u32 1.1754944e-38, %v639
    %v641 = vsel %vm638, %v640, %v636
    %v642 = vmul.f32 1.0, %v641
    %v643 = vmul.f32 %v627, %v601
    %v644 = vadd.f32 %v542, %v643
    %v645 = vtanh.pop %v644
    %v646 = vsub.f32 1.0, %v642
    %v647 = vmul.f32 %v646, %v645
    %v648 = vmul.f32 %v642, %v539
    %v649 = vadd.f32 %v647, %v648
    %v650 = vsel %vm43, %v649, %v539
    %v651 = vld [vmem:[#allocation2 + $0x48] sm:$0xff]
    %v652 = vld [vmem:[#allocation2 + $0x50] sm:$0xff]
    %v653 = vld [vmem:[#allocation2 + $0x58] sm:$0xff]
    %654 = vmatpush.msra.mxu0 %v318
    %655 = vmatpush.msra.mxu0 %v315
    %656 = vmatpush.msra.mxu0 %v312
    %657 = vmatpush.msra.mxu0 %v309
    %658 = vmatpush.msra.mxu0 %v306
    %659 = vmatpush.msra.mxu0 %v303
    %660 = vmatpush.msra.mxu0 %v300
    %661 = vmatpush.msra.mxu0 %v297
    %662 = vmatpush.msra.mxu0 %v294
    %663 = vmatpush.msra.mxu0 %v291
    %664 = vmatpush.msra.mxu0 %v288
    %665 = vmatpush.msra.mxu0 %v285
    %666 = vmatpush.msra.mxu0 %v282
    %667 = vmatpush.msra.mxu0 %v279
    %668 = vmatpush.msra.mxu0 %v276
    %669 = vmatpush.msra.mxu0 %v273
    %670 = vmatmul.f32.gmra.mxu0 %v650
    %v671 = vpop.f32.mrf.mxu0
    %v672 = vadd.f32 0.0, %v671
    %673 = vdwg.mxu0
    %674 = vmatpush.msra.mxu0 %v319
    %675 = vmatpush.msra.mxu0 %v316
    %676 = vmatpush.msra.mxu0 %v313
    %677 = vmatpush.msra.mxu0 %v310
    %678 = vmatpush.msra.mxu0 %v307
    %679 = vmatpush.msra.mxu0 %v304
    %680 = vmatpush.msra.mxu0 %v301
    %681 = vmatpush.msra.mxu0 %v298
    %682 = vmatpush.msra.mxu0 %v295
    %683 = vmatpush.msra.mxu0 %v292
    %684 = vmatpush.msra.mxu0 %v289
    %685 = vmatpush.msra.mxu0 %v286
    %686 = vmatpush.msra.mxu0 %v283
    %687 = vmatpush.msra.mxu0 %v280
    %688 = vmatpush.msra.mxu0 %v277
    %689 = vmatpush.msra.mxu0 %v274
    %690 = vmatmul.f32.gmra.mxu0 %v650
    %v691 = vpop.f32.mrf.mxu0
    %v692 = vadd.f32 0.0, %v691
    %693 = vdwg.mxu0
    %694 = vmatpush.msra.mxu0 %v320
    %695 = vmatpush.msra.mxu0 %v317
    %696 = vmatpush.msra.mxu0 %v314
    %697 = vmatpush.msra.mxu0 %v311
    %698 = vmatpush.msra.mxu0 %v308
    %699 = vmatpush.msra.mxu0 %v305
    %700 = vmatpush.msra.mxu0 %v302
    %701 = vmatpush.msra.mxu0 %v299
    %702 = vmatpush.msra.mxu0 %v296
    %703 = vmatpush.msra.mxu0 %v293
    %704 = vmatpush.msra.mxu0 %v290
    %705 = vmatpush.msra.mxu0 %v287
    %706 = vmatpush.msra.mxu0 %v284
    %707 = vmatpush.msra.mxu0 %v281
    %708 = vmatpush.msra.mxu0 %v278
    %709 = vmatpush.msra.mxu0 %v275
    %710 = vmatmul.f32.gmra.mxu0 %v650
    %v711 = vpop.f32.mrf.mxu0
    %v712 = vadd.f32 0.0, %v711
    %713 = vdwg.mxu0
    %v714 = vadd.f32 %v651, %v672
    %v715 = vadd.f32 %v652, %v692
    %v716 = vxor.u32 %v714, 2147483648
    %v717 = vxor.u32 %v715, 2147483648
    %v718 = vmul.f32 %v716, 1.442695
    %v719 = vpow.pop %v718
    %v720 = vmul.f32 %v717, 1.442695
    %v721 = vpow.pop %v720
    %v722 = vadd.f32 %v719, 1.0
    %v723 = vadd.f32 %v721, 1.0
    %v724 = vrcp.pop %v722
    %v725 = vmul.f32 %v722, %v724
    %v726 = vsub.f32 1.0, %v725
    %v727 = vmul.f32 %v724, %v726
    %v728 = vadd.f32 %v724, %v727
    %vm729 = vweird.f32 %v722
    %vm730 = vweird.f32 %v724
    %vm731 = vmor %vm729, %vm730
    %v732 = vsel %vm731, %v724, %v728
    %v733 = vand.u32 2147483647, %v722
    %vm734 = vcmp.eq.f32.partialorder %v733, 8.507059e+37
    %v735 = vand.u32 %v722, 2147483648
    %v736 = vor.u32 1.1754944e-38, %v735
    %v737 = vsel %vm734, %v736, %v732
    %v738 = vmul.f32 1.0, %v737
    %v739 = vrcp.pop %v723
    %v740 = vmul.f32 %v723, %v739
    %v741 = vsub.f32 1.0, %v740
    %v742 = vmul.f32 %v739, %v741
    %v743 = vadd.f32 %v739, %v742
    %vm744 = vweird.f32 %v723
    %vm745 = vweird.f32 %v739
    %vm746 = vmor %vm744, %vm745
    %v747 = vsel %vm746, %v739, %v743
    %v748 = vand.u32 2147483647, %v723
    %vm749 = vcmp.eq.f32.partialorder %v748, 8.507059e+37
    %v750 = vand.u32 %v723, 2147483648
    %v751 = vor.u32 1.1754944e-38, %v750
    %v752 = vsel %vm749, %v751, %v747
    %v753 = vmul.f32 1.0, %v752
    %v754 = vmul.f32 %v738, %v712
    %v755 = vadd.f32 %v653, %v754
    %v756 = vtanh.pop %v755
    %v757 = vsub.f32 1.0, %v753
    %v758 = vmul.f32 %v757, %v756
    %v759 = vmul.f32 %v753, %v650
    %v760 = vadd.f32 %v758, %v759
    %v761 = vsel %vm45, %v760, %v650
    %v762 = vld [vmem:[#allocation2 + $0x60] sm:$0xff]
    %v763 = vld [vmem:[#allocation2 + $0x68] sm:$0xff]
    %v764 = vld [vmem:[#allocation2 + $0x70] sm:$0xff]
    %765 = vmatpush.msra.mxu0 %v318
    %766 = vmatpush.msra.mxu0 %v315
    %767 = vmatpush.msra.mxu0 %v312
    %768 = vmatpush.msra.mxu0 %v309
    %769 = vmatpush.msra.mxu0 %v306
    %770 = vmatpush.msra.mxu0 %v303
    %771 = vmatpush.msra.mxu0 %v300
    %772 = vmatpush.msra.mxu0 %v297
    %773 = vmatpush.msra.mxu0 %v294
    %774 = vmatpush.msra.mxu0 %v291
    %775 = vmatpush.msra.mxu0 %v288
    %776 = vmatpush.msra.mxu0 %v285
    %777 = vmatpush.msra.mxu0 %v282
    %778 = vmatpush.msra.mxu0 %v279
    %779 = vmatpush.msra.mxu0 %v276
    %780 = vmatpush.msra.mxu0 %v273
    %781 = vmatmul.f32.gmra.mxu0 %v761
    %v782 = vpop.f32.mrf.mxu0
    %v783 = vadd.f32 0.0, %v782
    %784 = vdwg.mxu0
    %785 = vmatpush.msra.mxu0 %v319
    %786 = vmatpush.msra.mxu0 %v316
    %787 = vmatpush.msra.mxu0 %v313
    %788 = vmatpush.msra.mxu0 %v310
    %789 = vmatpush.msra.mxu0 %v307
    %790 = vmatpush.msra.mxu0 %v304
    %791 = vmatpush.msra.mxu0 %v301
    %792 = vmatpush.msra.mxu0 %v298
    %793 = vmatpush.msra.mxu0 %v295
    %794 = vmatpush.msra.mxu0 %v292
    %795 = vmatpush.msra.mxu0 %v289
    %796 = vmatpush.msra.mxu0 %v286
    %797 = vmatpush.msra.mxu0 %v283
    %798 = vmatpush.msra.mxu0 %v280
    %799 = vmatpush.msra.mxu0 %v277
    %800 = vmatpush.msra.mxu0 %v274
    %801 = vmatmul.f32.gmra.mxu0 %v761
    %v802 = vpop.f32.mrf.mxu0
    %v803 = vadd.f32 0.0, %v802
    %804 = vdwg.mxu0
    %805 = vmatpush.msra.mxu0 %v320
    %806 = vmatpush.msra.mxu0 %v317
    %807 = vmatpush.msra.mxu0 %v314
    %808 = vmatpush.msra.mxu0 %v311
    %809 = vmatpush.msra.mxu0 %v308
    %810 = vmatpush.msra.mxu0 %v305
    %811 = vmatpush.msra.mxu0 %v302
    %812 = vmatpush.msra.mxu0 %v299
    %813 = vmatpush.msra.mxu0 %v296
    %814 = vmatpush.msra.mxu0 %v293
    %815 = vmatpush.msra.mxu0 %v290
    %816 = vmatpush.msra.mxu0 %v287
    %817 = vmatpush.msra.mxu0 %v284
    %818 = vmatpush.msra.mxu0 %v281
    %819 = vmatpush.msra.mxu0 %v278
    %820 = vmatpush.msra.mxu0 %v275
    %821 = vmatmul.f32.gmra.mxu0 %v761
    %v822 = vpop.f32.mrf.mxu0
    %v823 = vadd.f32 0.0, %v822
    %824 = vdwg.mxu0
    %v825 = vadd.f32 %v762, %v783
    %v826 = vadd.f32 %v763, %v803
    %v827 = vxor.u32 %v825, 2147483648
    %v828 = vxor.u32 %v826, 2147483648
    %v829 = vmul.f32 %v827, 1.442695
    %v830 = vpow.pop %v829
    %v831 = vmul.f32 %v828, 1.442695
    %v832 = vpow.pop %v831
    %v833 = vadd.f32 %v830, 1.0
    %v834 = vadd.f32 %v832, 1.0
    %v835 = vrcp.pop %v833
    %v836 = vmul.f32 %v833, %v835
    %v837 = vsub.f32 1.0, %v836
    %v838 = vmul.f32 %v835, %v837
    %v839 = vadd.f32 %v835, %v838
    %vm840 = vweird.f32 %v833
    %vm841 = vweird.f32 %v835
    %vm842 = vmor %vm840, %vm841
    %v843 = vsel %vm842, %v835, %v839
    %v844 = vand.u32 2147483647, %v833
    %vm845 = vcmp.eq.f32.partialorder %v844, 8.507059e+37
    %v846 = vand.u32 %v833, 2147483648
    %v847 = vor.u32 1.1754944e-38, %v846
    %v848 = vsel %vm845, %v847, %v843
    %v849 = vmul.f32 1.0, %v848
    %v850 = vrcp.pop %v834
    %v851 = vmul.f32 %v834, %v850
    %v852 = vsub.f32 1.0, %v851
    %v853 = vmul.f32 %v850, %v852
    %v854 = vadd.f32 %v850, %v853
    %vm855 = vweird.f32 %v834
    %vm856 = vweird.f32 %v850
    %vm857 = vmor %vm855, %vm856
    %v858 = vsel %vm857, %v850, %v854
    %v859 = vand.u32 2147483647, %v834
    %vm860 = vcmp.eq.f32.partialorder %v859, 8.507059e+37
    %v861 = vand.u32 %v834, 2147483648
    %v862 = vor.u32 1.1754944e-38, %v861
    %v863 = vsel %vm860, %v862, %v858
    %v864 = vmul.f32 1.0, %v863
    %v865 = vmul.f32 %v849, %v823
    %v866 = vadd.f32 %v764, %v865
    %v867 = vtanh.pop %v866
    %v868 = vsub.f32 1.0, %v864
    %v869 = vmul.f32 %v868, %v867
    %v870 = vmul.f32 %v864, %v761
    %v871 = vadd.f32 %v869, %v870
    %v872 = vsel %vm47, %v871, %v761
    %v873 = vld [vmem:[#allocation2 + $0x78] sm:$0xff]
    %v874 = vld [vmem:[#allocation2 + $0x80] sm:$0xff]
    %v875 = vld [vmem:[#allocation2 + $0x88] sm:$0xff]
    %876 = vmatpush.msra.mxu0 %v318
    %877 = vmatpush.msra.mxu0 %v315
    %878 = vmatpush.msra.mxu0 %v312
    %879 = vmatpush.msra.mxu0 %v309
    %880 = vmatpush.msra.mxu0 %v306
    %881 = vmatpush.msra.mxu0 %v303
    %882 = vmatpush.msra.mxu0 %v300
    %883 = vmatpush.msra.mxu0 %v297
    %884 = vmatpush.msra.mxu0 %v294
    %885 = vmatpush.msra.mxu0 %v291
    %886 = vmatpush.msra.mxu0 %v288
    %887 = vmatpush.msra.mxu0 %v285
    %888 = vmatpush.msra.mxu0 %v282
    %889 = vmatpush.msra.mxu0 %v279
    %890 = vmatpush.msra.mxu0 %v276
    %891 = vmatpush.msra.mxu0 %v273
    %892 = vmatmul.f32.gmra.mxu0 %v872
    %v893 = vpop.f32.mrf.mxu0
    %v894 = vadd.f32 0.0, %v893
    %895 = vdwg.mxu0
    %896 = vmatpush.msra.mxu0 %v319
    %897 = vmatpush.msra.mxu0 %v316
    %898 = vmatpush.msra.mxu0 %v313
    %899 = vmatpush.msra.mxu0 %v310
    %900 = vmatpush.msra.mxu0 %v307
    %901 = vmatpush.msra.mxu0 %v304
    %902 = vmatpush.msra.mxu0 %v301
    %903 = vmatpush.msra.mxu0 %v298
    %904 = vmatpush.msra.mxu0 %v295
    %905 = vmatpush.msra.mxu0 %v292
    %906 = vmatpush.msra.mxu0 %v289
    %907 = vmatpush.msra.mxu0 %v286
    %908 = vmatpush.msra.mxu0 %v283
    %909 = vmatpush.msra.mxu0 %v280
    %910 = vmatpush.msra.mxu0 %v277
    %911 = vmatpush.msra.mxu0 %v274
    %912 = vmatmul.f32.gmra.mxu0 %v872
    %v913 = vpop.f32.mrf.mxu0
    %v914 = vadd.f32 0.0, %v913
    %915 = vdwg.mxu0
    %916 = vmatpush.msra.mxu0 %v320
    %917 = vmatpush.msra.mxu0 %v317
    %918 = vmatpush.msra.mxu0 %v314
    %919 = vmatpush.msra.mxu0 %v311
    %920 = vmatpush.msra.mxu0 %v308
    %921 = vmatpush.msra.mxu0 %v305
    %922 = vmatpush.msra.mxu0 %v302
    %923 = vmatpush.msra.mxu0 %v299
    %924 = vmatpush.msra.mxu0 %v296
    %925 = vmatpush.msra.mxu0 %v293
    %926 = vmatpush.msra.mxu0 %v290
    %927 = vmatpush.msra.mxu0 %v287
    %928 = vmatpush.msra.mxu0 %v284
    %929 = vmatpush.msra.mxu0 %v281
    %930 = vmatpush.msra.mxu0 %v278
    %931 = vmatpush.msra.mxu0 %v275
    %932 = vmatmul.f32.gmra.mxu0 %v872
    %v933 = vpop.f32.mrf.mxu0
    %v934 = vadd.f32 0.0, %v933
    %935 = vdwg.mxu0
    %v936 = vadd.f32 %v873, %v894
    %v937 = vadd.f32 %v874, %v914
    %v938 = vxor.u32 %v936, 2147483648
    %v939 = vxor.u32 %v937, 2147483648
    %v940 = vmul.f32 %v938, 1.442695
    %v941 = vpow.pop %v940
    %v942 = vmul.f32 %v939, 1.442695
    %v943 = vpow.pop %v942
    %v944 = vadd.f32 %v941, 1.0
    %v945 = vadd.f32 %v943, 1.0
    %v946 = vrcp.pop %v944
    %v947 = vmul.f32 %v944, %v946
    %v948 = vsub.f32 1.0, %v947
    %v949 = vmul.f32 %v946, %v948
    %v950 = vadd.f32 %v946, %v949
    %vm951 = vweird.f32 %v944
    %vm952 = vweird.f32 %v946
    %vm953 = vmor %vm951, %vm952
    %v954 = vsel %vm953, %v946, %v950
    %v955 = vand.u32 2147483647, %v944
    %vm956 = vcmp.eq.f32.partialorder %v955, 8.507059e+37
    %v957 = vand.u32 %v944, 2147483648
    %v958 = vor.u32 1.1754944e-38, %v957
    %v959 = vsel %vm956, %v958, %v954
    %v960 = vmul.f32 1.0, %v959
    %v961 = vrcp.pop %v945
    %v962 = vmul.f32 %v945, %v961
    %v963 = vsub.f32 1.0, %v962
    %v964 = vmul.f32 %v961, %v963
    %v965 = vadd.f32 %v961, %v964
    %vm966 = vweird.f32 %v945
    %vm967 = vweird.f32 %v961
    %vm968 = vmor %vm966, %vm967
    %v969 = vsel %vm968, %v961, %v965
    %v970 = vand.u32 2147483647, %v945
    %vm971 = vcmp.eq.f32.partialorder %v970, 8.507059e+37
    %v972 = vand.u32 %v945, 2147483648
    %v973 = vor.u32 1.1754944e-38, %v972
    %v974 = vsel %vm971, %v973, %v969
    %v975 = vmul.f32 1.0, %v974
    %v976 = vmul.f32 %v960, %v934
    %v977 = vadd.f32 %v875, %v976
    %v978 = vtanh.pop %v977
    %v979 = vsub.f32 1.0, %v975
    %v980 = vmul.f32 %v979, %v978
    %v981 = vmul.f32 %v975, %v872
    %v982 = vadd.f32 %v980, %v981
    %v983 = vsel %vm49, %v982, %v872
    %v984 = vld [vmem:[#allocation2 + $0x90] sm:$0xff]
    %v985 = vld [vmem:[#allocation2 + $0x98] sm:$0xff]
    %v986 = vld [vmem:[#allocation2 + $0xa0] sm:$0xff]
    %987 = vmatpush.msra.mxu0 %v318
    %988 = vmatpush.msra.mxu0 %v315
    %989 = vmatpush.msra.mxu0 %v312
    %990 = vmatpush.msra.mxu0 %v309
    %991 = vmatpush.msra.mxu0 %v306
    %992 = vmatpush.msra.mxu0 %v303
    %993 = vmatpush.msra.mxu0 %v300
    %994 = vmatpush.msra.mxu0 %v297
    %995 = vmatpush.msra.mxu0 %v294
    %996 = vmatpush.msra.mxu0 %v291
    %997 = vmatpush.msra.mxu0 %v288
    %998 = vmatpush.msra.mxu0 %v285
    %999 = vmatpush.msra.mxu0 %v282
    %1000 = vmatpush.msra.mxu0 %v279
    %1001 = vmatpush.msra.mxu0 %v276
    %1002 = vmatpush.msra.mxu0 %v273
    %1003 = vmatmul.f32.gmra.mxu0 %v983
    %v1004 = vpop.f32.mrf.mxu0
    %v1005 = vadd.f32 0.0, %v1004
    %1006 = vdwg.mxu0
    %1007 = vmatpush.msra.mxu0 %v319
    %1008 = vmatpush.msra.mxu0 %v316
    %1009 = vmatpush.msra.mxu0 %v313
    %1010 = vmatpush.msra.mxu0 %v310
    %1011 = vmatpush.msra.mxu0 %v307
    %1012 = vmatpush.msra.mxu0 %v304
    %1013 = vmatpush.msra.mxu0 %v301
    %1014 = vmatpush.msra.mxu0 %v298
    %1015 = vmatpush.msra.mxu0 %v295
    %1016 = vmatpush.msra.mxu0 %v292
    %1017 = vmatpush.msra.mxu0 %v289
    %1018 = vmatpush.msra.mxu0 %v286
    %1019 = vmatpush.msra.mxu0 %v283
    %1020 = vmatpush.msra.mxu0 %v280
    %1021 = vmatpush.msra.mxu0 %v277
    %1022 = vmatpush.msra.mxu0 %v274
    %1023 = vmatmul.f32.gmra.mxu0 %v983
    %v1024 = vpop.f32.mrf.mxu0
    %v1025 = vadd.f32 0.0, %v1024
    %1026 = vdwg.mxu0
    %1027 = vmatpush.msra.mxu0 %v320
    %1028 = vmatpush.msra.mxu0 %v317
    %1029 = vmatpush.msra.mxu0 %v314
    %1030 = vmatpush.msra.mxu0 %v311
    %1031 = vmatpush.msra.mxu0 %v308
    %1032 = vmatpush.msra.mxu0 %v305
    %1033 = vmatpush.msra.mxu0 %v302
    %1034 = vmatpush.msra.mxu0 %v299
    %1035 = vmatpush.msra.mxu0 %v296
    %1036 = vmatpush.msra.mxu0 %v293
    %1037 = vmatpush.msra.mxu0 %v290
    %1038 = vmatpush.msra.mxu0 %v287
    %1039 = vmatpush.msra.mxu0 %v284
    %1040 = vmatpush.msra.mxu0 %v281
    %1041 = vmatpush.msra.mxu0 %v278
    %1042 = vmatpush.msra.mxu0 %v275
    %1043 = vmatmul.f32.gmra.mxu0 %v983
    %v1044 = vpop.f32.mrf.mxu0
    %v1045 = vadd.f32 0.0, %v1044
    %1046 = vdwg.mxu0
    %v1047 = vadd.f32 %v984, %v1005
    %v1048 = vadd.f32 %v985, %v1025
    %v1049 = vxor.u32 %v1047, 2147483648
    %v1050 = vxor.u32 %v1048, 2147483648
    %v1051 = vmul.f32 %v1049, 1.442695
    %v1052 = vpow.pop %v1051
    %v1053 = vmul.f32 %v1050, 1.442695
    %v1054 = vpow.pop %v1053
    %v1055 = vadd.f32 %v1052, 1.0
    %v1056 = vadd.f32 %v1054, 1.0
    %v1057 = vrcp.pop %v1055
    %v1058 = vmul.f32 %v1055, %v1057
    %v1059 = vsub.f32 1.0, %v1058
    %v1060 = vmul.f32 %v1057, %v1059
    %v1061 = vadd.f32 %v1057, %v1060
    %vm1062 = vweird.f32 %v1055
    %vm1063 = vweird.f32 %v1057
    %vm1064 = vmor %vm1062, %vm1063
    %v1065 = vsel %vm1064, %v1057, %v1061
    %v1066 = vand.u32 2147483647, %v1055
    %vm1067 = vcmp.eq.f32.partialorder %v1066, 8.507059e+37
    %v1068 = vand.u32 %v1055, 2147483648
    %v1069 = vor.u32 1.1754944e-38, %v1068
    %v1070 = vsel %vm1067, %v1069, %v1065
    %v1071 = vmul.f32 1.0, %v1070
    %v1072 = vrcp.pop %v1056
    %v1073 = vmul.f32 %v1056, %v1072
    %v1074 = vsub.f32 1.0, %v1073
    %v1075 = vmul.f32 %v1072, %v1074
    %v1076 = vadd.f32 %v1072, %v1075
    %vm1077 = vweird.f32 %v1056
    %vm1078 = vweird.f32 %v1072
    %vm1079 = vmor %vm1077, %vm1078
    %v1080 = vsel %vm1079, %v1072, %v1076
    %v1081 = vand.u32 2147483647, %v1056
    %vm1082 = vcmp.eq.f32.partialorder %v1081, 8.507059e+37
    %v1083 = vand.u32 %v1056, 2147483648
    %v1084 = vor.u32 1.1754944e-38, %v1083
    %v1085 = vsel %vm1082, %v1084, %v1080
    %v1086 = vmul.f32 1.0, %v1085
    %v1087 = vmul.f32 %v1071, %v1045
    %v1088 = vadd.f32 %v986, %v1087
    %v1089 = vtanh.pop %v1088
    %v1090 = vsub.f32 1.0, %v1086
    %v1091 = vmul.f32 %v1090, %v1089
    %v1092 = vmul.f32 %v1086, %v983
    %v1093 = vadd.f32 %v1091, %v1092
    %v1094 = vsel %vm51, %v1093, %v983
    %v1095 = vld [vmem:[#allocation2 + $0xa8] sm:$0xff]
    %v1096 = vld [vmem:[#allocation2 + $0xb0] sm:$0xff]
    %v1097 = vld [vmem:[#allocation2 + $0xb8] sm:$0xff]
    %1098 = vmatpush.msra.mxu0 %v318
    %1099 = vmatpush.msra.mxu0 %v315
    %1100 = vmatpush.msra.mxu0 %v312
    %1101 = vmatpush.msra.mxu0 %v309
    %1102 = vmatpush.msra.mxu0 %v306
    %1103 = vmatpush.msra.mxu0 %v303
    %1104 = vmatpush.msra.mxu0 %v300
    %1105 = vmatpush.msra.mxu0 %v297
    %1106 = vmatpush.msra.mxu0 %v294
    %1107 = vmatpush.msra.mxu0 %v291
    %1108 = vmatpush.msra.mxu0 %v288
    %1109 = vmatpush.msra.mxu0 %v285
    %1110 = vmatpush.msra.mxu0 %v282
    %1111 = vmatpush.msra.mxu0 %v279
    %1112 = vmatpush.msra.mxu0 %v276
    %1113 = vmatpush.msra.mxu0 %v273
    %1114 = vmatmul.f32.gmra.mxu0 %v1094
    %v1115 = vpop.f32.mrf.mxu0
    %v1116 = vadd.f32 0.0, %v1115
    %1117 = vdwg.mxu0
    %1118 = vmatpush.msra.mxu0 %v319
    %1119 = vmatpush.msra.mxu0 %v316
    %1120 = vmatpush.msra.mxu0 %v313
    %1121 = vmatpush.msra.mxu0 %v310
    %1122 = vmatpush.msra.mxu0 %v307
    %1123 = vmatpush.msra.mxu0 %v304
    %1124 = vmatpush.msra.mxu0 %v301
    %1125 = vmatpush.msra.mxu0 %v298
    %1126 = vmatpush.msra.mxu0 %v295
    %1127 = vmatpush.msra.mxu0 %v292
    %1128 = vmatpush.msra.mxu0 %v289
    %1129 = vmatpush.msra.mxu0 %v286
    %1130 = vmatpush.msra.mxu0 %v283
    %1131 = vmatpush.msra.mxu0 %v280
    %1132 = vmatpush.msra.mxu0 %v277
    %1133 = vmatpush.msra.mxu0 %v274
    %1134 = vmatmul.f32.gmra.mxu0 %v1094
    %v1135 = vpop.f32.mrf.mxu0
    %v1136 = vadd.f32 0.0, %v1135
    %1137 = vdwg.mxu0
    %1138 = vmatpush.msra.mxu0 %v320
    %1139 = vmatpush.msra.mxu0 %v317
    %1140 = vmatpush.msra.mxu0 %v314
    %1141 = vmatpush.msra.mxu0 %v311
    %1142 = vmatpush.msra.mxu0 %v308
    %1143 = vmatpush.msra.mxu0 %v305
    %1144 = vmatpush.msra.mxu0 %v302
    %1145 = vmatpush.msra.mxu0 %v299
    %1146 = vmatpush.msra.mxu0 %v296
    %1147 = vmatpush.msra.mxu0 %v293
    %1148 = vmatpush.msra.mxu0 %v290
    %1149 = vmatpush.msra.mxu0 %v287
    %1150 = vmatpush.msra.mxu0 %v284
    %1151 = vmatpush.msra.mxu0 %v281
    %1152 = vmatpush.msra.mxu0 %v278
    %1153 = vmatpush.msra.mxu0 %v275
    %1154 = vmatmul.f32.gmra.mxu0 %v1094
    %v1155 = vpop.f32.mrf.mxu0
    %v1156 = vadd.f32 0.0, %v1155
    %1157 = vdwg.mxu0
    %v1158 = vadd.f32 %v1095, %v1116
    %v1159 = vadd.f32 %v1096, %v1136
    %v1160 = vxor.u32 %v1158, 2147483648
    %v1161 = vxor.u32 %v1159, 2147483648
    %v1162 = vmul.f32 %v1160, 1.442695
    %v1163 = vpow.pop %v1162
    %v1164 = vmul.f32 %v1161, 1.442695
    %v1165 = vpow.pop %v1164
    %v1166 = vadd.f32 %v1163, 1.0
    %v1167 = vadd.f32 %v1165, 1.0
    %v1168 = vrcp.pop %v1166
    %v1169 = vmul.f32 %v1166, %v1168
    %v1170 = vsub.f32 1.0, %v1169
    %v1171 = vmul.f32 %v1168, %v1170
    %v1172 = vadd.f32 %v1168, %v1171
    %vm1173 = vweird.f32 %v1166
    %vm1174 = vweird.f32 %v1168
    %vm1175 = vmor %vm1173, %vm1174
    %v1176 = vsel %vm1175, %v1168, %v1172
    %v1177 = vand.u32 2147483647, %v1166
    %vm1178 = vcmp.eq.f32.partialorder %v1177, 8.507059e+37
    %v1179 = vand.u32 %v1166, 2147483648
    %v1180 = vor.u32 1.1754944e-38, %v1179
    %v1181 = vsel %vm1178, %v1180, %v1176
    %v1182 = vmul.f32 1.0, %v1181
    %v1183 = vrcp.pop %v1167
    %v1184 = vmul.f32 %v1167, %v1183
    %v1185 = vsub.f32 1.0, %v1184
    %v1186 = vmul.f32 %v1183, %v1185
    %v1187 = vadd.f32 %v1183, %v1186
    %vm1188 = vweird.f32 %v1167
    %vm1189 = vweird.f32 %v1183
    %vm1190 = vmor %vm1188, %vm1189
    %v1191 = vsel %vm1190, %v1183, %v1187
    %v1192 = vand.u32 2147483647, %v1167
    %vm1193 = vcmp.eq.f32.partialorder %v1192, 8.507059e+37
    %v1194 = vand.u32 %v1167, 2147483648
    %v1195 = vor.u32 1.1754944e-38, %v1194
    %v1196 = vsel %vm1193, %v1195, %v1191
    %v1197 = vmul.f32 1.0, %v1196
    %v1198 = vmul.f32 %v1182, %v1156
    %v1199 = vadd.f32 %v1097, %v1198
    %v1200 = vtanh.pop %v1199
    %v1201 = vsub.f32 1.0, %v1197
    %v1202 = vmul.f32 %v1201, %v1200
    %v1203 = vmul.f32 %v1197, %v1094
    %v1204 = vadd.f32 %v1202, %v1203
    %v1205 = vsel %vm53, %v1204, %v1094
    %1207 = vrot.lane.b32.xlu0 %v1205, 64
    %v1208 = vpop.permute.xlu0 %1207
    %v1210 = vsel %vm98, %v428, %v1208
    %1212 = vrot.lane.b32.xlu0 %v1094, 64
    %v1213 = vpop.permute.xlu0 %1212
    %v1215 = vsel %vm98, %v539, %v1213
    %1217 = vrot.lane.b32.xlu0 %v983, 64
    %v1218 = vpop.permute.xlu0 %1217
    %v1220 = vsel %vm98, %v650, %v1218
    %1222 = vrot.lane.b32.xlu0 %v872, 64
    %v1223 = vpop.permute.xlu0 %1222
    %v1225 = vsel %vm98, %v761, %v1223
    %1227 = vrot.lane.b32.xlu0 %v761, 64
    %v1228 = vpop.permute.xlu0 %1227
    %v1230 = vsel %vm98, %v872, %v1228
    %1232 = vrot.lane.b32.xlu0 %v650, 64
    %v1233 = vpop.permute.xlu0 %1232
    %v1235 = vsel %vm98, %v983, %v1233
    %1237 = vrot.lane.b32.xlu0 %v539, 64
    %v1238 = vpop.permute.xlu0 %1237
    %v1240 = vsel %vm98, %v1094, %v1238
    %1242 = vrot.lane.b32.xlu0 %v428, 64
    %v1243 = vpop.permute.xlu0 %1242
    %v1245 = vsel %vm98, %v1205, %v1243
    %v1246 = vld [vmem:[%s5] sm:$0xff]
    %v1247 = vld [vmem:[%s5 + $0x8] sm:$0xff]
    %v1248 = vld [vmem:[%s5 + $0x10] sm:$0xff]
    %v1249 = vld [vmem:[%s5 + $0x18] sm:$0xff]
    %v1250 = vld [vmem:[%s5 + $0x20] sm:$0xff]
    %v1251 = vld [vmem:[%s5 + $0x28] sm:$0xff]
    %v1252 = vld [vmem:[%s5 + $0x30] sm:$0xff]
    %v1253 = vld [vmem:[%s5 + $0x38] sm:$0xff]
    %v1254 = vld [vmem:[%s5 + $0x40] sm:$0xff]
    %v1255 = vld [vmem:[%s5 + $0x48] sm:$0xff]
    %v1256 = vld [vmem:[%s5 + $0x50] sm:$0xff]
    %v1257 = vld [vmem:[%s5 + $0x58] sm:$0xff]
    %v1258 = vld [vmem:[%s5 + $0x60] sm:$0xff]
    %v1259 = vld [vmem:[%s5 + $0x68] sm:$0xff]
    %v1260 = vld [vmem:[%s5 + $0x70] sm:$0xff]
    %v1261 = vld [vmem:[%s5 + $0x78] sm:$0xff]
    %v1262 = vld [vmem:[%s5 + $0x80] sm:$0xff]
    %v1263 = vld [vmem:[%s5 + $0x88] sm:$0xff]
    %v1264 = vld [vmem:[%s5 + $0x90] sm:$0xff]
    %v1265 = vld [vmem:[%s5 + $0x98] sm:$0xff]
    %v1266 = vld [vmem:[%s5 + $0xa0] sm:$0xff]
    %v1267 = vld [vmem:[%s5 + $0xa8] sm:$0xff]
    %v1268 = vld [vmem:[%s5 + $0xb0] sm:$0xff]
    %v1269 = vld [vmem:[%s5 + $0xb8] sm:$0xff]
    %v1270 = vld [vmem:[%s5 + $0xc0] sm:$0xff]
    %v1271 = vld [vmem:[%s5 + $0xc8] sm:$0xff]
    %v1272 = vld [vmem:[%s5 + $0xd0] sm:$0xff]
    %v1273 = vld [vmem:[%s5 + $0xd8] sm:$0xff]
    %v1274 = vld [vmem:[%s5 + $0xe0] sm:$0xff]
    %v1275 = vld [vmem:[%s5 + $0xe8] sm:$0xff]
    %v1276 = vld [vmem:[%s5 + $0xf0] sm:$0xff]
    %v1277 = vld [vmem:[%s5 + $0xf8] sm:$0xff]
    %v1278 = vld [vmem:[%s5 + $0x100] sm:$0xff]
    %v1279 = vld [vmem:[%s5 + $0x108] sm:$0xff]
    %v1280 = vld [vmem:[%s5 + $0x110] sm:$0xff]
    %v1281 = vld [vmem:[%s5 + $0x118] sm:$0xff]
    %v1282 = vld [vmem:[%s5 + $0x120] sm:$0xff]
    %v1283 = vld [vmem:[%s5 + $0x128] sm:$0xff]
    %v1284 = vld [vmem:[%s5 + $0x130] sm:$0xff]
    %v1285 = vld [vmem:[%s5 + $0x138] sm:$0xff]
    %v1286 = vld [vmem:[%s5 + $0x140] sm:$0xff]
    %v1287 = vld [vmem:[%s5 + $0x148] sm:$0xff]
    %v1288 = vld [vmem:[%s5 + $0x150] sm:$0xff]
    %v1289 = vld [vmem:[%s5 + $0x158] sm:$0xff]
    %v1290 = vld [vmem:[%s5 + $0x160] sm:$0xff]
    %v1291 = vld [vmem:[%s5 + $0x168] sm:$0xff]
    %v1292 = vld [vmem:[%s5 + $0x170] sm:$0xff]
    %v1293 = vld [vmem:[%s5 + $0x178] sm:$0xff]
    %v1294 = vld [vmem:[%s6] sm:$0x7]
    %v1296 = vperm.slane %v1294, 0
    %v1297 = vperm.slane %v1294, 1
    %v1298 = vperm.slane %v1294, 2
    %1302 = vmatpush.msra.mxu0 %v1291
    %1303 = vmatpush.msra.mxu0 %v1288
    %1304 = vmatpush.msra.mxu0 %v1285
    %1305 = vmatpush.msra.mxu0 %v1282
    %1306 = vmatpush.msra.mxu0 %v1279
    %1307 = vmatpush.msra.mxu0 %v1276
    %1308 = vmatpush.msra.mxu0 %v1273
    %1309 = vmatpush.msra.mxu0 %v1270
    %1310 = vmatpush.msra.mxu0 %v1267
    %1311 = vmatpush.msra.mxu0 %v1264
    %1312 = vmatpush.msra.mxu0 %v1261
    %1313 = vmatpush.msra.mxu0 %v1258
    %1314 = vmatpush.msra.mxu0 %v1255
    %1315 = vmatpush.msra.mxu0 %v1252
    %1316 = vmatpush.msra.mxu0 %v1249
    %1317 = vmatpush.msra.mxu0 %v1246
    %1318 = vmatmul.f32.gmra.mxu0 %v1210
    %v1319 = vpop.f32.mrf.mxu0
    %v1320 = vadd.f32 %v1296, %v1319
    %1321 = vmatmul.f32.gmra.mxu0 %v1215
    %v1322 = vpop.f32.mrf.mxu0
    %v1323 = vadd.f32 %v1296, %v1322
    %1324 = vmatmul.f32.gmra.mxu0 %v1220
    %v1325 = vpop.f32.mrf.mxu0
    %v1326 = vadd.f32 %v1296, %v1325
    %1327 = vmatmul.f32.gmra.mxu0 %v1225
    %v1328 = vpop.f32.mrf.mxu0
    %v1329 = vadd.f32 %v1296, %v1328
    %1330 = vmatmul.f32.gmra.mxu0 %v1230
    %v1331 = vpop.f32.mrf.mxu0
    %v1332 = vadd.f32 %v1296, %v1331
    %1333 = vmatmul.f32.gmra.mxu0 %v1235
    %v1334 = vpop.f32.mrf.mxu0
    %v1335 = vadd.f32 %v1296, %v1334
    %1336 = vmatmul.f32.gmra.mxu0 %v1240
    %v1337 = vpop.f32.mrf.mxu0
    %v1338 = vadd.f32 %v1296, %v1337
    %1339 = vmatmul.f32.gmra.mxu0 %v1245
    %v1340 = vpop.f32.mrf.mxu0
    %v1341 = vadd.f32 %v1296, %v1340
    %1342 = vdwg.mxu0
    %1343 = vmatpush.msra.mxu0 %v1292
    %1344 = vmatpush.msra.mxu0 %v1289
    %1345 = vmatpush.msra.mxu0 %v1286
    %1346 = vmatpush.msra.mxu0 %v1283
    %1347 = vmatpush.msra.mxu0 %v1280
    %1348 = vmatpush.msra.mxu0 %v1277
    %1349 = vmatpush.msra.mxu0 %v1274
    %1350 = vmatpush.msra.mxu0 %v1271
    %1351 = vmatpush.msra.mxu0 %v1268
    %1352 = vmatpush.msra.mxu0 %v1265
    %1353 = vmatpush.msra.mxu0 %v1262
    %1354 = vmatpush.msra.mxu0 %v1259
    %1355 = vmatpush.msra.mxu0 %v1256
    %1356 = vmatpush.msra.mxu0 %v1253
    %1357 = vmatpush.msra.mxu0 %v1250
    %1358 = vmatpush.msra.mxu0 %v1247
    %1359 = vmatmul.f32.gmra.mxu0 %v1210
    %v1360 = vpop.f32.mrf.mxu0
    %v1361 = vadd.f32 %v1297, %v1360
    %1362 = vmatmul.f32.gmra.mxu0 %v1215
    %v1363 = vpop.f32.mrf.mxu0
    %v1364 = vadd.f32 %v1297, %v1363
    %1365 = vmatmul.f32.gmra.mxu0 %v1220
    %v1366 = vpop.f32.mrf.mxu0
    %v1367 = vadd.f32 %v1297, %v1366
    %1368 = vmatmul.f32.gmra.mxu0 %v1225
    %v1369 = vpop.f32.mrf.mxu0
    %v1370 = vadd.f32 %v1297, %v1369
    %1371 = vmatmul.f32.gmra.mxu0 %v1230
    %v1372 = vpop.f32.mrf.mxu0
    %v1373 = vadd.f32 %v1297, %v1372
    %1374 = vmatmul.f32.gmra.mxu0 %v1235
    %v1375 = vpop.f32.mrf.mxu0
    %v1376 = vadd.f32 %v1297, %v1375
    %1377 = vmatmul.f32.gmra.mxu0 %v1240
    %v1378 = vpop.f32.mrf.mxu0
    %v1379 = vadd.f32 %v1297, %v1378
    %1380 = vmatmul.f32.gmra.mxu0 %v1245
    %v1381 = vpop.f32.mrf.mxu0
    %v1382 = vadd.f32 %v1297, %v1381
    %1383 = vdwg.mxu0
    %1384 = vmatpush.msra.mxu0 %v1293
    %1385 = vmatpush.msra.mxu0 %v1290
    %1386 = vmatpush.msra.mxu0 %v1287
    %1387 = vmatpush.msra.mxu0 %v1284
    %1388 = vmatpush.msra.mxu0 %v1281
    %1389 = vmatpush.msra.mxu0 %v1278
    %1390 = vmatpush.msra.mxu0 %v1275
    %1391 = vmatpush.msra.mxu0 %v1272
    %1392 = vmatpush.msra.mxu0 %v1269
    %1393 = vmatpush.msra.mxu0 %v1266
    %1394 = vmatpush.msra.mxu0 %v1263
    %1395 = vmatpush.msra.mxu0 %v1260
    %1396 = vmatpush.msra.mxu0 %v1257
    %1397 = vmatpush.msra.mxu0 %v1254
    %1398 = vmatpush.msra.mxu0 %v1251
    %1399 = vmatpush.msra.mxu0 %v1248
    %1400 = vmatmul.f32.gmra.mxu0 %v1210
    %v1401 = vpop.f32.mrf.mxu0
    %v1402 = vadd.f32 %v1298, %v1401
    %1403 = vmatmul.f32.gmra.mxu0 %v1215
    %v1404 = vpop.f32.mrf.mxu0
    %v1405 = vadd.f32 %v1298, %v1404
    %1406 = vmatmul.f32.gmra.mxu0 %v1220
    %v1407 = vpop.f32.mrf.mxu0
    %v1408 = vadd.f32 %v1298, %v1407
    %1409 = vmatmul.f32.gmra.mxu0 %v1225
    %v1410 = vpop.f32.mrf.mxu0
    %v1411 = vadd.f32 %v1298, %v1410
    %1412 = vmatmul.f32.gmra.mxu0 %v1230
    %v1413 = vpop.f32.mrf.mxu0
    %v1414 = vadd.f32 %v1298, %v1413
    %1415 = vmatmul.f32.gmra.mxu0 %v1235
    %v1416 = vpop.f32.mrf.mxu0
    %v1417 = vadd.f32 %v1298, %v1416
    %1418 = vmatmul.f32.gmra.mxu0 %v1240
    %v1419 = vpop.f32.mrf.mxu0
    %v1420 = vadd.f32 %v1298, %v1419
    %1421 = vmatmul.f32.gmra.mxu0 %v1245
    %v1422 = vpop.f32.mrf.mxu0
    %v1423 = vadd.f32 %v1298, %v1422
    %1424 = vdwg.mxu0
    %1425 = vst [vmem:[#allocation2] sm:$0xff] %v1320
    %1426 = vst [vmem:[#allocation2 + $0x8] sm:$0xff] %v1361
    %1427 = vst [vmem:[#allocation2 + $0x10] sm:$0xff] %v1402
    %1428 = vst [vmem:[#allocation2 + $0x18] sm:$0xff] %v1323
    %1429 = vst [vmem:[#allocation2 + $0x20] sm:$0xff] %v1364
    %1430 = vst [vmem:[#allocation2 + $0x28] sm:$0xff] %v1405
    %1431 = vst [vmem:[#allocation2 + $0x30] sm:$0xff] %v1326
    %1432 = vst [vmem:[#allocation2 + $0x38] sm:$0xff] %v1367
    %1433 = vst [vmem:[#allocation2 + $0x40] sm:$0xff] %v1408
    %1434 = vst [vmem:[#allocation2 + $0x48] sm:$0xff] %v1329
    %1435 = vst [vmem:[#allocation2 + $0x50] sm:$0xff] %v1370
    %1436 = vst [vmem:[#allocation2 + $0x58] sm:$0xff] %v1411
    %1437 = vst [vmem:[#allocation2 + $0x60] sm:$0xff] %v1332
    %1438 = vst [vmem:[#allocation2 + $0x68] sm:$0xff] %v1373
    %1439 = vst [vmem:[#allocation2 + $0x70] sm:$0xff] %v1414
    %1440 = vst [vmem:[#allocation2 + $0x78] sm:$0xff] %v1335
    %1441 = vst [vmem:[#allocation2 + $0x80] sm:$0xff] %v1376
    %1442 = vst [vmem:[#allocation2 + $0x88] sm:$0xff] %v1417
    %1443 = vst [vmem:[#allocation2 + $0x90] sm:$0xff] %v1338
    %1444 = vst [vmem:[#allocation2 + $0x98] sm:$0xff] %v1379
    %1445 = vst [vmem:[#allocation2 + $0xa0] sm:$0xff] %v1420
    %1446 = vst [vmem:[#allocation2 + $0xa8] sm:$0xff] %v1341
    %1447 = vst [vmem:[#allocation2 + $0xb0] sm:$0xff] %v1382
    %1448 = vst [vmem:[#allocation2 + $0xb8] sm:$0xff] %v1423
    %v1449 = vld [vmem:[#allocation2] sm:$0xff]
    %v1450 = vld [vmem:[#allocation2 + $0x8] sm:$0xff]
    %v1451 = vld [vmem:[#allocation2 + $0x10] sm:$0xff]
    %v1452 = vld [vmem:[%s7] sm:$0xff]
    %v1453 = vld [vmem:[%s7 + $0x8] sm:$0xff]
    %v1454 = vld [vmem:[%s7 + $0x10] sm:$0xff]
    %v1455 = vld [vmem:[%s7 + $0x18] sm:$0xff]
    %v1456 = vld [vmem:[%s7 + $0x20] sm:$0xff]
    %v1457 = vld [vmem:[%s7 + $0x28] sm:$0xff]
    %v1458 = vld [vmem:[%s7 + $0x30] sm:$0xff]
    %v1459 = vld [vmem:[%s7 + $0x38] sm:$0xff]
    %v1460 = vld [vmem:[%s7 + $0x40] sm:$0xff]
    %v1461 = vld [vmem:[%s7 + $0x48] sm:$0xff]
    %v1462 = vld [vmem:[%s7 + $0x50] sm:$0xff]
    %v1463 = vld [vmem:[%s7 + $0x58] sm:$0xff]
    %v1464 = vld [vmem:[%s7 + $0x60] sm:$0xff]
    %v1465 = vld [vmem:[%s7 + $0x68] sm:$0xff]
    %v1466 = vld [vmem:[%s7 + $0x70] sm:$0xff]
    %v1467 = vld [vmem:[%s7 + $0x78] sm:$0xff]
    %v1468 = vld [vmem:[%s7 + $0x80] sm:$0xff]
    %v1469 = vld [vmem:[%s7 + $0x88] sm:$0xff]
    %v1470 = vld [vmem:[%s7 + $0x90] sm:$0xff]
    %v1471 = vld [vmem:[%s7 + $0x98] sm:$0xff]
    %v1472 = vld [vmem:[%s7 + $0xa0] sm:$0xff]
    %v1473 = vld [vmem:[%s7 + $0xa8] sm:$0xff]
    %v1474 = vld [vmem:[%s7 + $0xb0] sm:$0xff]
    %v1475 = vld [vmem:[%s7 + $0xb8] sm:$0xff]
    %v1476 = vld [vmem:[%s7 + $0xc0] sm:$0xff]
    %v1477 = vld [vmem:[%s7 + $0xc8] sm:$0xff]
    %v1478 = vld [vmem:[%s7 + $0xd0] sm:$0xff]
    %v1479 = vld [vmem:[%s7 + $0xd8] sm:$0xff]
    %v1480 = vld [vmem:[%s7 + $0xe0] sm:$0xff]
    %v1481 = vld [vmem:[%s7 + $0xe8] sm:$0xff]
    %v1482 = vld [vmem:[%s7 + $0xf0] sm:$0xff]
    %v1483 = vld [vmem:[%s7 + $0xf8] sm:$0xff]
    %v1484 = vld [vmem:[%s7 + $0x100] sm:$0xff]
    %v1485 = vld [vmem:[%s7 + $0x108] sm:$0xff]
    %v1486 = vld [vmem:[%s7 + $0x110] sm:$0xff]
    %v1487 = vld [vmem:[%s7 + $0x118] sm:$0xff]
    %v1488 = vld [vmem:[%s7 + $0x120] sm:$0xff]
    %v1489 = vld [vmem:[%s7 + $0x128] sm:$0xff]
    %v1490 = vld [vmem:[%s7 + $0x130] sm:$0xff]
    %v1491 = vld [vmem:[%s7 + $0x138] sm:$0xff]
    %v1492 = vld [vmem:[%s7 + $0x140] sm:$0xff]
    %v1493 = vld [vmem:[%s7 + $0x148] sm:$0xff]
    %v1494 = vld [vmem:[%s7 + $0x150] sm:$0xff]
    %v1495 = vld [vmem:[%s7 + $0x158] sm:$0xff]
    %v1496 = vld [vmem:[%s7 + $0x160] sm:$0xff]
    %v1497 = vld [vmem:[%s7 + $0x168] sm:$0xff]
    %v1498 = vld [vmem:[%s7 + $0x170] sm:$0xff]
    %v1499 = vld [vmem:[%s7 + $0x178] sm:$0xff]
    %1500 = vmatpush.msra.mxu0 %v1497
    %1501 = vmatpush.msra.mxu0 %v1494
    %1502 = vmatpush.msra.mxu0 %v1491
    %1503 = vmatpush.msra.mxu0 %v1488
    %1504 = vmatpush.msra.mxu0 %v1485
    %1505 = vmatpush.msra.mxu0 %v1482
    %1506 = vmatpush.msra.mxu0 %v1479
    %1507 = vmatpush.msra.mxu0 %v1476
    %1508 = vmatpush.msra.mxu0 %v1473
    %1509 = vmatpush.msra.mxu0 %v1470
    %1510 = vmatpush.msra.mxu0 %v1467
    %1511 = vmatpush.msra.mxu0 %v1464
    %1512 = vmatpush.msra.mxu0 %v1461
    %1513 = vmatpush.msra.mxu0 %v1458
    %1514 = vmatpush.msra.mxu0 %v1455
    %1515 = vmatpush.msra.mxu0 %v1452
    %1516 = vmatmul.f32.gmra.mxu0 %v57
    %v1517 = vpop.f32.mrf.mxu0
    %v1518 = vadd.f32 0.0, %v1517
    %1519 = vdwg.mxu0
    %1520 = vmatpush.msra.mxu0 %v1498
    %1521 = vmatpush.msra.mxu0 %v1495
    %1522 = vmatpush.msra.mxu0 %v1492
    %1523 = vmatpush.msra.mxu0 %v1489
    %1524 = vmatpush.msra.mxu0 %v1486
    %1525 = vmatpush.msra.mxu0 %v1483
    %1526 = vmatpush.msra.mxu0 %v1480
    %1527 = vmatpush.msra.mxu0 %v1477
    %1528 = vmatpush.msra.mxu0 %v1474
    %1529 = vmatpush.msra.mxu0 %v1471
    %1530 = vmatpush.msra.mxu0 %v1468
    %1531 = vmatpush.msra.mxu0 %v1465
    %1532 = vmatpush.msra.mxu0 %v1462
    %1533 = vmatpush.msra.mxu0 %v1459
    %1534 = vmatpush.msra.mxu0 %v1456
    %1535 = vmatpush.msra.mxu0 %v1453
    %1536 = vmatmul.f32.gmra.mxu0 %v57
    %v1537 = vpop.f32.mrf.mxu0
    %v1538 = vadd.f32 0.0, %v1537
    %1539 = vdwg.mxu0
    %1540 = vmatpush.msra.mxu0 %v1499
    %1541 = vmatpush.msra.mxu0 %v1496
    %1542 = vmatpush.msra.mxu0 %v1493
    %1543 = vmatpush.msra.mxu0 %v1490
    %1544 = vmatpush.msra.mxu0 %v1487
    %1545 = vmatpush.msra.mxu0 %v1484
    %1546 = vmatpush.msra.mxu0 %v1481
    %1547 = vmatpush.msra.mxu0 %v1478
    %1548 = vmatpush.msra.mxu0 %v1475
    %1549 = vmatpush.msra.mxu0 %v1472
    %1550 = vmatpush.msra.mxu0 %v1469
    %1551 = vmatpush.msra.mxu0 %v1466
    %1552 = vmatpush.msra.mxu0 %v1463
    %1553 = vmatpush.msra.mxu0 %v1460
    %1554 = vmatpush.msra.mxu0 %v1457
    %1555 = vmatpush.msra.mxu0 %v1454
    %1556 = vmatmul.f32.gmra.mxu0 %v57
    %v1557 = vpop.f32.mrf.mxu0
    %v1558 = vadd.f32 0.0, %v1557
    %1559 = vdwg.mxu0
    %v1560 = vadd.f32 %v1449, %v1518
    %v1561 = vadd.f32 %v1450, %v1538
    %v1562 = vxor.u32 %v1560, 2147483648
    %v1563 = vxor.u32 %v1561, 2147483648
    %v1564 = vmul.f32 %v1562, 1.442695
    %v1565 = vpow.pop %v1564
    %v1566 = vmul.f32 %v1563, 1.442695
    %v1567 = vpow.pop %v1566
    %v1568 = vadd.f32 %v1565, 1.0
    %v1569 = vadd.f32 %v1567, 1.0
    %v1570 = vrcp.pop %v1568
    %v1571 = vmul.f32 %v1568, %v1570
    %v1572 = vsub.f32 1.0, %v1571
    %v1573 = vmul.f32 %v1570, %v1572
    %v1574 = vadd.f32 %v1570, %v1573
    %vm1575 = vweird.f32 %v1568
    %vm1576 = vweird.f32 %v1570
    %vm1577 = vmor %vm1575, %vm1576
    %v1578 = vsel %vm1577, %v1570, %v1574
    %v1579 = vand.u32 2147483647, %v1568
    %vm1580 = vcmp.eq.f32.partialorder %v1579, 8.507059e+37
    %v1581 = vand.u32 %v1568, 2147483648
    %v1582 = vor.u32 1.1754944e-38, %v1581
    %v1583 = vsel %vm1580, %v1582, %v1578
    %v1584 = vmul.f32 1.0, %v1583
    %v1585 = vrcp.pop %v1569
    %v1586 = vmul.f32 %v1569, %v1585
    %v1587 = vsub.f32 1.0, %v1586
    %v1588 = vmul.f32 %v1585, %v1587
    %v1589 = vadd.f32 %v1585, %v1588
    %vm1590 = vweird.f32 %v1569
    %vm1591 = vweird.f32 %v1585
    %vm1592 = vmor %vm1590, %vm1591
    %v1593 = vsel %vm1592, %v1585, %v1589
    %v1594 = vand.u32 2147483647, %v1569
    %vm1595 = vcmp.eq.f32.partialorder %v1594, 8.507059e+37
    %v1596 = vand.u32 %v1569, 2147483648
    %v1597 = vor.u32 1.1754944e-38, %v1596
    %v1598 = vsel %vm1595, %v1597, %v1593
    %v1599 = vmul.f32 1.0, %v1598
    %v1600 = vmul.f32 %v1584, %v1558
    %v1601 = vadd.f32 %v1451, %v1600
    %v1602 = vtanh.pop %v1601
    %v1603 = vsub.f32 1.0, %v1599
    %v1604 = vmul.f32 %v1603, %v1602
    %v1605 = vmul.f32 %v1599, %v57
    %v1606 = vadd.f32 %v1604, %v1605
    %v1607 = vsel %vm39, %v1606, %v57
    %v1608 = vld [vmem:[#allocation2 + $0x18] sm:$0xff]
    %v1609 = vld [vmem:[#allocation2 + $0x20] sm:$0xff]
    %v1610 = vld [vmem:[#allocation2 + $0x28] sm:$0xff]
    %1611 = vmatpush.msra.mxu0 %v1497
    %1612 = vmatpush.msra.mxu0 %v1494
    %1613 = vmatpush.msra.mxu0 %v1491
    %1614 = vmatpush.msra.mxu0 %v1488
    %1615 = vmatpush.msra.mxu0 %v1485
    %1616 = vmatpush.msra.mxu0 %v1482
    %1617 = vmatpush.msra.mxu0 %v1479
    %1618 = vmatpush.msra.mxu0 %v1476
    %1619 = vmatpush.msra.mxu0 %v1473
    %1620 = vmatpush.msra.mxu0 %v1470
    %1621 = vmatpush.msra.mxu0 %v1467
    %1622 = vmatpush.msra.mxu0 %v1464
    %1623 = vmatpush.msra.mxu0 %v1461
    %1624 = vmatpush.msra.mxu0 %v1458
    %1625 = vmatpush.msra.mxu0 %v1455
    %1626 = vmatpush.msra.mxu0 %v1452
    %1627 = vmatmul.f32.gmra.mxu0 %v1607
    %v1628 = vpop.f32.mrf.mxu0
    %v1629 = vadd.f32 0.0, %v1628
    %1630 = vdwg.mxu0
    %1631 = vmatpush.msra.mxu0 %v1498
    %1632 = vmatpush.msra.mxu0 %v1495
    %1633 = vmatpush.msra.mxu0 %v1492
    %1634 = vmatpush.msra.mxu0 %v1489
    %1635 = vmatpush.msra.mxu0 %v1486
    %1636 = vmatpush.msra.mxu0 %v1483
    %1637 = vmatpush.msra.mxu0 %v1480
    %1638 = vmatpush.msra.mxu0 %v1477
    %1639 = vmatpush.msra.mxu0 %v1474
    %1640 = vmatpush.msra.mxu0 %v1471
    %1641 = vmatpush.msra.mxu0 %v1468
    %1642 = vmatpush.msra.mxu0 %v1465
    %1643 = vmatpush.msra.mxu0 %v1462
    %1644 = vmatpush.msra.mxu0 %v1459
    %1645 = vmatpush.msra.mxu0 %v1456
    %1646 = vmatpush.msra.mxu0 %v1453
    %1647 = vmatmul.f32.gmra.mxu0 %v1607
    %v1648 = vpop.f32.mrf.mxu0
    %v1649 = vadd.f32 0.0, %v1648
    %1650 = vdwg.mxu0
    %1651 = vmatpush.msra.mxu0 %v1499
    %1652 = vmatpush.msra.mxu0 %v1496
    %1653 = vmatpush.msra.mxu0 %v1493
    %1654 = vmatpush.msra.mxu0 %v1490
    %1655 = vmatpush.msra.mxu0 %v1487
    %1656 = vmatpush.msra.mxu0 %v1484
    %1657 = vmatpush.msra.mxu0 %v1481
    %1658 = vmatpush.msra.mxu0 %v1478
    %1659 = vmatpush.msra.mxu0 %v1475
    %1660 = vmatpush.msra.mxu0 %v1472
    %1661 = vmatpush.msra.mxu0 %v1469
    %1662 = vmatpush.msra.mxu0 %v1466
    %1663 = vmatpush.msra.mxu0 %v1463
    %1664 = vmatpush.msra.mxu0 %v1460
    %1665 = vmatpush.msra.mxu0 %v1457
    %1666 = vmatpush.msra.mxu0 %v1454
    %1667 = vmatmul.f32.gmra.mxu0 %v1607
    %v1668 = vpop.f32.mrf.mxu0
    %v1669 = vadd.f32 0.0, %v1668
    %1670 = vdwg.mxu0
    %v1671 = vadd.f32 %v1608, %v1629
    %v1672 = vadd.f32 %v1609, %v1649
    %v1673 = vxor.u32 %v1671, 2147483648
    %v1674 = vxor.u32 %v1672, 2147483648
    %v1675 = vmul.f32 %v1673, 1.442695
    %v1676 = vpow.pop %v1675
    %v1677 = vmul.f32 %v1674, 1.442695
    %v1678 = vpow.pop %v1677
    %v1679 = vadd.f32 %v1676, 1.0
    %v1680 = vadd.f32 %v1678, 1.0
    %v1681 = vrcp.pop %v1679
    %v1682 = vmul.f32 %v1679, %v1681
    %v1683 = vsub.f32 1.0, %v1682
    %v1684 = vmul.f32 %v1681, %v1683
    %v1685 = vadd.f32 %v1681, %v1684
    %vm1686 = vweird.f32 %v1679
    %vm1687 = vweird.f32 %v1681
    %vm1688 = vmor %vm1686, %vm1687
    %v1689 = vsel %vm1688, %v1681, %v1685
    %v1690 = vand.u32 2147483647, %v1679
    %vm1691 = vcmp.eq.f32.partialorder %v1690, 8.507059e+37
    %v1692 = vand.u32 %v1679, 2147483648
    %v1693 = vor.u32 1.1754944e-38, %v1692
    %v1694 = vsel %vm1691, %v1693, %v1689
    %v1695 = vmul.f32 1.0, %v1694
    %v1696 = vrcp.pop %v1680
    %v1697 = vmul.f32 %v1680, %v1696
    %v1698 = vsub.f32 1.0, %v1697
    %v1699 = vmul.f32 %v1696, %v1698
    %v1700 = vadd.f32 %v1696, %v1699
    %vm1701 = vweird.f32 %v1680
    %vm1702 = vweird.f32 %v1696
    %vm1703 = vmor %vm1701, %vm1702
    %v1704 = vsel %vm1703, %v1696, %v1700
    %v1705 = vand.u32 2147483647, %v1680
    %vm1706 = vcmp.eq.f32.partialorder %v1705, 8.507059e+37
    %v1707 = vand.u32 %v1680, 2147483648
    %v1708 = vor.u32 1.1754944e-38, %v1707
    %v1709 = vsel %vm1706, %v1708, %v1704
    %v1710 = vmul.f32 1.0, %v1709
    %v1711 = vmul.f32 %v1695, %v1669
    %v1712 = vadd.f32 %v1610, %v1711
    %v1713 = vtanh.pop %v1712
    %v1714 = vsub.f32 1.0, %v1710
    %v1715 = vmul.f32 %v1714, %v1713
    %v1716 = vmul.f32 %v1710, %v1607
    %v1717 = vadd.f32 %v1715, %v1716
    %v1718 = vsel %vm41, %v1717, %v1607
    %v1719 = vld [vmem:[#allocation2 + $0x30] sm:$0xff]
    %v1720 = vld [vmem:[#allocation2 + $0x38] sm:$0xff]
    %v1721 = vld [vmem:[#allocation2 + $0x40] sm:$0xff]
    %1722 = vmatpush.msra.mxu0 %v1497
    %1723 = vmatpush.msra.mxu0 %v1494
    %1724 = vmatpush.msra.mxu0 %v1491
    %1725 = vmatpush.msra.mxu0 %v1488
    %1726 = vmatpush.msra.mxu0 %v1485
    %1727 = vmatpush.msra.mxu0 %v1482
    %1728 = vmatpush.msra.mxu0 %v1479
    %1729 = vmatpush.msra.mxu0 %v1476
    %1730 = vmatpush.msra.mxu0 %v1473
    %1731 = vmatpush.msra.mxu0 %v1470
    %1732 = vmatpush.msra.mxu0 %v1467
    %1733 = vmatpush.msra.mxu0 %v1464
    %1734 = vmatpush.msra.mxu0 %v1461
    %1735 = vmatpush.msra.mxu0 %v1458
    %1736 = vmatpush.msra.mxu0 %v1455
    %1737 = vmatpush.msra.mxu0 %v1452
    %1738 = vmatmul.f32.gmra.mxu0 %v1718
    %v1739 = vpop.f32.mrf.mxu0
    %v1740 = vadd.f32 0.0, %v1739
    %1741 = vdwg.mxu0
    %1742 = vmatpush.msra.mxu0 %v1498
    %1743 = vmatpush.msra.mxu0 %v1495
    %1744 = vmatpush.msra.mxu0 %v1492
    %1745 = vmatpush.msra.mxu0 %v1489
    %1746 = vmatpush.msra.mxu0 %v1486
    %1747 = vmatpush.msra.mxu0 %v1483
    %1748 = vmatpush.msra.mxu0 %v1480
    %1749 = vmatpush.msra.mxu0 %v1477
    %1750 = vmatpush.msra.mxu0 %v1474
    %1751 = vmatpush.msra.mxu0 %v1471
    %1752 = vmatpush.msra.mxu0 %v1468
    %1753 = vmatpush.msra.mxu0 %v1465
    %1754 = vmatpush.msra.mxu0 %v1462
    %1755 = vmatpush.msra.mxu0 %v1459
    %1756 = vmatpush.msra.mxu0 %v1456
    %1757 = vmatpush.msra.mxu0 %v1453
    %1758 = vmatmul.f32.gmra.mxu0 %v1718
    %v1759 = vpop.f32.mrf.mxu0
    %v1760 = vadd.f32 0.0, %v1759
    %1761 = vdwg.mxu0
    %1762 = vmatpush.msra.mxu0 %v1499
    %1763 = vmatpush.msra.mxu0 %v1496
    %1764 = vmatpush.msra.mxu0 %v1493
    %1765 = vmatpush.msra.mxu0 %v1490
    %1766 = vmatpush.msra.mxu0 %v1487
    %1767 = vmatpush.msra.mxu0 %v1484
    %1768 = vmatpush.msra.mxu0 %v1481
    %1769 = vmatpush.msra.mxu0 %v1478
    %1770 = vmatpush.msra.mxu0 %v1475
    %1771 = vmatpush.msra.mxu0 %v1472
    %1772 = vmatpush.msra.mxu0 %v1469
    %1773 = vmatpush.msra.mxu0 %v1466
    %1774 = vmatpush.msra.mxu0 %v1463
    %1775 = vmatpush.msra.mxu0 %v1460
    %1776 = vmatpush.msra.mxu0 %v1457
    %1777 = vmatpush.msra.mxu0 %v1454
    %1778 = vmatmul.f32.gmra.mxu0 %v1718
    %v1779 = vpop.f32.mrf.mxu0
    %v1780 = vadd.f32 0.0, %v1779
    %1781 = vdwg.mxu0
    %v1782 = vadd.f32 %v1719, %v1740
    %v1783 = vadd.f32 %v1720, %v1760
    %v1784 = vxor.u32 %v1782, 2147483648
    %v1785 = vxor.u32 %v1783, 2147483648
    %v1786 = vmul.f32 %v1784, 1.442695
    %v1787 = vpow.pop %v1786
    %v1788 = vmul.f32 %v1785, 1.442695
    %v1789 = vpow.pop %v1788
    %v1790 = vadd.f32 %v1787, 1.0
    %v1791 = vadd.f32 %v1789, 1.0
    %v1792 = vrcp.pop %v1790
    %v1793 = vmul.f32 %v1790, %v1792
    %v1794 = vsub.f32 1.0, %v1793
    %v1795 = vmul.f32 %v1792, %v1794
    %v1796 = vadd.f32 %v1792, %v1795
    %vm1797 = vweird.f32 %v1790
    %vm1798 = vweird.f32 %v1792
    %vm1799 = vmor %vm1797, %vm1798
    %v1800 = vsel %vm1799, %v1792, %v1796
    %v1801 = vand.u32 2147483647, %v1790
    %vm1802 = vcmp.eq.f32.partialorder %v1801, 8.507059e+37
    %v1803 = vand.u32 %v1790, 2147483648
    %v1804 = vor.u32 1.1754944e-38, %v1803
    %v1805 = vsel %vm1802, %v1804, %v1800
    %v1806 = vmul.f32 1.0, %v1805
    %v1807 = vrcp.pop %v1791
    %v1808 = vmul.f32 %v1791, %v1807
    %v1809 = vsub.f32 1.0, %v1808
    %v1810 = vmul.f32 %v1807, %v1809
    %v1811 = vadd.f32 %v1807, %v1810
    %vm1812 = vweird.f32 %v1791
    %vm1813 = vweird.f32 %v1807
    %vm1814 = vmor %vm1812, %vm1813
    %v1815 = vsel %vm1814, %v1807, %v1811
    %v1816 = vand.u32 2147483647, %v1791
    %vm1817 = vcmp.eq.f32.partialorder %v1816, 8.507059e+37
    %v1818 = vand.u32 %v1791, 2147483648
    %v1819 = vor.u32 1.1754944e-38, %v1818
    %v1820 = vsel %vm1817, %v1819, %v1815
    %v1821 = vmul.f32 1.0, %v1820
    %v1822 = vmul.f32 %v1806, %v1780
    %v1823 = vadd.f32 %v1721, %v1822
    %v1824 = vtanh.pop %v1823
    %v1825 = vsub.f32 1.0, %v1821
    %v1826 = vmul.f32 %v1825, %v1824
    %v1827 = vmul.f32 %v1821, %v1718
    %v1828 = vadd.f32 %v1826, %v1827
    %v1829 = vsel %vm43, %v1828, %v1718
    %v1830 = vld [vmem:[#allocation2 + $0x48] sm:$0xff]
    %v1831 = vld [vmem:[#allocation2 + $0x50] sm:$0xff]
    %v1832 = vld [vmem:[#allocation2 + $0x58] sm:$0xff]
    %1833 = vmatpush.msra.mxu0 %v1497
    %1834 = vmatpush.msra.mxu0 %v1494
    %1835 = vmatpush.msra.mxu0 %v1491
    %1836 = vmatpush.msra.mxu0 %v1488
    %1837 = vmatpush.msra.mxu0 %v1485
    %1838 = vmatpush.msra.mxu0 %v1482
    %1839 = vmatpush.msra.mxu0 %v1479
    %1840 = vmatpush.msra.mxu0 %v1476
    %1841 = vmatpush.msra.mxu0 %v1473
    %1842 = vmatpush.msra.mxu0 %v1470
    %1843 = vmatpush.msra.mxu0 %v1467
    %1844 = vmatpush.msra.mxu0 %v1464
    %1845 = vmatpush.msra.mxu0 %v1461
    %1846 = vmatpush.msra.mxu0 %v1458
    %1847 = vmatpush.msra.mxu0 %v1455
    %1848 = vmatpush.msra.mxu0 %v1452
    %1849 = vmatmul.f32.gmra.mxu0 %v1829
    %v1850 = vpop.f32.mrf.mxu0
    %v1851 = vadd.f32 0.0, %v1850
    %1852 = vdwg.mxu0
    %1853 = vmatpush.msra.mxu0 %v1498
    %1854 = vmatpush.msra.mxu0 %v1495
    %1855 = vmatpush.msra.mxu0 %v1492
    %1856 = vmatpush.msra.mxu0 %v1489
    %1857 = vmatpush.msra.mxu0 %v1486
    %1858 = vmatpush.msra.mxu0 %v1483
    %1859 = vmatpush.msra.mxu0 %v1480
    %1860 = vmatpush.msra.mxu0 %v1477
    %1861 = vmatpush.msra.mxu0 %v1474
    %1862 = vmatpush.msra.mxu0 %v1471
    %1863 = vmatpush.msra.mxu0 %v1468
    %1864 = vmatpush.msra.mxu0 %v1465
    %1865 = vmatpush.msra.mxu0 %v1462
    %1866 = vmatpush.msra.mxu0 %v1459
    %1867 = vmatpush.msra.mxu0 %v1456
    %1868 = vmatpush.msra.mxu0 %v1453
    %1869 = vmatmul.f32.gmra.mxu0 %v1829
    %v1870 = vpop.f32.mrf.mxu0
    %v1871 = vadd.f32 0.0, %v1870
    %1872 = vdwg.mxu0
    %1873 = vmatpush.msra.mxu0 %v1499
    %1874 = vmatpush.msra.mxu0 %v1496
    %1875 = vmatpush.msra.mxu0 %v1493
    %1876 = vmatpush.msra.mxu0 %v1490
    %1877 = vmatpush.msra.mxu0 %v1487
    %1878 = vmatpush.msra.mxu0 %v1484
    %1879 = vmatpush.msra.mxu0 %v1481
    %1880 = vmatpush.msra.mxu0 %v1478
    %1881 = vmatpush.msra.mxu0 %v1475
    %1882 = vmatpush.msra.mxu0 %v1472
    %1883 = vmatpush.msra.mxu0 %v1469
    %1884 = vmatpush.msra.mxu0 %v1466
    %1885 = vmatpush.msra.mxu0 %v1463
    %1886 = vmatpush.msra.mxu0 %v1460
    %1887 = vmatpush.msra.mxu0 %v1457
    %1888 = vmatpush.msra.mxu0 %v1454
    %1889 = vmatmul.f32.gmra.mxu0 %v1829
    %v1890 = vpop.f32.mrf.mxu0
    %v1891 = vadd.f32 0.0, %v1890
    %1892 = vdwg.mxu0
    %v1893 = vadd.f32 %v1830, %v1851
    %v1894 = vadd.f32 %v1831, %v1871
    %v1895 = vxor.u32 %v1893, 2147483648
    %v1896 = vxor.u32 %v1894, 2147483648
    %v1897 = vmul.f32 %v1895, 1.442695
    %v1898 = vpow.pop %v1897
    %v1899 = vmul.f32 %v1896, 1.442695
    %v1900 = vpow.pop %v1899
    %v1901 = vadd.f32 %v1898, 1.0
    %v1902 = vadd.f32 %v1900, 1.0
    %v1903 = vrcp.pop %v1901
    %v1904 = vmul.f32 %v1901, %v1903
    %v1905 = vsub.f32 1.0, %v1904
    %v1906 = vmul.f32 %v1903, %v1905
    %v1907 = vadd.f32 %v1903, %v1906
    %vm1908 = vweird.f32 %v1901
    %vm1909 = vweird.f32 %v1903
    %vm1910 = vmor %vm1908, %vm1909
    %v1911 = vsel %vm1910, %v1903, %v1907
    %v1912 = vand.u32 2147483647, %v1901
    %vm1913 = vcmp.eq.f32.partialorder %v1912, 8.507059e+37
    %v1914 = vand.u32 %v1901, 2147483648
    %v1915 = vor.u32 1.1754944e-38, %v1914
    %v1916 = vsel %vm1913, %v1915, %v1911
    %v1917 = vmul.f32 1.0, %v1916
    %v1918 = vrcp.pop %v1902
    %v1919 = vmul.f32 %v1902, %v1918
    %v1920 = vsub.f32 1.0, %v1919
    %v1921 = vmul.f32 %v1918, %v1920
    %v1922 = vadd.f32 %v1918, %v1921
    %vm1923 = vweird.f32 %v1902
    %vm1924 = vweird.f32 %v1918
    %vm1925 = vmor %vm1923, %vm1924
    %v1926 = vsel %vm1925, %v1918, %v1922
    %v1927 = vand.u32 2147483647, %v1902
    %vm1928 = vcmp.eq.f32.partialorder %v1927, 8.507059e+37
    %v1929 = vand.u32 %v1902, 2147483648
    %v1930 = vor.u32 1.1754944e-38, %v1929
    %v1931 = vsel %vm1928, %v1930, %v1926
    %v1932 = vmul.f32 1.0, %v1931
    %v1933 = vmul.f32 %v1917, %v1891
    %v1934 = vadd.f32 %v1832, %v1933
    %v1935 = vtanh.pop %v1934
    %v1936 = vsub.f32 1.0, %v1932
    %v1937 = vmul.f32 %v1936, %v1935
    %v1938 = vmul.f32 %v1932, %v1829
    %v1939 = vadd.f32 %v1937, %v1938
    %v1940 = vsel %vm45, %v1939, %v1829
    %v1941 = vld [vmem:[#allocation2 + $0x60] sm:$0xff]
    %v1942 = vld [vmem:[#allocation2 + $0x68] sm:$0xff]
    %v1943 = vld [vmem:[#allocation2 + $0x70] sm:$0xff]
    %1944 = vmatpush.msra.mxu0 %v1497
    %1945 = vmatpush.msra.mxu0 %v1494
    %1946 = vmatpush.msra.mxu0 %v1491
    %1947 = vmatpush.msra.mxu0 %v1488
    %1948 = vmatpush.msra.mxu0 %v1485
    %1949 = vmatpush.msra.mxu0 %v1482
    %1950 = vmatpush.msra.mxu0 %v1479
    %1951 = vmatpush.msra.mxu0 %v1476
    %1952 = vmatpush.msra.mxu0 %v1473
    %1953 = vmatpush.msra.mxu0 %v1470
    %1954 = vmatpush.msra.mxu0 %v1467
    %1955 = vmatpush.msra.mxu0 %v1464
    %1956 = vmatpush.msra.mxu0 %v1461
    %1957 = vmatpush.msra.mxu0 %v1458
    %1958 = vmatpush.msra.mxu0 %v1455
    %1959 = vmatpush.msra.mxu0 %v1452
    %1960 = vmatmul.f32.gmra.mxu0 %v1940
    %v1961 = vpop.f32.mrf.mxu0
    %v1962 = vadd.f32 0.0, %v1961
    %1963 = vdwg.mxu0
    %1964 = vmatpush.msra.mxu0 %v1498
    %1965 = vmatpush.msra.mxu0 %v1495
    %1966 = vmatpush.msra.mxu0 %v1492
    %1967 = vmatpush.msra.mxu0 %v1489
    %1968 = vmatpush.msra.mxu0 %v1486
    %1969 = vmatpush.msra.mxu0 %v1483
    %1970 = vmatpush.msra.mxu0 %v1480
    %1971 = vmatpush.msra.mxu0 %v1477
    %1972 = vmatpush.msra.mxu0 %v1474
    %1973 = vmatpush.msra.mxu0 %v1471
    %1974 = vmatpush.msra.mxu0 %v1468
    %1975 = vmatpush.msra.mxu0 %v1465
    %1976 = vmatpush.msra.mxu0 %v1462
    %1977 = vmatpush.msra.mxu0 %v1459
    %1978 = vmatpush.msra.mxu0 %v1456
    %1979 = vmatpush.msra.mxu0 %v1453
    %1980 = vmatmul.f32.gmra.mxu0 %v1940
    %v1981 = vpop.f32.mrf.mxu0
    %v1982 = vadd.f32 0.0, %v1981
    %1983 = vdwg.mxu0
    %1984 = vmatpush.msra.mxu0 %v1499
    %1985 = vmatpush.msra.mxu0 %v1496
    %1986 = vmatpush.msra.mxu0 %v1493
    %1987 = vmatpush.msra.mxu0 %v1490
    %1988 = vmatpush.msra.mxu0 %v1487
    %1989 = vmatpush.msra.mxu0 %v1484
    %1990 = vmatpush.msra.mxu0 %v1481
    %1991 = vmatpush.msra.mxu0 %v1478
    %1992 = vmatpush.msra.mxu0 %v1475
    %1993 = vmatpush.msra.mxu0 %v1472
    %1994 = vmatpush.msra.mxu0 %v1469
    %1995 = vmatpush.msra.mxu0 %v1466
    %1996 = vmatpush.msra.mxu0 %v1463
    %1997 = vmatpush.msra.mxu0 %v1460
    %1998 = vmatpush.msra.mxu0 %v1457
    %1999 = vmatpush.msra.mxu0 %v1454
    %2000 = vmatmul.f32.gmra.mxu0 %v1940
    %v2001 = vpop.f32.mrf.mxu0
    %v2002 = vadd.f32 0.0, %v2001
    %2003 = vdwg.mxu0
    %v2004 = vadd.f32 %v1941, %v1962
    %v2005 = vadd.f32 %v1942, %v1982
    %v2006 = vxor.u32 %v2004, 2147483648
    %v2007 = vxor.u32 %v2005, 2147483648
    %v2008 = vmul.f32 %v2006, 1.442695
    %v2009 = vpow.pop %v2008
    %v2010 = vmul.f32 %v2007, 1.442695
    %v2011 = vpow.pop %v2010
    %v2012 = vadd.f32 %v2009, 1.0
    %v2013 = vadd.f32 %v2011, 1.0
    %v2014 = vrcp.pop %v2012
    %v2015 = vmul.f32 %v2012, %v2014
    %v2016 = vsub.f32 1.0, %v2015
    %v2017 = vmul.f32 %v2014, %v2016
    %v2018 = vadd.f32 %v2014, %v2017
    %vm2019 = vweird.f32 %v2012
    %vm2020 = vweird.f32 %v2014
    %vm2021 = vmor %vm2019, %vm2020
    %v2022 = vsel %vm2021, %v2014, %v2018
    %v2023 = vand.u32 2147483647, %v2012
    %vm2024 = vcmp.eq.f32.partialorder %v2023, 8.507059e+37
    %v2025 = vand.u32 %v2012, 2147483648
    %v2026 = vor.u32 1.1754944e-38, %v2025
    %v2027 = vsel %vm2024, %v2026, %v2022
    %v2028 = vmul.f32 1.0, %v2027
    %v2029 = vrcp.pop %v2013
    %v2030 = vmul.f32 %v2013, %v2029
    %v2031 = vsub.f32 1.0, %v2030
    %v2032 = vmul.f32 %v2029, %v2031
    %v2033 = vadd.f32 %v2029, %v2032
    %vm2034 = vweird.f32 %v2013
    %vm2035 = vweird.f32 %v2029
    %vm2036 = vmor %vm2034, %vm2035
    %v2037 = vsel %vm2036, %v2029, %v2033
    %v2038 = vand.u32 2147483647, %v2013
    %vm2039 = vcmp.eq.f32.partialorder %v2038, 8.507059e+37
    %v2040 = vand.u32 %v2013, 2147483648
    %v2041 = vor.u32 1.1754944e-38, %v2040
    %v2042 = vsel %vm2039, %v2041, %v2037
    %v2043 = vmul.f32 1.0, %v2042
    %v2044 = vmul.f32 %v2028, %v2002
    %v2045 = vadd.f32 %v1943, %v2044
    %v2046 = vtanh.pop %v2045
    %v2047 = vsub.f32 1.0, %v2043
    %v2048 = vmul.f32 %v2047, %v2046
    %v2049 = vmul.f32 %v2043, %v1940
    %v2050 = vadd.f32 %v2048, %v2049
    %v2051 = vsel %vm47, %v2050, %v1940
    %v2052 = vld [vmem:[#allocation2 + $0x78] sm:$0xff]
    %v2053 = vld [vmem:[#allocation2 + $0x80] sm:$0xff]
    %v2054 = vld [vmem:[#allocation2 + $0x88] sm:$0xff]
    %2055 = vmatpush.msra.mxu0 %v1497
    %2056 = vmatpush.msra.mxu0 %v1494
    %2057 = vmatpush.msra.mxu0 %v1491
    %2058 = vmatpush.msra.mxu0 %v1488
    %2059 = vmatpush.msra.mxu0 %v1485
    %2060 = vmatpush.msra.mxu0 %v1482
    %2061 = vmatpush.msra.mxu0 %v1479
    %2062 = vmatpush.msra.mxu0 %v1476
    %2063 = vmatpush.msra.mxu0 %v1473
    %2064 = vmatpush.msra.mxu0 %v1470
    %2065 = vmatpush.msra.mxu0 %v1467
    %2066 = vmatpush.msra.mxu0 %v1464
    %2067 = vmatpush.msra.mxu0 %v1461
    %2068 = vmatpush.msra.mxu0 %v1458
    %2069 = vmatpush.msra.mxu0 %v1455
    %2070 = vmatpush.msra.mxu0 %v1452
    %2071 = vmatmul.f32.gmra.mxu0 %v2051
    %v2072 = vpop.f32.mrf.mxu0
    %v2073 = vadd.f32 0.0, %v2072
    %2074 = vdwg.mxu0
    %2075 = vmatpush.msra.mxu0 %v1498
    %2076 = vmatpush.msra.mxu0 %v1495
    %2077 = vmatpush.msra.mxu0 %v1492
    %2078 = vmatpush.msra.mxu0 %v1489
    %2079 = vmatpush.msra.mxu0 %v1486
    %2080 = vmatpush.msra.mxu0 %v1483
    %2081 = vmatpush.msra.mxu0 %v1480
    %2082 = vmatpush.msra.mxu0 %v1477
    %2083 = vmatpush.msra.mxu0 %v1474
    %2084 = vmatpush.msra.mxu0 %v1471
    %2085 = vmatpush.msra.mxu0 %v1468
    %2086 = vmatpush.msra.mxu0 %v1465
    %2087 = vmatpush.msra.mxu0 %v1462
    %2088 = vmatpush.msra.mxu0 %v1459
    %2089 = vmatpush.msra.mxu0 %v1456
    %2090 = vmatpush.msra.mxu0 %v1453
    %2091 = vmatmul.f32.gmra.mxu0 %v2051
    %v2092 = vpop.f32.mrf.mxu0
    %v2093 = vadd.f32 0.0, %v2092
    %2094 = vdwg.mxu0
    %2095 = vmatpush.msra.mxu0 %v1499
    %2096 = vmatpush.msra.mxu0 %v1496
    %2097 = vmatpush.msra.mxu0 %v1493
    %2098 = vmatpush.msra.mxu0 %v1490
    %2099 = vmatpush.msra.mxu0 %v1487
    %2100 = vmatpush.msra.mxu0 %v1484
    %2101 = vmatpush.msra.mxu0 %v1481
    %2102 = vmatpush.msra.mxu0 %v1478
    %2103 = vmatpush.msra.mxu0 %v1475
    %2104 = vmatpush.msra.mxu0 %v1472
    %2105 = vmatpush.msra.mxu0 %v1469
    %2106 = vmatpush.msra.mxu0 %v1466
    %2107 = vmatpush.msra.mxu0 %v1463
    %2108 = vmatpush.msra.mxu0 %v1460
    %2109 = vmatpush.msra.mxu0 %v1457
    %2110 = vmatpush.msra.mxu0 %v1454
    %2111 = vmatmul.f32.gmra.mxu0 %v2051
    %v2112 = vpop.f32.mrf.mxu0
    %v2113 = vadd.f32 0.0, %v2112
    %2114 = vdwg.mxu0
    %v2115 = vadd.f32 %v2052, %v2073
    %v2116 = vadd.f32 %v2053, %v2093
    %v2117 = vxor.u32 %v2115, 2147483648
    %v2118 = vxor.u32 %v2116, 2147483648
    %v2119 = vmul.f32 %v2117, 1.442695
    %v2120 = vpow.pop %v2119
    %v2121 = vmul.f32 %v2118, 1.442695
    %v2122 = vpow.pop %v2121
    %v2123 = vadd.f32 %v2120, 1.0
    %v2124 = vadd.f32 %v2122, 1.0
    %v2125 = vrcp.pop %v2123
    %v2126 = vmul.f32 %v2123, %v2125
    %v2127 = vsub.f32 1.0, %v2126
    %v2128 = vmul.f32 %v2125, %v2127
    %v2129 = vadd.f32 %v2125, %v2128
    %vm2130 = vweird.f32 %v2123
    %vm2131 = vweird.f32 %v2125
    %vm2132 = vmor %vm2130, %vm2131
    %v2133 = vsel %vm2132, %v2125, %v2129
    %v2134 = vand.u32 2147483647, %v2123
    %vm2135 = vcmp.eq.f32.partialorder %v2134, 8.507059e+37
    %v2136 = vand.u32 %v2123, 2147483648
    %v2137 = vor.u32 1.1754944e-38, %v2136
    %v2138 = vsel %vm2135, %v2137, %v2133
    %v2139 = vmul.f32 1.0, %v2138
    %v2140 = vrcp.pop %v2124
    %v2141 = vmul.f32 %v2124, %v2140
    %v2142 = vsub.f32 1.0, %v2141
    %v2143 = vmul.f32 %v2140, %v2142
    %v2144 = vadd.f32 %v2140, %v2143
    %vm2145 = vweird.f32 %v2124
    %vm2146 = vweird.f32 %v2140
    %vm2147 = vmor %vm2145, %vm2146
    %v2148 = vsel %vm2147, %v2140, %v2144
    %v2149 = vand.u32 2147483647, %v2124
    %vm2150 = vcmp.eq.f32.partialorder %v2149, 8.507059e+37
    %v2151 = vand.u32 %v2124, 2147483648
    %v2152 = vor.u32 1.1754944e-38, %v2151
    %v2153 = vsel %vm2150, %v2152, %v2148
    %v2154 = vmul.f32 1.0, %v2153
    %v2155 = vmul.f32 %v2139, %v2113
    %v2156 = vadd.f32 %v2054, %v2155
    %v2157 = vtanh.pop %v2156
    %v2158 = vsub.f32 1.0, %v2154
    %v2159 = vmul.f32 %v2158, %v2157
    %v2160 = vmul.f32 %v2154, %v2051
    %v2161 = vadd.f32 %v2159, %v2160
    %v2162 = vsel %vm49, %v2161, %v2051
    %v2163 = vld [vmem:[#allocation2 + $0x90] sm:$0xff]
    %v2164 = vld [vmem:[#allocation2 + $0x98] sm:$0xff]
    %v2165 = vld [vmem:[#allocation2 + $0xa0] sm:$0xff]
    %2166 = vmatpush.msra.mxu0 %v1497
    %2167 = vmatpush.msra.mxu0 %v1494
    %2168 = vmatpush.msra.mxu0 %v1491
    %2169 = vmatpush.msra.mxu0 %v1488
    %2170 = vmatpush.msra.mxu0 %v1485
    %2171 = vmatpush.msra.mxu0 %v1482
    %2172 = vmatpush.msra.mxu0 %v1479
    %2173 = vmatpush.msra.mxu0 %v1476
    %2174 = vmatpush.msra.mxu0 %v1473
    %2175 = vmatpush.msra.mxu0 %v1470
    %2176 = vmatpush.msra.mxu0 %v1467
    %2177 = vmatpush.msra.mxu0 %v1464
    %2178 = vmatpush.msra.mxu0 %v1461
    %2179 = vmatpush.msra.mxu0 %v1458
    %2180 = vmatpush.msra.mxu0 %v1455
    %2181 = vmatpush.msra.mxu0 %v1452
    %2182 = vmatmul.f32.gmra.mxu0 %v2162
    %v2183 = vpop.f32.mrf.mxu0
    %v2184 = vadd.f32 0.0, %v2183
    %2185 = vdwg.mxu0
    %2186 = vmatpush.msra.mxu0 %v1498
    %2187 = vmatpush.msra.mxu0 %v1495
    %2188 = vmatpush.msra.mxu0 %v1492
    %2189 = vmatpush.msra.mxu0 %v1489
    %2190 = vmatpush.msra.mxu0 %v1486
    %2191 = vmatpush.msra.mxu0 %v1483
    %2192 = vmatpush.msra.mxu0 %v1480
    %2193 = vmatpush.msra.mxu0 %v1477
    %2194 = vmatpush.msra.mxu0 %v1474
    %2195 = vmatpush.msra.mxu0 %v1471
    %2196 = vmatpush.msra.mxu0 %v1468
    %2197 = vmatpush.msra.mxu0 %v1465
    %2198 = vmatpush.msra.mxu0 %v1462
    %2199 = vmatpush.msra.mxu0 %v1459
    %2200 = vmatpush.msra.mxu0 %v1456
    %2201 = vmatpush.msra.mxu0 %v1453
    %2202 = vmatmul.f32.gmra.mxu0 %v2162
    %v2203 = vpop.f32.mrf.mxu0
    %v2204 = vadd.f32 0.0, %v2203
    %2205 = vdwg.mxu0
    %2206 = vmatpush.msra.mxu0 %v1499
    %2207 = vmatpush.msra.mxu0 %v1496
    %2208 = vmatpush.msra.mxu0 %v1493
    %2209 = vmatpush.msra.mxu0 %v1490
    %2210 = vmatpush.msra.mxu0 %v1487
    %2211 = vmatpush.msra.mxu0 %v1484
    %2212 = vmatpush.msra.mxu0 %v1481
    %2213 = vmatpush.msra.mxu0 %v1478
    %2214 = vmatpush.msra.mxu0 %v1475
    %2215 = vmatpush.msra.mxu0 %v1472
    %2216 = vmatpush.msra.mxu0 %v1469
    %2217 = vmatpush.msra.mxu0 %v1466
    %2218 = vmatpush.msra.mxu0 %v1463
    %2219 = vmatpush.msra.mxu0 %v1460
    %2220 = vmatpush.msra.mxu0 %v1457
    %2221 = vmatpush.msra.mxu0 %v1454
    %2222 = vmatmul.f32.gmra.mxu0 %v2162
    %v2223 = vpop.f32.mrf.mxu0
    %v2224 = vadd.f32 0.0, %v2223
    %2225 = vdwg.mxu0
    %v2226 = vadd.f32 %v2163, %v2184
    %v2227 = vadd.f32 %v2164, %v2204
    %v2228 = vxor.u32 %v2226, 2147483648
    %v2229 = vxor.u32 %v2227, 2147483648
    %v2230 = vmul.f32 %v2228, 1.442695
    %v2231 = vpow.pop %v2230
    %v2232 = vmul.f32 %v2229, 1.442695
    %v2233 = vpow.pop %v2232
    %v2234 = vadd.f32 %v2231, 1.0
    %v2235 = vadd.f32 %v2233, 1.0
    %v2236 = vrcp.pop %v2234
    %v2237 = vmul.f32 %v2234, %v2236
    %v2238 = vsub.f32 1.0, %v2237
    %v2239 = vmul.f32 %v2236, %v2238
    %v2240 = vadd.f32 %v2236, %v2239
    %vm2241 = vweird.f32 %v2234
    %vm2242 = vweird.f32 %v2236
    %vm2243 = vmor %vm2241, %vm2242
    %v2244 = vsel %vm2243, %v2236, %v2240
    %v2245 = vand.u32 2147483647, %v2234
    %vm2246 = vcmp.eq.f32.partialorder %v2245, 8.507059e+37
    %v2247 = vand.u32 %v2234, 2147483648
    %v2248 = vor.u32 1.1754944e-38, %v2247
    %v2249 = vsel %vm2246, %v2248, %v2244
    %v2250 = vmul.f32 1.0, %v2249
    %v2251 = vrcp.pop %v2235
    %v2252 = vmul.f32 %v2235, %v2251
    %v2253 = vsub.f32 1.0, %v2252
    %v2254 = vmul.f32 %v2251, %v2253
    %v2255 = vadd.f32 %v2251, %v2254
    %vm2256 = vweird.f32 %v2235
    %vm2257 = vweird.f32 %v2251
    %vm2258 = vmor %vm2256, %vm2257
    %v2259 = vsel %vm2258, %v2251, %v2255
    %v2260 = vand.u32 2147483647, %v2235
    %vm2261 = vcmp.eq.f32.partialorder %v2260, 8.507059e+37
    %v2262 = vand.u32 %v2235, 2147483648
    %v2263 = vor.u32 1.1754944e-38, %v2262
    %v2264 = vsel %vm2261, %v2263, %v2259
    %v2265 = vmul.f32 1.0, %v2264
    %v2266 = vmul.f32 %v2250, %v2224
    %v2267 = vadd.f32 %v2165, %v2266
    %v2268 = vtanh.pop %v2267
    %v2269 = vsub.f32 1.0, %v2265
    %v2270 = vmul.f32 %v2269, %v2268
    %v2271 = vmul.f32 %v2265, %v2162
    %v2272 = vadd.f32 %v2270, %v2271
    %v2273 = vsel %vm51, %v2272, %v2162
    %v2274 = vld [vmem:[#allocation2 + $0xa8] sm:$0xff]
    %v2275 = vld [vmem:[#allocation2 + $0xb0] sm:$0xff]
    %v2276 = vld [vmem:[#allocation2 + $0xb8] sm:$0xff]
    %2277 = vmatpush.msra.mxu0 %v1497
    %2278 = vmatpush.msra.mxu0 %v1494
    %2279 = vmatpush.msra.mxu0 %v1491
    %2280 = vmatpush.msra.mxu0 %v1488
    %2281 = vmatpush.msra.mxu0 %v1485
    %2282 = vmatpush.msra.mxu0 %v1482
    %2283 = vmatpush.msra.mxu0 %v1479
    %2284 = vmatpush.msra.mxu0 %v1476
    %2285 = vmatpush.msra.mxu0 %v1473
    %2286 = vmatpush.msra.mxu0 %v1470
    %2287 = vmatpush.msra.mxu0 %v1467
    %2288 = vmatpush.msra.mxu0 %v1464
    %2289 = vmatpush.msra.mxu0 %v1461
    %2290 = vmatpush.msra.mxu0 %v1458
    %2291 = vmatpush.msra.mxu0 %v1455
    %2292 = vmatpush.msra.mxu0 %v1452
    %2293 = vmatmul.f32.gmra.mxu0 %v2273
    %v2294 = vpop.f32.mrf.mxu0
    %v2295 = vadd.f32 0.0, %v2294
    %2296 = vdwg.mxu0
    %2297 = vmatpush.msra.mxu0 %v1498
    %2298 = vmatpush.msra.mxu0 %v1495
    %2299 = vmatpush.msra.mxu0 %v1492
    %2300 = vmatpush.msra.mxu0 %v1489
    %2301 = vmatpush.msra.mxu0 %v1486
    %2302 = vmatpush.msra.mxu0 %v1483
    %2303 = vmatpush.msra.mxu0 %v1480
    %2304 = vmatpush.msra.mxu0 %v1477
    %2305 = vmatpush.msra.mxu0 %v1474
    %2306 = vmatpush.msra.mxu0 %v1471
    %2307 = vmatpush.msra.mxu0 %v1468
    %2308 = vmatpush.msra.mxu0 %v1465
    %2309 = vmatpush.msra.mxu0 %v1462
    %2310 = vmatpush.msra.mxu0 %v1459
    %2311 = vmatpush.msra.mxu0 %v1456
    %2312 = vmatpush.msra.mxu0 %v1453
    %2313 = vmatmul.f32.gmra.mxu0 %v2273
    %v2314 = vpop.f32.mrf.mxu0
    %v2315 = vadd.f32 0.0, %v2314
    %2316 = vdwg.mxu0
    %2317 = vmatpush.msra.mxu0 %v1499
    %2318 = vmatpush.msra.mxu0 %v1496
    %2319 = vmatpush.msra.mxu0 %v1493
    %2320 = vmatpush.msra.mxu0 %v1490
    %2321 = vmatpush.msra.mxu0 %v1487
    %2322 = vmatpush.msra.mxu0 %v1484
    %2323 = vmatpush.msra.mxu0 %v1481
    %2324 = vmatpush.msra.mxu0 %v1478
    %2325 = vmatpush.msra.mxu0 %v1475
    %2326 = vmatpush.msra.mxu0 %v1472
    %2327 = vmatpush.msra.mxu0 %v1469
    %2328 = vmatpush.msra.mxu0 %v1466
    %2329 = vmatpush.msra.mxu0 %v1463
    %2330 = vmatpush.msra.mxu0 %v1460
    %2331 = vmatpush.msra.mxu0 %v1457
    %2332 = vmatpush.msra.mxu0 %v1454
    %2333 = vmatmul.f32.gmra.mxu0 %v2273
    %v2334 = vpop.f32.mrf.mxu0
    %v2335 = vadd.f32 0.0, %v2334
    %2336 = vdwg.mxu0
    %v2337 = vadd.f32 %v2274, %v2295
    %v2338 = vadd.f32 %v2275, %v2315
    %v2339 = vxor.u32 %v2337, 2147483648
    %v2340 = vxor.u32 %v2338, 2147483648
    %v2341 = vmul.f32 %v2339, 1.442695
    %v2342 = vpow.pop %v2341
    %v2343 = vmul.f32 %v2340, 1.442695
    %v2344 = vpow.pop %v2343
    %v2345 = vadd.f32 %v2342, 1.0
    %v2346 = vadd.f32 %v2344, 1.0
    %v2347 = vrcp.pop %v2345
    %v2348 = vmul.f32 %v2345, %v2347
    %v2349 = vsub.f32 1.0, %v2348
    %v2350 = vmul.f32 %v2347, %v2349
    %v2351 = vadd.f32 %v2347, %v2350
    %vm2352 = vweird.f32 %v2345
    %vm2353 = vweird.f32 %v2347
    %vm2354 = vmor %vm2352, %vm2353
    %v2355 = vsel %vm2354, %v2347, %v2351
    %v2356 = vand.u32 2147483647, %v2345
    %vm2357 = vcmp.eq.f32.partialorder %v2356, 8.507059e+37
    %v2358 = vand.u32 %v2345, 2147483648
    %v2359 = vor.u32 1.1754944e-38, %v2358
    %v2360 = vsel %vm2357, %v2359, %v2355
    %v2361 = vmul.f32 1.0, %v2360
    %v2362 = vrcp.pop %v2346
    %v2363 = vmul.f32 %v2346, %v2362
    %v2364 = vsub.f32 1.0, %v2363
    %v2365 = vmul.f32 %v2362, %v2364
    %v2366 = vadd.f32 %v2362, %v2365
    %vm2367 = vweird.f32 %v2346
    %vm2368 = vweird.f32 %v2362
    %vm2369 = vmor %vm2367, %vm2368
    %v2370 = vsel %vm2369, %v2362, %v2366
    %v2371 = vand.u32 2147483647, %v2346
    %vm2372 = vcmp.eq.f32.partialorder %v2371, 8.507059e+37
    %v2373 = vand.u32 %v2346, 2147483648
    %v2374 = vor.u32 1.1754944e-38, %v2373
    %v2375 = vsel %vm2372, %v2374, %v2370
    %v2376 = vmul.f32 1.0, %v2375
    %v2377 = vmul.f32 %v2361, %v2335
    %v2378 = vadd.f32 %v2276, %v2377
    %v2379 = vtanh.pop %v2378
    %v2380 = vsub.f32 1.0, %v2376
    %v2381 = vmul.f32 %v2380, %v2379
    %v2382 = vmul.f32 %v2376, %v2273
    %v2383 = vadd.f32 %v2381, %v2382
    %v2384 = vsel %vm53, %v2383, %v2273
    %2386 = vrot.lane.b32.xlu0 %v2384, 96
    %v2387 = vpop.permute.xlu0 %2386
    %2389 = vrot.lane.b32.xlu0 %v2384, 32
    %v2390 = vpop.permute.xlu0 %2389
    %vm2392 = vcmask 261120
    %v2393 = vsel %vm2392, %v2387, %v2390
    %2394 = vst.msk [vmem:[#allocation3] sm:$0xff] %vm98, %v2393
    %v2395 = vld [vmem:[%s8] sm:$0xff]
    %v2396 = vld [vmem:[%s8 + $0x8] sm:$0xff]
    %v2397 = vld [vmem:[%s8 + $0x10] sm:$0xff]
    %v2398 = vld [vmem:[%s8 + $0x18] sm:$0xff]
    %v2399 = vld [vmem:[%s8 + $0x20] sm:$0xff]
    %v2400 = vld [vmem:[%s8 + $0x28] sm:$0xff]
    %v2401 = vld [vmem:[%s8 + $0x30] sm:$0xff]
    %v2402 = vld [vmem:[%s8 + $0x38] sm:$0xff]
    %v2403 = vld [vmem:[%s9] sm:$0x1]
    %v2405 = vperm.slane %v2403, 0
    %v2408 = vsel %vm98, %v2393, 0
    %2410 = vmatpush.msra.mxu0 0.0
    %2411 = vmatpush.msra.mxu0 0.0
    %2412 = vmatpush.msra.mxu0 0.0
    %2413 = vmatpush.msra.mxu0 0.0
    %2414 = vmatpush.msra.mxu0 0.0
    %2415 = vmatpush.msra.mxu0 0.0
    %2416 = vmatpush.msra.mxu0 0.0
    %2417 = vmatpush.msra.mxu0 0.0
    %2418 = vmatpush.msra.mxu0 %v2402
    %2419 = vmatpush.msra.mxu0 %v2401
    %2420 = vmatpush.msra.mxu0 %v2400
    %2421 = vmatpush.msra.mxu0 %v2399
    %2422 = vmatpush.msra.mxu0 %v2398
    %2423 = vmatpush.msra.mxu0 %v2397
    %2424 = vmatpush.msra.mxu0 %v2396
    %2425 = vmatpush.msra.mxu0 %v2395
    %2426 = vmatmul.f32.gmra.mxu0 %v2408
    %v2427 = vpop.f32.mrf.mxu0
    %v2428 = vadd.f32 %v2405, %v2427
    %2429 = vdwg.mxu0
    %vm2430 = vcmask 31744
    %2431 = vst.msk [vmem:[%s10] sm:$0xff] %vm2430, %v2428
    // Predicated region
    $region42: #{rnn_classifier_forward.1} parent=1 // pred_check
      _
    $region43: #{rnn_classifier_forward.1} parent=1 // pred_check_branch
      %2433 = sbr.rel (0) target = $region45
    $region44: #{rnn_classifier_forward.1} parent=1 // pred_region
      _
    $region45: #{rnn_classifier_forward.1} parent=1 // pred_fallthru
      _
    // Predicated region
    $region46: #{rnn_classifier_forward.1} parent=1 // pred_check
      _
    $region47: #{rnn_classifier_forward.1} parent=1 // pred_check_branch
      %2435 = sbr.rel (0) target = $region49
    $region48: #{rnn_classifier_forward.1} parent=1 // pred_region
      %2437 = vsyncadd [#allocation4], 0
      %s2439 = sshll.u32 [#allocation3], 4
      %s2440 = int_to_ptr.vmem [resolvable:$true] %s2439
      %s2441 = sshll.u32 %s11, 4
      %s2442 = int_to_ptr.hbm [resolvable:$true] %s2441
      %2444 = dma.vmem_to_hbm [thread:$0]  %s2440, 128, %s2442, [#allocation4]
    $region49: #{rnn_classifier_forward.1} parent=1 // pred_fallthru
      _
    // Predicated region
    $region50: #{rnn_classifier_forward.1} parent=1 // pred_check
      _
    $region51: #{rnn_classifier_forward.1} parent=1 // pred_check_branch
      %2446 = sbr.rel (0) target = $region53
    $region52: #{rnn_classifier_forward.1} parent=1 // pred_region
      _
    $region53: #{rnn_classifier_forward.1} parent=1 // pred_fallthru
      _
    // Predicated region
    $region54: #{rnn_classifier_forward.1} parent=1 // pred_check
      _
    $region55: #{rnn_classifier_forward.1} parent=1 // pred_check_branch
      %2448 = sbr.rel (0) target = $region57
    $region56: #{rnn_classifier_forward.1} parent=1 // pred_region
      %2450 = dma.done [#allocation4], 128
    $region57: #{rnn_classifier_forward.1} parent=1 // pred_fallthru
      _
    %2451 = vsyncpa [#allocation4], 1

</llo_original>
